<compile_context>
chip_gen: v7x
topology: tpu7x:2x2x1
jax: 0.10.0
libtpu: 0.0.40
codegen_flags: <defaults>
</compile_context>

<pallas_src>
import numpy as np

import jax
import jax.numpy as jnp
from jax import lax
from jax.experimental import pallas as pl
from jax.experimental.pallas import tpu as pltpu


# ----------------------------- Pallas kernel -------------------------------

def _lenet_kernel(x_ref,                                   # (TB*32, 96)
                  w1_ref, sr1_ref, b1_ref,                 # conv1
                  w2_ref, sr2_ref, b2_ref,                 # conv2
                  pr1_ref, pc1_ref, pr2_ref, pc2_ref,      # max-pool selectors
                  sf_ref, wf1_ref, bf1_ref,                # flatten + fc1
                  wf2_ref, bf2_ref, wf3_ref, bf3_ref,      # fc2, fc3 (padded)
                  out_ref):                                # (TB, 128)
    f32 = jnp.float32
    x = x_ref[...]                                               # (TB*32, 96)

    # ---- conv1 (5x5, 3->6) + bias + ReLU: rows=(b,oh), lanes=(ow*6+oc) ----
    # Row-shift the input first (cheaper: 96 lanes < 168 lanes), then matmul
    # against the banded per-tap weight.
    acc = None
    for kh in range(5):
        xs = jnp.dot(sr1_ref[kh], x, preferred_element_type=f32)        # (TB*28, 96)
        q = jnp.dot(xs, w1_ref[kh], preferred_element_type=f32)         # (TB*28, 168)
        acc = q if acc is None else acc + q
    h1 = jnp.maximum(acc + b1_ref[...], 0.0)                            # (TB*28, 168)

    # ---- maxpool 2x2 -> (TB*14, 84) ---------------------------------------
    r1 = jnp.maximum(jnp.dot(pr1_ref[0], h1, preferred_element_type=f32),
                     jnp.dot(pr1_ref[1], h1, preferred_element_type=f32))   # (TB*14, 168)
    p1 = jnp.maximum(jnp.dot(r1, pc1_ref[0], preferred_element_type=f32),
                     jnp.dot(r1, pc1_ref[1], preferred_element_type=f32))   # (TB*14, 84)

    # ---- conv2 (5x5, 6->16) + bias + ReLU ---------------------------------
    acc = None
    for kh in range(5):
        ps = jnp.dot(sr2_ref[kh], p1, preferred_element_type=f32)       # (TB*10, 84)
        q = jnp.dot(ps, w2_ref[kh], preferred_element_type=f32)         # (TB*10, 160)
        acc = q if acc is None else acc + q
    h2 = jnp.maximum(acc + b2_ref[...], 0.0)                            # (TB*10, 160)

    # ---- maxpool 2x2 -> (TB*5, 80) ----------------------------------------
    r2 = jnp.maximum(jnp.dot(pr2_ref[0], h2, preferred_element_type=f32),
                     jnp.dot(pr2_ref[1], h2, preferred_element_type=f32))   # (TB*5, 160)
    p2 = jnp.maximum(jnp.dot(r2, pc2_ref[0], preferred_element_type=f32),
                     jnp.dot(r2, pc2_ref[1], preferred_element_type=f32))   # (TB*5, 80)

    # ---- flatten (NCHW order folded into fc1 weights) + fc1 + ReLU --------
    acc = None
    for h in range(5):
        rh = jnp.dot(sf_ref[h], p2, preferred_element_type=f32)         # (TB, 80)
        q = jnp.dot(rh, wf1_ref[h], preferred_element_type=f32)         # (TB, 120)
        acc = q if acc is None else acc + q
    z1 = jnp.maximum(acc + bf1_ref[...], 0.0)                           # (TB, 120)

    # ---- fc2 + ReLU, fc3 (output padded to 128 lanes for dense stores) ----
    z2 = jnp.maximum(jnp.dot(z1, wf2_ref[...], preferred_element_type=f32)
                     + bf2_ref[...], 0.0)                               # (TB, 84)
    z3 = jnp.dot(z2, wf3_ref[...], preferred_element_type=f32) + bf3_ref[...]  # (TB, 128)
    out_ref[...] = z3.astype(out_ref.dtype)


# -------------------- one-time parameter preparation -----------------------

def pick_batch_tile(batch):
    """Batch tile: 8 rows of the (B,128) output block when possible, else B
    (keeps the out-block second-minor dim either 8-divisible or full)."""
    return 8 if batch % 8 == 0 else batch


def prepare_params(params, tb):
    """Hoist all weight permutations / selection matrices out of the forward."""
    f32 = jnp.float32

    # conv1: banded weight per row-tap kh, maps lanes (w_in*3+c) -> (ow*6+oc).
    wt1 = jnp.transpose(params["conv1_w"].astype(f32), (2, 3, 1, 0))   # (KH,KW,IC,OC)
    win = jnp.arange(32)[:, None]
    ow = jnp.arange(28)[None, :]
    kwi = win - ow
    mask = ((kwi >= 0) & (kwi < 5)).astype(f32)
    band = wt1[:, jnp.clip(kwi, 0, 4)] * mask[None, :, :, None, None]  # (5,32,28,3,6)
    W1K = jnp.transpose(band, (0, 1, 3, 2, 4)).reshape(5, 96, 168)

    # conv2: same construction, (w_in*6+c) -> (ow*16+oc).
    wt2 = jnp.transpose(params["conv2_w"].astype(f32), (2, 3, 1, 0))   # (5,5,6,16)
    win2 = jnp.arange(14)[:, None]
    ow2 = jnp.arange(10)[None, :]
    kwi2 = win2 - ow2
    mask2 = ((kwi2 >= 0) & (kwi2 < 5)).astype(f32)
    band2 = wt2[:, jnp.clip(kwi2, 0, 4)] * mask2[None, :, :, None, None]  # (5,14,10,6,16)
    W2K = jnp.transpose(band2, (0, 1, 3, 2, 4)).reshape(5, 84, 160)

    B1 = jnp.tile(params["conv1_b"].astype(f32), 28).reshape(1, 168)
    B2 = jnp.tile(params["conv2_b"].astype(f32), 10).reshape(1, 160)

    # fc1 weight split into 5 row blocks (h), folding the NCHW flatten order.
    fc1 = params["fc1_w"].astype(f32).reshape(120, 16, 5, 5)           # (j,c,h,w)
    WF1 = jnp.transpose(fc1, (2, 3, 1, 0)).reshape(5, 80, 120)         # [h][w*16+c, j]
    BF1 = params["fc1_b"].astype(f32).reshape(1, 120)
    WF2 = params["fc2_w"].astype(f32).T                                # (120, 84)
    BF2 = params["fc2_b"].astype(f32).reshape(1, 84)
    WF3 = jnp.zeros((84, 128), f32).at[:, :10].set(params["fc3_w"].astype(f32).T)
    BF3 = jnp.zeros((1, 128), f32).at[0, :10].set(params["fc3_b"].astype(f32))

    # 0/1 selection matrices (row shifts for conv taps, pooling, flatten).
    eye_tb = np.eye(tb, dtype=np.float32)
    SR1 = np.stack([np.kron(eye_tb, np.eye(28, 32, k=kh, dtype=np.float32))
                    for kh in range(5)])                               # (5, tb*28, tb*32)
    SR2 = np.stack([np.kron(eye_tb, np.eye(10, 14, k=kh, dtype=np.float32))
                    for kh in range(5)])                               # (5, tb*10, tb*14)

    def row_pool_sel(n_out):
        e = np.zeros((n_out, 2 * n_out), np.float32)
        o = np.zeros((n_out, 2 * n_out), np.float32)
        e[np.arange(n_out), 2 * np.arange(n_out)] = 1.0
        o[np.arange(n_out), 2 * np.arange(n_out) + 1] = 1.0
        return e, o

    pe14, po14 = row_pool_sel(14)
    PR1 = np.stack([np.kron(eye_tb, pe14), np.kron(eye_tb, po14)])     # (2, tb*14, tb*28)
    pe5, po5 = row_pool_sel(5)
    PR2 = np.stack([np.kron(eye_tb, pe5), np.kron(eye_tb, po5)])       # (2, tb*5, tb*10)

    def col_pool_sel(n_out, c):
        e = np.zeros((2 * n_out, n_out), np.float32)
        o = np.zeros((2 * n_out, n_out), np.float32)
        e[2 * np.arange(n_out), np.arange(n_out)] = 1.0
        o[2 * np.arange(n_out) + 1, np.arange(n_out)] = 1.0
        eyec = np.eye(c, dtype=np.float32)
        return np.stack([np.kron(e, eyec), np.kron(o, eyec)])

    PC1 = col_pool_sel(14, 6)                                          # (2, 168, 84)
    PC2 = col_pool_sel(5, 16)                                          # (2, 160, 80)

    eye5 = np.eye(5, dtype=np.float32)
    SF = np.stack([np.kron(eye_tb, eye5[h:h + 1]) for h in range(5)])  # (5, tb, tb*5)

    prep = {
        "W1K": W1K, "SR1": jnp.asarray(SR1), "B1": B1,
        "W2K": W2K, "SR2": jnp.asarray(SR2), "B2": B2,
        "PR1": jnp.asarray(PR1), "PC1": jnp.asarray(PC1),
        "PR2": jnp.asarray(PR2), "PC2": jnp.asarray(PC2),
        "SF": jnp.asarray(SF), "WF1": WF1, "BF1": BF1,
        "WF2": WF2, "BF2": BF2, "WF3": WF3, "BF3": BF3,
    }
    return prep


# ----------------------------- forward pass ---------------------------------

_CONST_ORDER = ("W1K", "SR1", "B1", "W2K", "SR2", "B2",
                "PR1", "PC1", "PR2", "PC2",
                "SF", "WF1", "BF1", "WF2", "BF2", "WF3", "BF3")


def _const_spec(arr):
    zeros = (0,) * arr.ndim
    return pl.BlockSpec(arr.shape, lambda i: zeros)


def net_forward(prep, x_nchw):
    """Forward pass equivalent to the PyTorch Net.forward. x_nchw: (B,3,32,32)."""
    B = x_nchw.shape[0]
    tb = prep["SR1"].shape[1] // 28
    assert B % tb == 0, "batch must be divisible by the prepared batch tile"
    nb = B // tb

    # Boundary glue only: NCHW -> rows=(b,h), lanes=(w*3+c).
    x2d = jnp.transpose(x_nchw.astype(jnp.float32), (0, 2, 3, 1)).reshape(B * 32, 96)

    consts = [prep[k] for k in _CONST_ORDER]
    out = pl.pallas_call(
        _lenet_kernel,
        out_shape=jax.ShapeDtypeStruct((B, 128), jnp.float32),
        grid=(nb,),
        in_specs=[pl.BlockSpec((tb * 32, 96), lambda i: (i, 0))]
                 + [_const_spec(a) for a in consts],
        out_specs=pl.BlockSpec((tb, 128), lambda i: (i, 0)),
        compiler_params=pltpu.CompilerParams(dimension_semantics=("parallel",)),
    )(x2d, *consts)
    return out[:, :10]


# ----------------------------- reference + init -----------------------------

def net_forward_reference(params, x_nchw):
    """Pure-JAX reference (matches the PyTorch module semantics)."""
    hi = lax.Precision.HIGHEST
    dn = ("NCHW", "OIHW", "NCHW")
    x = x_nchw.astype(jnp.float32)
    y = lax.conv_general_dilated(x, params["conv1_w"], (1, 1), "VALID",
                                 dimension_numbers=dn, precision=hi)
    y = jnp.maximum(y + params["conv1_b"][None, :, None, None], 0.0)
    y = lax.reduce_window(y, -jnp.inf, lax.max, (1, 1, 2, 2), (1, 1, 2, 2), "VALID")
    y = lax.conv_general_dilated(y, params["conv2_w"], (1, 1), "VALID",
                                 dimension_numbers=dn, precision=hi)
    y = jnp.maximum(y + params["conv2_b"][None, :, None, None], 0.0)
    y = lax.reduce_window(y, -jnp.inf, lax.max, (1, 1, 2, 2), (1, 1, 2, 2), "VALID")
    f = y.reshape(y.shape[0], -1)                                       # NCHW flatten
    z = jnp.maximum(jnp.dot(f, params["fc1_w"].T, precision=hi) + params["fc1_b"], 0.0)
    z = jnp.maximum(jnp.dot(z, params["fc2_w"].T, precision=hi) + params["fc2_b"], 0.0)
    return jnp.dot(z, params["fc3_w"].T, precision=hi) + params["fc3_b"]


def init_params(key):
    """Deterministic synthetic parameters with PyTorch-default-style bounds."""
    ks = jax.random.split(key, 10)

    def u(k, shape, fan_in):
        bound = 1.0 / jnp.sqrt(jnp.float32(fan_in))
        return jax.random.uniform(k, shape, jnp.float32, -bound, bound)

    return {
        "conv1_w": u(ks[0], (6, 3, 5, 5), 3 * 5 * 5),
        "conv1_b": u(ks[1], (6,), 3 * 5 * 5),
        "conv2_w": u(ks[2], (16, 6, 5, 5), 6 * 5 * 5),
        "conv2_b": u(ks[3], (16,), 6 * 5 * 5),
        "fc1_w": u(ks[4], (120, 16 * 5 * 5), 16 * 5 * 5),
        "fc1_b": u(ks[5], (120,), 16 * 5 * 5),
        "fc2_w": u(ks[6], (84, 120), 120),
        "fc2_b": u(ks[7], (84,), 120),
        "fc3_w": u(ks[8], (10, 84), 84),
        "fc3_b": u(ks[9], (10,), 84),
    }


if __name__ == "__main__":
    key = jax.random.PRNGKey(0)
    pkey, xkey = jax.random.split(key)
    params = init_params(pkey)
    # fc1 expects 16*5*5 features -> spatial size must be 32x32 (CIFAR-like).
    x = jax.random.normal(xkey, (2, 3, 32, 32), dtype=jnp.float32)

    tb = pick_batch_tile(x.shape[0])
    prep = prepare_params(params, tb)          # one-time, outside the hot path

    out = jax.jit(net_forward)(prep, x)
    out = jax.block_until_ready(out)
    assert out.shape == (2, 10) and out.dtype == jnp.float32

    ref = net_forward_reference(params, x)
    np.testing.assert_allclose(np.asarray(out), np.asarray(ref), rtol=2e-3, atol=2e-3)

    print("KERNEL_OK")
</pallas_src>

<mosaic_0001>
module attributes {stable_mosaic.version = 11 : i64} {
  func.func @_lenet_kernel(%arg0: i32, %arg1: memref<64x96xf32, #tpu.memory_space<vmem>>, %arg2: memref<5x96x168xf32, #tpu.memory_space<vmem>>, %arg3: memref<5x56x64xf32, #tpu.memory_space<vmem>>, %arg4: memref<1x168xf32, #tpu.memory_space<vmem>>, %arg5: memref<5x84x160xf32, #tpu.memory_space<vmem>>, %arg6: memref<5x20x28xf32, #tpu.memory_space<vmem>>, %arg7: memref<1x160xf32, #tpu.memory_space<vmem>>, %arg8: memref<2x28x56xf32, #tpu.memory_space<vmem>>, %arg9: memref<2x168x84xf32, #tpu.memory_space<vmem>>, %arg10: memref<2x10x20xf32, #tpu.memory_space<vmem>>, %arg11: memref<2x160x80xf32, #tpu.memory_space<vmem>>, %arg12: memref<5x2x10xf32, #tpu.memory_space<vmem>>, %arg13: memref<5x80x120xf32, #tpu.memory_space<vmem>>, %arg14: memref<1x120xf32, #tpu.memory_space<vmem>>, %arg15: memref<120x84xf32, #tpu.memory_space<vmem>>, %arg16: memref<1x84xf32, #tpu.memory_space<vmem>>, %arg17: memref<84x128xf32, #tpu.memory_space<vmem>>, %arg18: memref<1x128xf32, #tpu.memory_space<vmem>>, %arg19: memref<2x128xf32, #tpu.memory_space<vmem>>) attributes {dimension_semantics = [#tpu.dimension_semantics<parallel>], iteration_bounds = array<i64: 1>, scalar_prefetch = 0 : i64, scratch_operands = 0 : i64, tpu.core_type = #tpu.core_type<tc>, window_params = [{transform_indices = @transform_0, window_bounds = array<i64: 64, 96>}, {pipeline_mode = #tpu.pipeline_mode<synchronous>, transform_indices = @transform_1, window_bounds = array<i64: 5, 96, 168>}, {pipeline_mode = #tpu.pipeline_mode<synchronous>, transform_indices = @transform_2, window_bounds = array<i64: 5, 56, 64>}, {pipeline_mode = #tpu.pipeline_mode<synchronous>, transform_indices = @transform_3, window_bounds = array<i64: 1, 168>}, {pipeline_mode = #tpu.pipeline_mode<synchronous>, transform_indices = @transform_4, window_bounds = array<i64: 5, 84, 160>}, {pipeline_mode = #tpu.pipeline_mode<synchronous>, transform_indices = @transform_5, window_bounds = array<i64: 5, 20, 28>}, {pipeline_mode = #tpu.pipeline_mode<synchronous>, transform_indices = @transform_6, window_bounds = array<i64: 1, 160>}, {pipeline_mode = #tpu.pipeline_mode<synchronous>, transform_indices = @transform_7, window_bounds = array<i64: 2, 28, 56>}, {pipeline_mode = #tpu.pipeline_mode<synchronous>, transform_indices = @transform_8, window_bounds = array<i64: 2, 168, 84>}, {pipeline_mode = #tpu.pipeline_mode<synchronous>, transform_indices = @transform_9, window_bounds = array<i64: 2, 10, 20>}, {pipeline_mode = #tpu.pipeline_mode<synchronous>, transform_indices = @transform_10, window_bounds = array<i64: 2, 160, 80>}, {pipeline_mode = #tpu.pipeline_mode<synchronous>, transform_indices = @transform_11, window_bounds = array<i64: 5, 2, 10>}, {pipeline_mode = #tpu.pipeline_mode<synchronous>, transform_indices = @transform_12, window_bounds = array<i64: 5, 80, 120>}, {pipeline_mode = #tpu.pipeline_mode<synchronous>, transform_indices = @transform_13, window_bounds = array<i64: 1, 120>}, {pipeline_mode = #tpu.pipeline_mode<synchronous>, transform_indices = @transform_14, window_bounds = array<i64: 120, 84>}, {pipeline_mode = #tpu.pipeline_mode<synchronous>, transform_indices = @transform_15, window_bounds = array<i64: 1, 84>}, {pipeline_mode = #tpu.pipeline_mode<synchronous>, transform_indices = @transform_16, window_bounds = array<i64: 84, 128>}, {pipeline_mode = #tpu.pipeline_mode<synchronous>, transform_indices = @transform_17, window_bounds = array<i64: 1, 128>}, {transform_indices = @transform_18, window_bounds = array<i64: 2, 128>}]} {
    %c0 = arith.constant 0 : index
    %c0_0 = arith.constant 0 : index
    %0 = vector.load %arg1[%c0, %c0_0] : memref<64x96xf32, #tpu.memory_space<vmem>>, vector<64x96xf32>
    %c0_1 = arith.constant 0 : index
    %c0_2 = arith.constant 0 : index
    %c0_3 = arith.constant 0 : index
    %1 = vector.load %arg3[%c0_1, %c0_2, %c0_3] : memref<5x56x64xf32, #tpu.memory_space<vmem>>, vector<1x56x64xf32>
    %2 = vector.shape_cast %1 : vector<1x56x64xf32> to vector<56x64xf32>
    %cst = arith.constant dense<0.000000e+00> : vector<56x96xf32>
    %3 = tpu.matmul %2, %0, %cst {dimension_numbers = #tpu.dot_dimension_numbers<[1], [0], [0], [1], [0, 0, 1, 1], [], []>} : vector<56x64xf32>, vector<64x96xf32>, vector<56x96xf32> -> vector<56x96xf32>
    %c0_4 = arith.constant 0 : index
    %c0_5 = arith.constant 0 : index
    %c0_6 = arith.constant 0 : index
    %4 = vector.load %arg2[%c0_4, %c0_5, %c0_6] : memref<5x96x168xf32, #tpu.memory_space<vmem>>, vector<1x96x168xf32>
    %5 = vector.shape_cast %4 : vector<1x96x168xf32> to vector<96x168xf32>
    %cst_7 = arith.constant dense<0.000000e+00> : vector<56x168xf32>
    %6 = tpu.matmul %3, %5, %cst_7 {dimension_numbers = #tpu.dot_dimension_numbers<[1], [0], [0], [1], [0, 0, 1, 1], [], []>} : vector<56x96xf32>, vector<96x168xf32>, vector<56x168xf32> -> vector<56x168xf32>
    %c1 = arith.constant 1 : index
    %c0_8 = arith.constant 0 : index
    %c0_9 = arith.constant 0 : index
    %7 = vector.load %arg3[%c1, %c0_8, %c0_9] : memref<5x56x64xf32, #tpu.memory_space<vmem>>, vector<1x56x64xf32>
    %8 = vector.shape_cast %7 : vector<1x56x64xf32> to vector<56x64xf32>
    %cst_10 = arith.constant dense<0.000000e+00> : vector<56x96xf32>
    %9 = tpu.matmul %8, %0, %cst_10 {dimension_numbers = #tpu.dot_dimension_numbers<[1], [0], [0], [1], [0, 0, 1, 1], [], []>} : vector<56x64xf32>, vector<64x96xf32>, vector<56x96xf32> -> vector<56x96xf32>
    %c1_11 = arith.constant 1 : index
    %c0_12 = arith.constant 0 : index
    %c0_13 = arith.constant 0 : index
    %10 = vector.load %arg2[%c1_11, %c0_12, %c0_13] : memref<5x96x168xf32, #tpu.memory_space<vmem>>, vector<1x96x168xf32>
    %11 = vector.shape_cast %10 : vector<1x96x168xf32> to vector<96x168xf32>
    %cst_14 = arith.constant dense<0.000000e+00> : vector<56x168xf32>
    %12 = tpu.matmul %9, %11, %cst_14 {dimension_numbers = #tpu.dot_dimension_numbers<[1], [0], [0], [1], [0, 0, 1, 1], [], []>} : vector<56x96xf32>, vector<96x168xf32>, vector<56x168xf32> -> vector<56x168xf32>
    %13 = arith.addf %6, %12 : vector<56x168xf32>
    %c2 = arith.constant 2 : index
    %c0_15 = arith.constant 0 : index
    %c0_16 = arith.constant 0 : index
    %14 = vector.load %arg3[%c2, %c0_15, %c0_16] : memref<5x56x64xf32, #tpu.memory_space<vmem>>, vector<1x56x64xf32>
    %15 = vector.shape_cast %14 : vector<1x56x64xf32> to vector<56x64xf32>
    %cst_17 = arith.constant dense<0.000000e+00> : vector<56x96xf32>
    %16 = tpu.matmul %15, %0, %cst_17 {dimension_numbers = #tpu.dot_dimension_numbers<[1], [0], [0], [1], [0, 0, 1, 1], [], []>} : vector<56x64xf32>, vector<64x96xf32>, vector<56x96xf32> -> vector<56x96xf32>
    %c2_18 = arith.constant 2 : index
    %c0_19 = arith.constant 0 : index
    %c0_20 = arith.constant 0 : index
    %17 = vector.load %arg2[%c2_18, %c0_19, %c0_20] : memref<5x96x168xf32, #tpu.memory_space<vmem>>, vector<1x96x168xf32>
    %18 = vector.shape_cast %17 : vector<1x96x168xf32> to vector<96x168xf32>
    %cst_21 = arith.constant dense<0.000000e+00> : vector<56x168xf32>
    %19 = tpu.matmul %16, %18, %cst_21 {dimension_numbers = #tpu.dot_dimension_numbers<[1], [0], [0], [1], [0, 0, 1, 1], [], []>} : vector<56x96xf32>, vector<96x168xf32>, vector<56x168xf32> -> vector<56x168xf32>
    %20 = arith.addf %13, %19 : vector<56x168xf32>
    %c3 = arith.constant 3 : index
    %c0_22 = arith.constant 0 : index
    %c0_23 = arith.constant 0 : index
    %21 = vector.load %arg3[%c3, %c0_22, %c0_23] : memref<5x56x64xf32, #tpu.memory_space<vmem>>, vector<1x56x64xf32>
    %22 = vector.shape_cast %21 : vector<1x56x64xf32> to vector<56x64xf32>
    %cst_24 = arith.constant dense<0.000000e+00> : vector<56x96xf32>
    %23 = tpu.matmul %22, %0, %cst_24 {dimension_numbers = #tpu.dot_dimension_numbers<[1], [0], [0], [1], [0, 0, 1, 1], [], []>} : vector<56x64xf32>, vector<64x96xf32>, vector<56x96xf32> -> vector<56x96xf32>
    %c3_25 = arith.constant 3 : index
    %c0_26 = arith.constant 0 : index
    %c0_27 = arith.constant 0 : index
    %24 = vector.load %arg2[%c3_25, %c0_26, %c0_27] : memref<5x96x168xf32, #tpu.memory_space<vmem>>, vector<1x96x168xf32>
    %25 = vector.shape_cast %24 : vector<1x96x168xf32> to vector<96x168xf32>
    %cst_28 = arith.constant dense<0.000000e+00> : vector<56x168xf32>
    %26 = tpu.matmul %23, %25, %cst_28 {dimension_numbers = #tpu.dot_dimension_numbers<[1], [0], [0], [1], [0, 0, 1, 1], [], []>} : vector<56x96xf32>, vector<96x168xf32>, vector<56x168xf32> -> vector<56x168xf32>
    %27 = arith.addf %20, %26 : vector<56x168xf32>
    %c4 = arith.constant 4 : index
    %c0_29 = arith.constant 0 : index
    %c0_30 = arith.constant 0 : index
    %28 = vector.load %arg3[%c4, %c0_29, %c0_30] : memref<5x56x64xf32, #tpu.memory_space<vmem>>, vector<1x56x64xf32>
    %29 = vector.shape_cast %28 : vector<1x56x64xf32> to vector<56x64xf32>
    %cst_31 = arith.constant dense<0.000000e+00> : vector<56x96xf32>
    %30 = tpu.matmul %29, %0, %cst_31 {dimension_numbers = #tpu.dot_dimension_numbers<[1], [0], [0], [1], [0, 0, 1, 1], [], []>} : vector<56x64xf32>, vector<64x96xf32>, vector<56x96xf32> -> vector<56x96xf32>
    %c4_32 = arith.constant 4 : index
    %c0_33 = arith.constant 0 : index
    %c0_34 = arith.constant 0 : index
    %31 = vector.load %arg2[%c4_32, %c0_33, %c0_34] : memref<5x96x168xf32, #tpu.memory_space<vmem>>, vector<1x96x168xf32>
    %32 = vector.shape_cast %31 : vector<1x96x168xf32> to vector<96x168xf32>
    %cst_35 = arith.constant dense<0.000000e+00> : vector<56x168xf32>
    %33 = tpu.matmul %30, %32, %cst_35 {dimension_numbers = #tpu.dot_dimension_numbers<[1], [0], [0], [1], [0, 0, 1, 1], [], []>} : vector<56x96xf32>, vector<96x168xf32>, vector<56x168xf32> -> vector<56x168xf32>
    %34 = arith.addf %27, %33 : vector<56x168xf32>
    %c0_36 = arith.constant 0 : index
    %c0_37 = arith.constant 0 : index
    %35 = vector.load %arg4[%c0_36, %c0_37] : memref<1x168xf32, #tpu.memory_space<vmem>>, vector<1x168xf32>
    %36 = vector.broadcast %35 : vector<1x168xf32> to vector<56x168xf32>
    %37 = arith.addf %34, %36 : vector<56x168xf32>
    %cst_38 = arith.constant 0.000000e+00 : f32
    %38 = vector.broadcast %cst_38 : f32 to vector<56x168xf32>
    %39 = arith.maximumf %37, %38 : vector<56x168xf32>
    %c0_39 = arith.constant 0 : index
    %c0_40 = arith.constant 0 : index
    %c0_41 = arith.constant 0 : index
    %40 = vector.load %arg8[%c0_39, %c0_40, %c0_41] : memref<2x28x56xf32, #tpu.memory_space<vmem>>, vector<1x28x56xf32>
    %41 = vector.shape_cast %40 : vector<1x28x56xf32> to vector<28x56xf32>
    %cst_42 = arith.constant dense<0.000000e+00> : vector<28x168xf32>
    %42 = tpu.matmul %41, %39, %cst_42 {dimension_numbers = #tpu.dot_dimension_numbers<[1], [0], [0], [1], [0, 0, 1, 1], [], []>} : vector<28x56xf32>, vector<56x168xf32>, vector<28x168xf32> -> vector<28x168xf32>
    %c1_43 = arith.constant 1 : index
    %c0_44 = arith.constant 0 : index
    %c0_45 = arith.constant 0 : index
    %43 = vector.load %arg8[%c1_43, %c0_44, %c0_45] : memref<2x28x56xf32, #tpu.memory_space<vmem>>, vector<1x28x56xf32>
    %44 = vector.shape_cast %43 : vector<1x28x56xf32> to vector<28x56xf32>
    %cst_46 = arith.constant dense<0.000000e+00> : vector<28x168xf32>
    %45 = tpu.matmul %44, %39, %cst_46 {dimension_numbers = #tpu.dot_dimension_numbers<[1], [0], [0], [1], [0, 0, 1, 1], [], []>} : vector<28x56xf32>, vector<56x168xf32>, vector<28x168xf32> -> vector<28x168xf32>
    %46 = arith.maximumf %42, %45 : vector<28x168xf32>
    %c0_47 = arith.constant 0 : index
    %c0_48 = arith.constant 0 : index
    %c0_49 = arith.constant 0 : index
    %47 = vector.load %arg9[%c0_47, %c0_48, %c0_49] : memref<2x168x84xf32, #tpu.memory_space<vmem>>, vector<1x168x84xf32>
    %48 = vector.shape_cast %47 : vector<1x168x84xf32> to vector<168x84xf32>
    %cst_50 = arith.constant dense<0.000000e+00> : vector<28x84xf32>
    %49 = tpu.matmul %46, %48, %cst_50 {dimension_numbers = #tpu.dot_dimension_numbers<[1], [0], [0], [1], [0, 0, 1, 1], [], []>} : vector<28x168xf32>, vector<168x84xf32>, vector<28x84xf32> -> vector<28x84xf32>
    %c1_51 = arith.constant 1 : index
    %c0_52 = arith.constant 0 : index
    %c0_53 = arith.constant 0 : index
    %50 = vector.load %arg9[%c1_51, %c0_52, %c0_53] : memref<2x168x84xf32, #tpu.memory_space<vmem>>, vector<1x168x84xf32>
    %51 = vector.shape_cast %50 : vector<1x168x84xf32> to vector<168x84xf32>
    %cst_54 = arith.constant dense<0.000000e+00> : vector<28x84xf32>
    %52 = tpu.matmul %46, %51, %cst_54 {dimension_numbers = #tpu.dot_dimension_numbers<[1], [0], [0], [1], [0, 0, 1, 1], [], []>} : vector<28x168xf32>, vector<168x84xf32>, vector<28x84xf32> -> vector<28x84xf32>
    %53 = arith.maximumf %49, %52 : vector<28x84xf32>
    %c0_55 = arith.constant 0 : index
    %c0_56 = arith.constant 0 : index
    %c0_57 = arith.constant 0 : index
    %54 = vector.load %arg6[%c0_55, %c0_56, %c0_57] : memref<5x20x28xf32, #tpu.memory_space<vmem>>, vector<1x20x28xf32>
    %55 = vector.shape_cast %54 : vector<1x20x28xf32> to vector<20x28xf32>
    %cst_58 = arith.constant dense<0.000000e+00> : vector<20x84xf32>
    %56 = tpu.matmul %55, %53, %cst_58 {dimension_numbers = #tpu.dot_dimension_numbers<[1], [0], [0], [1], [0, 0, 1, 1], [], []>} : vector<20x28xf32>, vector<28x84xf32>, vector<20x84xf32> -> vector<20x84xf32>
    %c0_59 = arith.constant 0 : index
    %c0_60 = arith.constant 0 : index
    %c0_61 = arith.constant 0 : index
    %57 = vector.load %arg5[%c0_59, %c0_60, %c0_61] : memref<5x84x160xf32, #tpu.memory_space<vmem>>, vector<1x84x160xf32>
    %58 = vector.shape_cast %57 : vector<1x84x160xf32> to vector<84x160xf32>
    %cst_62 = arith.constant dense<0.000000e+00> : vector<20x160xf32>
    %59 = tpu.matmul %56, %58, %cst_62 {dimension_numbers = #tpu.dot_dimension_numbers<[1], [0], [0], [1], [0, 0, 1, 1], [], []>} : vector<20x84xf32>, vector<84x160xf32>, vector<20x160xf32> -> vector<20x160xf32>
    %c1_63 = arith.constant 1 : index
    %c0_64 = arith.constant 0 : index
    %c0_65 = arith.constant 0 : index
    %60 = vector.load %arg6[%c1_63, %c0_64, %c0_65] : memref<5x20x28xf32, #tpu.memory_space<vmem>>, vector<1x20x28xf32>
    %61 = vector.shape_cast %60 : vector<1x20x28xf32> to vector<20x28xf32>
    %cst_66 = arith.constant dense<0.000000e+00> : vector<20x84xf32>
    %62 = tpu.matmul %61, %53, %cst_66 {dimension_numbers = #tpu.dot_dimension_numbers<[1], [0], [0], [1], [0, 0, 1, 1], [], []>} : vector<20x28xf32>, vector<28x84xf32>, vector<20x84xf32> -> vector<20x84xf32>
    %c1_67 = arith.constant 1 : index
    %c0_68 = arith.constant 0 : index
    %c0_69 = arith.constant 0 : index
    %63 = vector.load %arg5[%c1_67, %c0_68, %c0_69] : memref<5x84x160xf32, #tpu.memory_space<vmem>>, vector<1x84x160xf32>
    %64 = vector.shape_cast %63 : vector<1x84x160xf32> to vector<84x160xf32>
    %cst_70 = arith.constant dense<0.000000e+00> : vector<20x160xf32>
    %65 = tpu.matmul %62, %64, %cst_70 {dimension_numbers = #tpu.dot_dimension_numbers<[1], [0], [0], [1], [0, 0, 1, 1], [], []>} : vector<20x84xf32>, vector<84x160xf32>, vector<20x160xf32> -> vector<20x160xf32>
    %66 = arith.addf %59, %65 : vector<20x160xf32>
    %c2_71 = arith.constant 2 : index
    %c0_72 = arith.constant 0 : index
    %c0_73 = arith.constant 0 : index
    %67 = vector.load %arg6[%c2_71, %c0_72, %c0_73] : memref<5x20x28xf32, #tpu.memory_space<vmem>>, vector<1x20x28xf32>
    %68 = vector.shape_cast %67 : vector<1x20x28xf32> to vector<20x28xf32>
    %cst_74 = arith.constant dense<0.000000e+00> : vector<20x84xf32>
    %69 = tpu.matmul %68, %53, %cst_74 {dimension_numbers = #tpu.dot_dimension_numbers<[1], [0], [0], [1], [0, 0, 1, 1], [], []>} : vector<20x28xf32>, vector<28x84xf32>, vector<20x84xf32> -> vector<20x84xf32>
    %c2_75 = arith.constant 2 : index
    %c0_76 = arith.constant 0 : index
    %c0_77 = arith.constant 0 : index
    %70 = vector.load %arg5[%c2_75, %c0_76, %c0_77] : memref<5x84x160xf32, #tpu.memory_space<vmem>>, vector<1x84x160xf32>
    %71 = vector.shape_cast %70 : vector<1x84x160xf32> to vector<84x160xf32>
    %cst_78 = arith.constant dense<0.000000e+00> : vector<20x160xf32>
    %72 = tpu.matmul %69, %71, %cst_78 {dimension_numbers = #tpu.dot_dimension_numbers<[1], [0], [0], [1], [0, 0, 1, 1], [], []>} : vector<20x84xf32>, vector<84x160xf32>, vector<20x160xf32> -> vector<20x160xf32>
    %73 = arith.addf %66, %72 : vector<20x160xf32>
    %c3_79 = arith.constant 3 : index
    %c0_80 = arith.constant 0 : index
    %c0_81 = arith.constant 0 : index
    %74 = vector.load %arg6[%c3_79, %c0_80, %c0_81] : memref<5x20x28xf32, #tpu.memory_space<vmem>>, vector<1x20x28xf32>
    %75 = vector.shape_cast %74 : vector<1x20x28xf32> to vector<20x28xf32>
    %cst_82 = arith.constant dense<0.000000e+00> : vector<20x84xf32>
    %76 = tpu.matmul %75, %53, %cst_82 {dimension_numbers = #tpu.dot_dimension_numbers<[1], [0], [0], [1], [0, 0, 1, 1], [], []>} : vector<20x28xf32>, vector<28x84xf32>, vector<20x84xf32> -> vector<20x84xf32>
    %c3_83 = arith.constant 3 : index
    %c0_84 = arith.constant 0 : index
    %c0_85 = arith.constant 0 : index
    %77 = vector.load %arg5[%c3_83, %c0_84, %c0_85] : memref<5x84x160xf32, #tpu.memory_space<vmem>>, vector<1x84x160xf32>
    %78 = vector.shape_cast %77 : vector<1x84x160xf32> to vector<84x160xf32>
    %cst_86 = arith.constant dense<0.000000e+00> : vector<20x160xf32>
    %79 = tpu.matmul %76, %78, %cst_86 {dimension_numbers = #tpu.dot_dimension_numbers<[1], [0], [0], [1], [0, 0, 1, 1], [], []>} : vector<20x84xf32>, vector<84x160xf32>, vector<20x160xf32> -> vector<20x160xf32>
    %80 = arith.addf %73, %79 : vector<20x160xf32>
    %c4_87 = arith.constant 4 : index
    %c0_88 = arith.constant 0 : index
    %c0_89 = arith.constant 0 : index
    %81 = vector.load %arg6[%c4_87, %c0_88, %c0_89] : memref<5x20x28xf32, #tpu.memory_space<vmem>>, vector<1x20x28xf32>
    %82 = vector.shape_cast %81 : vector<1x20x28xf32> to vector<20x28xf32>
    %cst_90 = arith.constant dense<0.000000e+00> : vector<20x84xf32>
    %83 = tpu.matmul %82, %53, %cst_90 {dimension_numbers = #tpu.dot_dimension_numbers<[1], [0], [0], [1], [0, 0, 1, 1], [], []>} : vector<20x28xf32>, vector<28x84xf32>, vector<20x84xf32> -> vector<20x84xf32>
    %c4_91 = arith.constant 4 : index
    %c0_92 = arith.constant 0 : index
    %c0_93 = arith.constant 0 : index
    %84 = vector.load %arg5[%c4_91, %c0_92, %c0_93] : memref<5x84x160xf32, #tpu.memory_space<vmem>>, vector<1x84x160xf32>
    %85 = vector.shape_cast %84 : vector<1x84x160xf32> to vector<84x160xf32>
    %cst_94 = arith.constant dense<0.000000e+00> : vector<20x160xf32>
    %86 = tpu.matmul %83, %85, %cst_94 {dimension_numbers = #tpu.dot_dimension_numbers<[1], [0], [0], [1], [0, 0, 1, 1], [], []>} : vector<20x84xf32>, vector<84x160xf32>, vector<20x160xf32> -> vector<20x160xf32>
    %87 = arith.addf %80, %86 : vector<20x160xf32>
    %c0_95 = arith.constant 0 : index
    %c0_96 = arith.constant 0 : index
    %88 = vector.load %arg7[%c0_95, %c0_96] : memref<1x160xf32, #tpu.memory_space<vmem>>, vector<1x160xf32>
    %89 = vector.broadcast %88 : vector<1x160xf32> to vector<20x160xf32>
    %90 = arith.addf %87, %89 : vector<20x160xf32>
    %cst_97 = arith.constant 0.000000e+00 : f32
    %91 = vector.broadcast %cst_97 : f32 to vector<20x160xf32>
    %92 = arith.maximumf %90, %91 : vector<20x160xf32>
    %c0_98 = arith.constant 0 : index
    %c0_99 = arith.constant 0 : index
    %c0_100 = arith.constant 0 : index
    %93 = vector.load %arg10[%c0_98, %c0_99, %c0_100] : memref<2x10x20xf32, #tpu.memory_space<vmem>>, vector<1x10x20xf32>
    %94 = vector.shape_cast %93 : vector<1x10x20xf32> to vector<10x20xf32>
    %cst_101 = arith.constant dense<0.000000e+00> : vector<10x160xf32>
    %95 = tpu.matmul %94, %92, %cst_101 {dimension_numbers = #tpu.dot_dimension_numbers<[1], [0], [0], [1], [0, 0, 1, 1], [], []>} : vector<10x20xf32>, vector<20x160xf32>, vector<10x160xf32> -> vector<10x160xf32>
    %c1_102 = arith.constant 1 : index
    %c0_103 = arith.constant 0 : index
    %c0_104 = arith.constant 0 : index
    %96 = vector.load %arg10[%c1_102, %c0_103, %c0_104] : memref<2x10x20xf32, #tpu.memory_space<vmem>>, vector<1x10x20xf32>
    %97 = vector.shape_cast %96 : vector<1x10x20xf32> to vector<10x20xf32>
    %cst_105 = arith.constant dense<0.000000e+00> : vector<10x160xf32>
    %98 = tpu.matmul %97, %92, %cst_105 {dimension_numbers = #tpu.dot_dimension_numbers<[1], [0], [0], [1], [0, 0, 1, 1], [], []>} : vector<10x20xf32>, vector<20x160xf32>, vector<10x160xf32> -> vector<10x160xf32>
    %99 = arith.maximumf %95, %98 : vector<10x160xf32>
    %c0_106 = arith.constant 0 : index
    %c0_107 = arith.constant 0 : index
    %c0_108 = arith.constant 0 : index
    %100 = vector.load %arg11[%c0_106, %c0_107, %c0_108] : memref<2x160x80xf32, #tpu.memory_space<vmem>>, vector<1x160x80xf32>
    %101 = vector.shape_cast %100 : vector<1x160x80xf32> to vector<160x80xf32>
    %cst_109 = arith.constant dense<0.000000e+00> : vector<10x80xf32>
    %102 = tpu.matmul %99, %101, %cst_109 {dimension_numbers = #tpu.dot_dimension_numbers<[1], [0], [0], [1], [0, 0, 1, 1], [], []>} : vector<10x160xf32>, vector<160x80xf32>, vector<10x80xf32> -> vector<10x80xf32>
    %c1_110 = arith.constant 1 : index
    %c0_111 = arith.constant 0 : index
    %c0_112 = arith.constant 0 : index
    %103 = vector.load %arg11[%c1_110, %c0_111, %c0_112] : memref<2x160x80xf32, #tpu.memory_space<vmem>>, vector<1x160x80xf32>
    %104 = vector.shape_cast %103 : vector<1x160x80xf32> to vector<160x80xf32>
    %cst_113 = arith.constant dense<0.000000e+00> : vector<10x80xf32>
    %105 = tpu.matmul %99, %104, %cst_113 {dimension_numbers = #tpu.dot_dimension_numbers<[1], [0], [0], [1], [0, 0, 1, 1], [], []>} : vector<10x160xf32>, vector<160x80xf32>, vector<10x80xf32> -> vector<10x80xf32>
    %106 = arith.maximumf %102, %105 : vector<10x80xf32>
    %c0_114 = arith.constant 0 : index
    %c0_115 = arith.constant 0 : index
    %c0_116 = arith.constant 0 : index
    %107 = vector.load %arg12[%c0_114, %c0_115, %c0_116] : memref<5x2x10xf32, #tpu.memory_space<vmem>>, vector<1x2x10xf32>
    %108 = vector.shape_cast %107 : vector<1x2x10xf32> to vector<2x10xf32>
    %cst_117 = arith.constant dense<0.000000e+00> : vector<2x80xf32>
    %109 = tpu.matmul %108, %106, %cst_117 {dimension_numbers = #tpu.dot_dimension_numbers<[1], [0], [0], [1], [0, 0, 1, 1], [], []>} : vector<2x10xf32>, vector<10x80xf32>, vector<2x80xf32> -> vector<2x80xf32>
    %c0_118 = arith.constant 0 : index
    %c0_119 = arith.constant 0 : index
    %c0_120 = arith.constant 0 : index
    %110 = vector.load %arg13[%c0_118, %c0_119, %c0_120] : memref<5x80x120xf32, #tpu.memory_space<vmem>>, vector<1x80x120xf32>
    %111 = vector.shape_cast %110 : vector<1x80x120xf32> to vector<80x120xf32>
    %cst_121 = arith.constant dense<0.000000e+00> : vector<2x120xf32>
    %112 = tpu.matmul %109, %111, %cst_121 {dimension_numbers = #tpu.dot_dimension_numbers<[1], [0], [0], [1], [0, 0, 1, 1], [], []>} : vector<2x80xf32>, vector<80x120xf32>, vector<2x120xf32> -> vector<2x120xf32>
    %c1_122 = arith.constant 1 : index
    %c0_123 = arith.constant 0 : index
    %c0_124 = arith.constant 0 : index
    %113 = vector.load %arg12[%c1_122, %c0_123, %c0_124] : memref<5x2x10xf32, #tpu.memory_space<vmem>>, vector<1x2x10xf32>
    %114 = vector.shape_cast %113 : vector<1x2x10xf32> to vector<2x10xf32>
    %cst_125 = arith.constant dense<0.000000e+00> : vector<2x80xf32>
    %115 = tpu.matmul %114, %106, %cst_125 {dimension_numbers = #tpu.dot_dimension_numbers<[1], [0], [0], [1], [0, 0, 1, 1], [], []>} : vector<2x10xf32>, vector<10x80xf32>, vector<2x80xf32> -> vector<2x80xf32>
    %c1_126 = arith.constant 1 : index
    %c0_127 = arith.constant 0 : index
    %c0_128 = arith.constant 0 : index
    %116 = vector.load %arg13[%c1_126, %c0_127, %c0_128] : memref<5x80x120xf32, #tpu.memory_space<vmem>>, vector<1x80x120xf32>
    %117 = vector.shape_cast %116 : vector<1x80x120xf32> to vector<80x120xf32>
    %cst_129 = arith.constant dense<0.000000e+00> : vector<2x120xf32>
    %118 = tpu.matmul %115, %117, %cst_129 {dimension_numbers = #tpu.dot_dimension_numbers<[1], [0], [0], [1], [0, 0, 1, 1], [], []>} : vector<2x80xf32>, vector<80x120xf32>, vector<2x120xf32> -> vector<2x120xf32>
    %119 = arith.addf %112, %118 : vector<2x120xf32>
    %c2_130 = arith.constant 2 : index
    %c0_131 = arith.constant 0 : index
    %c0_132 = arith.constant 0 : index
    %120 = vector.load %arg12[%c2_130, %c0_131, %c0_132] : memref<5x2x10xf32, #tpu.memory_space<vmem>>, vector<1x2x10xf32>
    %121 = vector.shape_cast %120 : vector<1x2x10xf32> to vector<2x10xf32>
    %cst_133 = arith.constant dense<0.000000e+00> : vector<2x80xf32>
    %122 = tpu.matmul %121, %106, %cst_133 {dimension_numbers = #tpu.dot_dimension_numbers<[1], [0], [0], [1], [0, 0, 1, 1], [], []>} : vector<2x10xf32>, vector<10x80xf32>, vector<2x80xf32> -> vector<2x80xf32>
    %c2_134 = arith.constant 2 : index
    %c0_135 = arith.constant 0 : index
    %c0_136 = arith.constant 0 : index
    %123 = vector.load %arg13[%c2_134, %c0_135, %c0_136] : memref<5x80x120xf32, #tpu.memory_space<vmem>>, vector<1x80x120xf32>
    %124 = vector.shape_cast %123 : vector<1x80x120xf32> to vector<80x120xf32>
    %cst_137 = arith.constant dense<0.000000e+00> : vector<2x120xf32>
    %125 = tpu.matmul %122, %124, %cst_137 {dimension_numbers = #tpu.dot_dimension_numbers<[1], [0], [0], [1], [0, 0, 1, 1], [], []>} : vector<2x80xf32>, vector<80x120xf32>, vector<2x120xf32> -> vector<2x120xf32>
    %126 = arith.addf %119, %125 : vector<2x120xf32>
    %c3_138 = arith.constant 3 : index
    %c0_139 = arith.constant 0 : index
    %c0_140 = arith.constant 0 : index
    %127 = vector.load %arg12[%c3_138, %c0_139, %c0_140] : memref<5x2x10xf32, #tpu.memory_space<vmem>>, vector<1x2x10xf32>
    %128 = vector.shape_cast %127 : vector<1x2x10xf32> to vector<2x10xf32>
    %cst_141 = arith.constant dense<0.000000e+00> : vector<2x80xf32>
    %129 = tpu.matmul %128, %106, %cst_141 {dimension_numbers = #tpu.dot_dimension_numbers<[1], [0], [0], [1], [0, 0, 1, 1], [], []>} : vector<2x10xf32>, vector<10x80xf32>, vector<2x80xf32> -> vector<2x80xf32>
    %c3_142 = arith.constant 3 : index
    %c0_143 = arith.constant 0 : index
    %c0_144 = arith.constant 0 : index
    %130 = vector.load %arg13[%c3_142, %c0_143, %c0_144] : memref<5x80x120xf32, #tpu.memory_space<vmem>>, vector<1x80x120xf32>
    %131 = vector.shape_cast %130 : vector<1x80x120xf32> to vector<80x120xf32>
    %cst_145 = arith.constant dense<0.000000e+00> : vector<2x120xf32>
    %132 = tpu.matmul %129, %131, %cst_145 {dimension_numbers = #tpu.dot_dimension_numbers<[1], [0], [0], [1], [0, 0, 1, 1], [], []>} : vector<2x80xf32>, vector<80x120xf32>, vector<2x120xf32> -> vector<2x120xf32>
    %133 = arith.addf %126, %132 : vector<2x120xf32>
    %c4_146 = arith.constant 4 : index
    %c0_147 = arith.constant 0 : index
    %c0_148 = arith.constant 0 : index
    %134 = vector.load %arg12[%c4_146, %c0_147, %c0_148] : memref<5x2x10xf32, #tpu.memory_space<vmem>>, vector<1x2x10xf32>
    %135 = vector.shape_cast %134 : vector<1x2x10xf32> to vector<2x10xf32>
    %cst_149 = arith.constant dense<0.000000e+00> : vector<2x80xf32>
    %136 = tpu.matmul %135, %106, %cst_149 {dimension_numbers = #tpu.dot_dimension_numbers<[1], [0], [0], [1], [0, 0, 1, 1], [], []>} : vector<2x10xf32>, vector<10x80xf32>, vector<2x80xf32> -> vector<2x80xf32>
    %c4_150 = arith.constant 4 : index
    %c0_151 = arith.constant 0 : index
    %c0_152 = arith.constant 0 : index
    %137 = vector.load %arg13[%c4_150, %c0_151, %c0_152] : memref<5x80x120xf32, #tpu.memory_space<vmem>>, vector<1x80x120xf32>
    %138 = vector.shape_cast %137 : vector<1x80x120xf32> to vector<80x120xf32>
    %cst_153 = arith.constant dense<0.000000e+00> : vector<2x120xf32>
    %139 = tpu.matmul %136, %138, %cst_153 {dimension_numbers = #tpu.dot_dimension_numbers<[1], [0], [0], [1], [0, 0, 1, 1], [], []>} : vector<2x80xf32>, vector<80x120xf32>, vector<2x120xf32> -> vector<2x120xf32>
    %140 = arith.addf %133, %139 : vector<2x120xf32>
    %c0_154 = arith.constant 0 : index
    %c0_155 = arith.constant 0 : index
    %141 = vector.load %arg14[%c0_154, %c0_155] : memref<1x120xf32, #tpu.memory_space<vmem>>, vector<1x120xf32>
    %142 = vector.broadcast %141 : vector<1x120xf32> to vector<2x120xf32>
    %143 = arith.addf %140, %142 : vector<2x120xf32>
    %cst_156 = arith.constant 0.000000e+00 : f32
    %144 = vector.broadcast %cst_156 : f32 to vector<2x120xf32>
    %145 = arith.maximumf %143, %144 : vector<2x120xf32>
    %c0_157 = arith.constant 0 : index
    %c0_158 = arith.constant 0 : index
    %146 = vector.load %arg15[%c0_157, %c0_158] : memref<120x84xf32, #tpu.memory_space<vmem>>, vector<120x84xf32>
    %cst_159 = arith.constant dense<0.000000e+00> : vector<2x84xf32>
    %147 = tpu.matmul %145, %146, %cst_159 {dimension_numbers = #tpu.dot_dimension_numbers<[1], [0], [0], [1], [0, 0, 1, 1], [], []>} : vector<2x120xf32>, vector<120x84xf32>, vector<2x84xf32> -> vector<2x84xf32>
    %c0_160 = arith.constant 0 : index
    %c0_161 = arith.constant 0 : index
    %148 = vector.load %arg16[%c0_160, %c0_161] : memref<1x84xf32, #tpu.memory_space<vmem>>, vector<1x84xf32>
    %149 = vector.broadcast %148 : vector<1x84xf32> to vector<2x84xf32>
    %150 = arith.addf %147, %149 : vector<2x84xf32>
    %cst_162 = arith.constant 0.000000e+00 : f32
    %151 = vector.broadcast %cst_162 : f32 to vector<2x84xf32>
    %152 = arith.maximumf %150, %151 : vector<2x84xf32>
    %c0_163 = arith.constant 0 : index
    %c0_164 = arith.constant 0 : index
    %153 = vector.load %arg17[%c0_163, %c0_164] : memref<84x128xf32, #tpu.memory_space<vmem>>, vector<84x128xf32>
    %cst_165 = arith.constant dense<0.000000e+00> : vector<2x128xf32>
    %154 = tpu.matmul %152, %153, %cst_165 {dimension_numbers = #tpu.dot_dimension_numbers<[1], [0], [0], [1], [0, 0, 1, 1], [], []>} : vector<2x84xf32>, vector<84x128xf32>, vector<2x128xf32> -> vector<2x128xf32>
    %c0_166 = arith.constant 0 : index
    %c0_167 = arith.constant 0 : index
    %155 = vector.load %arg18[%c0_166, %c0_167] : memref<1x128xf32, #tpu.memory_space<vmem>>, vector<1x128xf32>
    %156 = vector.broadcast %155 : vector<1x128xf32> to vector<2x128xf32>
    %157 = arith.addf %154, %156 : vector<2x128xf32>
    %c0_168 = arith.constant 0 : index
    %c0_169 = arith.constant 0 : index
    %158 = vector.load %arg19[%c0_168, %c0_169] : memref<2x128xf32, #tpu.memory_space<vmem>>, vector<2x128xf32>
    tpu.vector_store %arg19[%c0_168, %c0_169], %157 {strides = array<i32>} : memref<2x128xf32, #tpu.memory_space<vmem>>, vector<2x128xf32>,
    return
  }
  func.func @transform_0(%arg0: i32) -> (i32, i32) {
    %c0_i32 = arith.constant 0 : i32
    %c0_i32_0 = arith.constant 0 : i32
    return %arg0, %c0_i32 : i32, i32
  }
  func.func @transform_1(%arg0: i32) -> (i32, i32, i32) {
    %c0_i32 = arith.constant 0 : i32
    %c0_i32_0 = arith.constant 0 : i32
    %c0_i32_1 = arith.constant 0 : i32
    %c0_i32_2 = arith.constant 0 : i32
    return %c0_i32, %c0_i32_0, %c0_i32_1 : i32, i32, i32
  }
  func.func @transform_2(%arg0: i32) -> (i32, i32, i32) {
    %c0_i32 = arith.constant 0 : i32
    %c0_i32_0 = arith.constant 0 : i32
    %c0_i32_1 = arith.constant 0 : i32
    %c0_i32_2 = arith.constant 0 : i32
    return %c0_i32, %c0_i32_0, %c0_i32_1 : i32, i32, i32
  }
  func.func @transform_3(%arg0: i32) -> (i32, i32) {
    %c0_i32 = arith.constant 0 : i32
    %c0_i32_0 = arith.constant 0 : i32
    %c0_i32_1 = arith.constant 0 : i32
    return %c0_i32, %c0_i32_0 : i32, i32
  }
  func.func @transform_4(%arg0: i32) -> (i32, i32, i32) {
    %c0_i32 = arith.constant 0 : i32
    %c0_i32_0 = arith.constant 0 : i32
    %c0_i32_1 = arith.constant 0 : i32
    %c0_i32_2 = arith.constant 0 : i32
    return %c0_i32, %c0_i32_0, %c0_i32_1 : i32, i32, i32
  }
  func.func @transform_5(%arg0: i32) -> (i32, i32, i32) {
    %c0_i32 = arith.constant 0 : i32
    %c0_i32_0 = arith.constant 0 : i32
    %c0_i32_1 = arith.constant 0 : i32
    %c0_i32_2 = arith.constant 0 : i32
    return %c0_i32, %c0_i32_0, %c0_i32_1 : i32, i32, i32
  }
  func.func @transform_6(%arg0: i32) -> (i32, i32) {
    %c0_i32 = arith.constant 0 : i32
    %c0_i32_0 = arith.constant 0 : i32
    %c0_i32_1 = arith.constant 0 : i32
    return %c0_i32, %c0_i32_0 : i32, i32
  }
  func.func @transform_7(%arg0: i32) -> (i32, i32, i32) {
    %c0_i32 = arith.constant 0 : i32
    %c0_i32_0 = arith.constant 0 : i32
    %c0_i32_1 = arith.constant 0 : i32
    %c0_i32_2 = arith.constant 0 : i32
    return %c0_i32, %c0_i32_0, %c0_i32_1 : i32, i32, i32
  }
  func.func @transform_8(%arg0: i32) -> (i32, i32, i32) {
    %c0_i32 = arith.constant 0 : i32
    %c0_i32_0 = arith.constant 0 : i32
    %c0_i32_1 = arith.constant 0 : i32
    %c0_i32_2 = arith.constant 0 : i32
    return %c0_i32, %c0_i32_0, %c0_i32_1 : i32, i32, i32
  }
  func.func @transform_9(%arg0: i32) -> (i32, i32, i32) {
    %c0_i32 = arith.constant 0 : i32
    %c0_i32_0 = arith.constant 0 : i32
    %c0_i32_1 = arith.constant 0 : i32
    %c0_i32_2 = arith.constant 0 : i32
    return %c0_i32, %c0_i32_0, %c0_i32_1 : i32, i32, i32
  }
  func.func @transform_10(%arg0: i32) -> (i32, i32, i32) {
    %c0_i32 = arith.constant 0 : i32
    %c0_i32_0 = arith.constant 0 : i32
    %c0_i32_1 = arith.constant 0 : i32
    %c0_i32_2 = arith.constant 0 : i32
    return %c0_i32, %c0_i32_0, %c0_i32_1 : i32, i32, i32
  }
  func.func @transform_11(%arg0: i32) -> (i32, i32, i32) {
    %c0_i32 = arith.constant 0 : i32
    %c0_i32_0 = arith.constant 0 : i32
    %c0_i32_1 = arith.constant 0 : i32
    %c0_i32_2 = arith.constant 0 : i32
    return %c0_i32, %c0_i32_0, %c0_i32_1 : i32, i32, i32
  }
  func.func @transform_12(%arg0: i32) -> (i32, i32, i32) {
    %c0_i32 = arith.constant 0 : i32
    %c0_i32_0 = arith.constant 0 : i32
    %c0_i32_1 = arith.constant 0 : i32
    %c0_i32_2 = arith.constant 0 : i32
    return %c0_i32, %c0_i32_0, %c0_i32_1 : i32, i32, i32
  }
  func.func @transform_13(%arg0: i32) -> (i32, i32) {
    %c0_i32 = arith.constant 0 : i32
    %c0_i32_0 = arith.constant 0 : i32
    %c0_i32_1 = arith.constant 0 : i32
    return %c0_i32, %c0_i32_0 : i32, i32
  }
  func.func @transform_14(%arg0: i32) -> (i32, i32) {
    %c0_i32 = arith.constant 0 : i32
    %c0_i32_0 = arith.constant 0 : i32
    %c0_i32_1 = arith.constant 0 : i32
    return %c0_i32, %c0_i32_0 : i32, i32
  }
  func.func @transform_15(%arg0: i32) -> (i32, i32) {
    %c0_i32 = arith.constant 0 : i32
    %c0_i32_0 = arith.constant 0 : i32
    %c0_i32_1 = arith.constant 0 : i32
    return %c0_i32, %c0_i32_0 : i32, i32
  }
  func.func @transform_16(%arg0: i32) -> (i32, i32) {
    %c0_i32 = arith.constant 0 : i32
    %c0_i32_0 = arith.constant 0 : i32
    %c0_i32_1 = arith.constant 0 : i32
    return %c0_i32, %c0_i32_0 : i32, i32
  }
  func.func @transform_17(%arg0: i32) -> (i32, i32) {
    %c0_i32 = arith.constant 0 : i32
    %c0_i32_0 = arith.constant 0 : i32
    %c0_i32_1 = arith.constant 0 : i32
    return %c0_i32, %c0_i32_0 : i32, i32
  }
  func.func @transform_18(%arg0: i32) -> (i32, i32) {
    %c0_i32 = arith.constant 0 : i32
    %c0_i32_0 = arith.constant 0 : i32
    return %arg0, %c0_i32 : i32, i32
  }
}

</mosaic_0001>

<llo_original>
// kernel: net_forward.1
$region0: #{net_forward.1}
  #allocation0 [shape = 'u32[]', space=smem, size = 0x4, offset = 0x4, fixed_abs, tag = 'smem constant byte address 0x4 - core index']
  #allocation1 [shape = 'u32[144,128]{1,0:T(1,128)}', space=vmem, size = 0x12000, scoped, tag = 'internal scratch']
  %s0 = inlined_call_operand.vmem [shape: f32[64,96], index: 0, kind: input, shape index: {}]
  %s1 = inlined_call_operand.vmem [shape: f32[5,96,168], index: 1, kind: input, shape index: {}]
  %s2 = inlined_call_operand.vmem [shape: f32[5,56,64], index: 2, kind: input, shape index: {}]
  %s3 = inlined_call_operand.vmem [shape: f32[1,168], index: 3, kind: input, shape index: {}]
  %s4 = inlined_call_operand.vmem [shape: f32[5,84,160], index: 4, kind: input, shape index: {}]
  %s5 = inlined_call_operand.vmem [shape: f32[5,20,28], index: 5, kind: input, shape index: {}]
  %s6 = inlined_call_operand.vmem [shape: f32[1,160], index: 6, kind: input, shape index: {}]
  %s7 = inlined_call_operand.vmem [shape: f32[2,28,56], index: 7, kind: input, shape index: {}]
  %s8 = inlined_call_operand.vmem [shape: f32[2,168,84], index: 8, kind: input, shape index: {}]
  %s9 = inlined_call_operand.vmem [shape: f32[2,10,20], index: 9, kind: input, shape index: {}]
  %s10 = inlined_call_operand.vmem [shape: f32[2,160,80], index: 10, kind: input, shape index: {}]
  %s11 = inlined_call_operand.vmem [shape: f32[5,2,10], index: 11, kind: input, shape index: {}]
  %s12 = inlined_call_operand.vmem [shape: f32[5,80,120], index: 12, kind: input, shape index: {}]
  %s13 = inlined_call_operand.vmem [shape: f32[1,120], index: 13, kind: input, shape index: {}]
  %s14 = inlined_call_operand.vmem [shape: f32[120,84], index: 14, kind: input, shape index: {}]
  %s15 = inlined_call_operand.vmem [shape: f32[1,84], index: 15, kind: input, shape index: {}]
  %s16 = inlined_call_operand.vmem [shape: f32[84,128], index: 16, kind: input, shape index: {}]
  %s17 = inlined_call_operand.vmem [shape: f32[1,128], index: 17, kind: input, shape index: {}]
  %s18 = inlined_call_operand.hbm [shape: f32[2,128], index: 18, kind: output, shape index: {}]
  %s19 = sld [smem:[#allocation0]]
  $region82: #{net_forward.1} parent=0
    _
  %s21 = ssub.s32 1, %s19
  %s22 = scalar_select 0, %s21, %s19
  $region1: #{net_forward.1} parent=0
    #allocation2 [shape = 'u8[1024]{0}', space=vmem, size = 0x400, scoped, tag = 'output window, operand 0, single buffered']
    #allocation3 [shape = 's32[1]{0}', space=sflag, size = 0x4, scoped, tag = 'scoped memory for net_forward.1']
    %23 = vsyncpa [#allocation3], 0
    // Predicated region
    $region2: #{net_forward.1} parent=1 // pred_check
      _
    $region3: #{net_forward.1} parent=1 // pred_check_branch
      %25 = sbr.rel (0) target = $region5
    $region4: #{net_forward.1} parent=1 // pred_region
      _
    $region5: #{net_forward.1} parent=1 // pred_fallthru
      _
    // Predicated region
    $region6: #{net_forward.1} parent=1 // pred_check
      _
    $region7: #{net_forward.1} parent=1 // pred_check_branch
      %27 = sbr.rel (0) target = $region9
    $region8: #{net_forward.1} parent=1 // pred_region
      _
    $region9: #{net_forward.1} parent=1 // pred_fallthru
      _
    // Predicated region
    $region10: #{net_forward.1} parent=1 // pred_check
      _
    $region11: #{net_forward.1} parent=1 // pred_check_branch
      %29 = sbr.rel (0) target = $region13
    $region12: #{net_forward.1} parent=1 // pred_region
      _
    $region13: #{net_forward.1} parent=1 // pred_fallthru
      _
    // Predicated region
    $region14: #{net_forward.1} parent=1 // pred_check
      _
    $region15: #{net_forward.1} parent=1 // pred_check_branch
      %31 = sbr.rel (0) target = $region17
    $region16: #{net_forward.1} parent=1 // pred_region
      _
    $region17: #{net_forward.1} parent=1 // pred_fallthru
      _
    // Predicated region
    $region18: #{net_forward.1} parent=1 // pred_check
      _
    $region19: #{net_forward.1} parent=1 // pred_check_branch
      %33 = sbr.rel (0) target = $region21
    $region20: #{net_forward.1} parent=1 // pred_region
      _
    $region21: #{net_forward.1} parent=1 // pred_fallthru
      _
    // Predicated region
    $region22: #{net_forward.1} parent=1 // pred_check
      _
    $region23: #{net_forward.1} parent=1 // pred_check_branch
      %35 = sbr.rel (0) target = $region25
    $region24: #{net_forward.1} parent=1 // pred_region
      _
    $region25: #{net_forward.1} parent=1 // pred_fallthru
      _
    // Predicated region
    $region26: #{net_forward.1} parent=1 // pred_check
      _
    $region27: #{net_forward.1} parent=1 // pred_check_branch
      %37 = sbr.rel (0) target = $region29
    $region28: #{net_forward.1} parent=1 // pred_region
      _
    $region29: #{net_forward.1} parent=1 // pred_fallthru
      _
    // Predicated region
    $region30: #{net_forward.1} parent=1 // pred_check
      _
    $region31: #{net_forward.1} parent=1 // pred_check_branch
      %39 = sbr.rel (0) target = $region33
    $region32: #{net_forward.1} parent=1 // pred_region
      _
    $region33: #{net_forward.1} parent=1 // pred_fallthru
      _
    // Predicated region
    $region34: #{net_forward.1} parent=1 // pred_check
      _
    $region35: #{net_forward.1} parent=1 // pred_check_branch
      %41 = sbr.rel (0) target = $region37
    $region36: #{net_forward.1} parent=1 // pred_region
      _
    $region37: #{net_forward.1} parent=1 // pred_fallthru
      _
    // Predicated region
    $region38: #{net_forward.1} parent=1 // pred_check
      _
    $region39: #{net_forward.1} parent=1 // pred_check_branch
      %43 = sbr.rel (0) target = $region41
    $region40: #{net_forward.1} parent=1 // pred_region
      _
    $region41: #{net_forward.1} parent=1 // pred_fallthru
      _
    // Predicated region
    $region42: #{net_forward.1} parent=1 // pred_check
      _
    $region43: #{net_forward.1} parent=1 // pred_check_branch
      %45 = sbr.rel (0) target = $region45
    $region44: #{net_forward.1} parent=1 // pred_region
      _
    $region45: #{net_forward.1} parent=1 // pred_fallthru
      _
    // Predicated region
    $region46: #{net_forward.1} parent=1 // pred_check
      _
    $region47: #{net_forward.1} parent=1 // pred_check_branch
      %47 = sbr.rel (0) target = $region49
    $region48: #{net_forward.1} parent=1 // pred_region
      _
    $region49: #{net_forward.1} parent=1 // pred_fallthru
      _
    // Predicated region
    $region50: #{net_forward.1} parent=1 // pred_check
      _
    $region51: #{net_forward.1} parent=1 // pred_check_branch
      %49 = sbr.rel (0) target = $region53
    $region52: #{net_forward.1} parent=1 // pred_region
      _
    $region53: #{net_forward.1} parent=1 // pred_fallthru
      _
    // Predicated region
    $region54: #{net_forward.1} parent=1 // pred_check
      _
    $region55: #{net_forward.1} parent=1 // pred_check_branch
      %51 = sbr.rel (0) target = $region57
    $region56: #{net_forward.1} parent=1 // pred_region
      _
    $region57: #{net_forward.1} parent=1 // pred_fallthru
      _
    // Predicated region
    $region58: #{net_forward.1} parent=1 // pred_check
      _
    $region59: #{net_forward.1} parent=1 // pred_check_branch
      %53 = sbr.rel (0) target = $region61
    $region60: #{net_forward.1} parent=1 // pred_region
      _
    $region61: #{net_forward.1} parent=1 // pred_fallthru
      _
    // Predicated region
    $region62: #{net_forward.1} parent=1 // pred_check
      _
    $region63: #{net_forward.1} parent=1 // pred_check_branch
      %55 = sbr.rel (0) target = $region65
    $region64: #{net_forward.1} parent=1 // pred_region
      _
    $region65: #{net_forward.1} parent=1 // pred_fallthru
      _
    // Predicated region
    $region66: #{net_forward.1} parent=1 // pred_check
      _
    $region67: #{net_forward.1} parent=1 // pred_check_branch
      %57 = sbr.rel (0) target = $region69
    $region68: #{net_forward.1} parent=1 // pred_region
      _
    $region69: #{net_forward.1} parent=1 // pred_fallthru
      _
    // Predicated region
    $region70: #{net_forward.1} parent=1 // pred_check
      _
    $region71: #{net_forward.1} parent=1 // pred_check_branch
      %59 = sbr.rel (0) target = $region73
    $region72: #{net_forward.1} parent=1 // pred_region
      _
    $region73: #{net_forward.1} parent=1 // pred_fallthru
      _
    %v60 = vld [vmem:[%s0] sm:$0xff]
    %v61 = vld [vmem:[%s0 + $0x8] sm:$0xff]
    %v62 = vld [vmem:[%s0 + $0x10] sm:$0xff]
    %v63 = vld [vmem:[%s0 + $0x18] sm:$0xff]
    %v64 = vld [vmem:[%s0 + $0x20] sm:$0xff]
    %v65 = vld [vmem:[%s0 + $0x28] sm:$0xff]
    %v66 = vld [vmem:[%s0 + $0x30] sm:$0xff]
    %v67 = vld [vmem:[%s0 + $0x38] sm:$0xff]
    %v68 = vld [vmem:[%s2] sm:$0xff]
    %v69 = vld [vmem:[%s2 + $0x8] sm:$0xff]
    %v70 = vld [vmem:[%s2 + $0x10] sm:$0xff]
    %v71 = vld [vmem:[%s2 + $0x18] sm:$0xff]
    %v72 = vld [vmem:[%s2 + $0x20] sm:$0xff]
    %v73 = vld [vmem:[%s2 + $0x28] sm:$0xff]
    %v74 = vld [vmem:[%s2 + $0x30] sm:$0xff]
    %vm75 = vcmask 523264
    %v77 = vsel %vm75, %v68, 0
    %v80 = vsel %vm75, %v69, 0
    %v83 = vsel %vm75, %v70, 0
    %v86 = vsel %vm75, %v71, 0
    %v89 = vsel %vm75, %v72, 0
    %v92 = vsel %vm75, %v73, 0
    %v95 = vsel %vm75, %v74, 0
    %97 = vmatprep.subr.mxu0 0.0
    %98 = vmatpush1.msra.mxu0 %v60
    %99 = vmatprep.subr.mxu0 0.0
    %100 = vmatpush1.msra.mxu0 %v61
    %101 = vmatprep.subr.mxu0 0.0
    %102 = vmatpush1.msra.mxu0 %v62
    %103 = vmatprep.subr.mxu0 0.0
    %104 = vmatpush1.msra.mxu0 %v63
    %105 = vmatprep.subr.mxu0 0.0
    %106 = vmatpush1.msra.mxu0 %v64
    %107 = vmatprep.subr.mxu0 0.0
    %108 = vmatpush1.msra.mxu0 %v65
    %109 = vmatprep.subr.mxu0 0.0
    %110 = vmatpush1.msra.mxu0 %v66
    %111 = vmatprep.subr.mxu0 0.0
    %112 = vmatpush1.msra.mxu0 %v67
    %113 = vmatprep.subr.mxu0 0.0
    %114 = vmatpush1.msra.mxu0 0.0
    %115 = vmatprep.subr.mxu0 0.0
    %116 = vmatpush1.msra.mxu0 0.0
    %117 = vmatprep.subr.mxu0 0.0
    %118 = vmatpush1.msra.mxu0 0.0
    %119 = vmatprep.subr.mxu0 0.0
    %120 = vmatpush1.msra.mxu0 0.0
    %121 = vmatprep.subr.mxu0 0.0
    %122 = vmatpush1.msra.mxu0 0.0
    %123 = vmatprep.subr.mxu0 0.0
    %124 = vmatpush1.msra.mxu0 0.0
    %125 = vmatprep.subr.mxu0 0.0
    %126 = vmatpush1.msra.mxu0 0.0
    %127 = vmatprep.subr.mxu0 0.0
    %128 = vmatpush1.msra.mxu0 0.0
    %129 = vmatprep.subr.mxu0 0.0
    %130 = vmatpush1.msra.mxu0 0.0
    %131 = vmatprep.subr.mxu0 0.0
    %132 = vmatpush1.msra.mxu0 0.0
    %133 = vmatprep.subr.mxu0 0.0
    %134 = vmatpush1.msra.mxu0 0.0
    %135 = vmatprep.subr.mxu0 0.0
    %136 = vmatpush1.msra.mxu0 0.0
    %137 = vmatprep.subr.mxu0 0.0
    %138 = vmatpush1.msra.mxu0 0.0
    %139 = vmatprep.subr.mxu0 0.0
    %140 = vmatpush1.msra.mxu0 0.0
    %141 = vmatprep.subr.mxu0 0.0
    %142 = vmatpush1.msra.mxu0 0.0
    %143 = vmatprep.subr.mxu0 0.0
    %144 = vmatpush1.msra.mxu0 0.0
    %145 = vmatprep.subr.mxu0 0.0
    %146 = vmatpush1.msra.mxu0 0.0
    %147 = vmatprep.subr.mxu0 0.0
    %148 = vmatpush1.msra.mxu0 0.0
    %149 = vmatprep.subr.mxu0 0.0
    %150 = vmatpush1.msra.mxu0 0.0
    %151 = vmatprep.subr.mxu0 0.0
    %152 = vmatpush1.msra.mxu0 0.0
    %153 = vmatprep.subr.mxu0 0.0
    %154 = vmatpush1.msra.mxu0 0.0
    %155 = vmatprep.subr.mxu0 0.0
    %156 = vmatpush1.msra.mxu0 0.0
    %157 = vmatprep.subr.mxu0 0.0
    %158 = vmatpush1.msra.mxu0 0.0
    %159 = vmatprep.subr.mxu0 0.0
    %160 = vmatpush1.msra.mxu0 0.0
    %161 = vmatprep.mubr.f32.mxu0 0.0
    %162 = vmatmul.mubr.f32.gmra.mrb[0].mxu0 %v77
    %v163 = vpop.f32.mrb[0].mxu0
    %v164 = vadd.f32 0.0, %v163
    %v165 = vpop.f32.mrb[0].mxu0
    %166 = vmatprep.mubr.f32.mxu0 0.0
    %167 = vmatmul.mubr.f32.gmra.mrb[0].mxu0 %v80
    %v168 = vpop.f32.mrb[0].mxu0
    %v169 = vadd.f32 0.0, %v168
    %v170 = vpop.f32.mrb[0].mxu0
    %171 = vmatprep.mubr.f32.mxu0 0.0
    %172 = vmatmul.mubr.f32.gmra.mrb[0].mxu0 %v83
    %v173 = vpop.f32.mrb[0].mxu0
    %v174 = vadd.f32 0.0, %v173
    %v175 = vpop.f32.mrb[0].mxu0
    %176 = vmatprep.mubr.f32.mxu0 0.0
    %177 = vmatmul.mubr.f32.gmra.mrb[0].mxu0 %v86
    %v178 = vpop.f32.mrb[0].mxu0
    %v179 = vadd.f32 0.0, %v178
    %v180 = vpop.f32.mrb[0].mxu0
    %181 = vmatprep.mubr.f32.mxu0 0.0
    %182 = vmatmul.mubr.f32.gmra.mrb[0].mxu0 %v89
    %v183 = vpop.f32.mrb[0].mxu0
    %v184 = vadd.f32 0.0, %v183
    %v185 = vpop.f32.mrb[0].mxu0
    %186 = vmatprep.mubr.f32.mxu0 0.0
    %187 = vmatmul.mubr.f32.gmra.mrb[0].mxu0 %v92
    %v188 = vpop.f32.mrb[0].mxu0
    %v189 = vadd.f32 0.0, %v188
    %v190 = vpop.f32.mrb[0].mxu0
    %191 = vmatprep.mubr.f32.mxu0 0.0
    %192 = vmatmul.mubr.f32.gmra.mrb[0].mxu0 %v95
    %v193 = vpop.f32.mrb[0].mxu0
    %v194 = vadd.f32 0.0, %v193
    %v195 = vpop.f32.mrb[0].mxu0
    %196 = vdwg.mxu0
    %v197 = vld [vmem:[%s1] sm:$0xff]
    %v198 = vld [vmem:[%s1 + $0x8] sm:$0xff]
    %v199 = vld [vmem:[%s1 + $0x10] sm:$0xff]
    %v200 = vld [vmem:[%s1 + $0x18] sm:$0xff]
    %v201 = vld [vmem:[%s1 + $0x20] sm:$0xff]
    %v202 = vld [vmem:[%s1 + $0x28] sm:$0xff]
    %v203 = vld [vmem:[%s1 + $0x30] sm:$0xff]
    %v204 = vld [vmem:[%s1 + $0x38] sm:$0xff]
    %v205 = vld [vmem:[%s1 + $0x40] sm:$0xff]
    %v206 = vld [vmem:[%s1 + $0x48] sm:$0xff]
    %v207 = vld [vmem:[%s1 + $0x50] sm:$0xff]
    %v208 = vld [vmem:[%s1 + $0x58] sm:$0xff]
    %v209 = vld [vmem:[%s1 + $0x60] sm:$0xff]
    %v210 = vld [vmem:[%s1 + $0x68] sm:$0xff]
    %v211 = vld [vmem:[%s1 + $0x70] sm:$0xff]
    %v212 = vld [vmem:[%s1 + $0x78] sm:$0xff]
    %v213 = vld [vmem:[%s1 + $0x80] sm:$0xff]
    %v214 = vld [vmem:[%s1 + $0x88] sm:$0xff]
    %v215 = vld [vmem:[%s1 + $0x90] sm:$0xff]
    %v216 = vld [vmem:[%s1 + $0x98] sm:$0xff]
    %v217 = vld [vmem:[%s1 + $0xa0] sm:$0xff]
    %v218 = vld [vmem:[%s1 + $0xa8] sm:$0xff]
    %v219 = vld [vmem:[%s1 + $0xb0] sm:$0xff]
    %v220 = vld [vmem:[%s1 + $0xb8] sm:$0xff]
    %s221 = scalar_lea.vmem %s2, 56
    %v222 = vld [vmem:[%s221] sm:$0xff]
    %v223 = vld [vmem:[%s221 + $0x8] sm:$0xff]
    %v224 = vld [vmem:[%s221 + $0x10] sm:$0xff]
    %v225 = vld [vmem:[%s221 + $0x18] sm:$0xff]
    %v226 = vld [vmem:[%s221 + $0x20] sm:$0xff]
    %v227 = vld [vmem:[%s221 + $0x28] sm:$0xff]
    %v228 = vld [vmem:[%s221 + $0x30] sm:$0xff]
    %v230 = vsel %vm75, %v222, 0
    %v233 = vsel %vm75, %v223, 0
    %v236 = vsel %vm75, %v224, 0
    %v239 = vsel %vm75, %v225, 0
    %v242 = vsel %vm75, %v226, 0
    %v245 = vsel %vm75, %v227, 0
    %v248 = vsel %vm75, %v228, 0
    %250 = vmatprep.subr.mxu0 0.0
    %251 = vmatpush1.msra.mxu0 %v60
    %252 = vmatprep.subr.mxu0 0.0
    %253 = vmatpush1.msra.mxu0 %v61
    %254 = vmatprep.subr.mxu0 0.0
    %255 = vmatpush1.msra.mxu0 %v62
    %256 = vmatprep.subr.mxu0 0.0
    %257 = vmatpush1.msra.mxu0 %v63
    %258 = vmatprep.subr.mxu0 0.0
    %259 = vmatpush1.msra.mxu0 %v64
    %260 = vmatprep.subr.mxu0 0.0
    %261 = vmatpush1.msra.mxu0 %v65
    %262 = vmatprep.subr.mxu0 0.0
    %263 = vmatpush1.msra.mxu0 %v66
    %264 = vmatprep.subr.mxu0 0.0
    %265 = vmatpush1.msra.mxu0 %v67
    %266 = vmatprep.subr.mxu0 0.0
    %267 = vmatpush1.msra.mxu0 0.0
    %268 = vmatprep.subr.mxu0 0.0
    %269 = vmatpush1.msra.mxu0 0.0
    %270 = vmatprep.subr.mxu0 0.0
    %271 = vmatpush1.msra.mxu0 0.0
    %272 = vmatprep.subr.mxu0 0.0
    %273 = vmatpush1.msra.mxu0 0.0
    %274 = vmatprep.subr.mxu0 0.0
    %275 = vmatpush1.msra.mxu0 0.0
    %276 = vmatprep.subr.mxu0 0.0
    %277 = vmatpush1.msra.mxu0 0.0
    %278 = vmatprep.subr.mxu0 0.0
    %279 = vmatpush1.msra.mxu0 0.0
    %280 = vmatprep.subr.mxu0 0.0
    %281 = vmatpush1.msra.mxu0 0.0
    %282 = vmatprep.subr.mxu0 0.0
    %283 = vmatpush1.msra.mxu0 0.0
    %284 = vmatprep.subr.mxu0 0.0
    %285 = vmatpush1.msra.mxu0 0.0
    %286 = vmatprep.subr.mxu0 0.0
    %287 = vmatpush1.msra.mxu0 0.0
    %288 = vmatprep.subr.mxu0 0.0
    %289 = vmatpush1.msra.mxu0 0.0
    %290 = vmatprep.subr.mxu0 0.0
    %291 = vmatpush1.msra.mxu0 0.0
    %292 = vmatprep.subr.mxu0 0.0
    %293 = vmatpush1.msra.mxu0 0.0
    %294 = vmatprep.subr.mxu0 0.0
    %295 = vmatpush1.msra.mxu0 0.0
    %296 = vmatprep.subr.mxu0 0.0
    %297 = vmatpush1.msra.mxu0 0.0
    %298 = vmatprep.subr.mxu0 0.0
    %299 = vmatpush1.msra.mxu0 0.0
    %300 = vmatprep.subr.mxu0 0.0
    %301 = vmatpush1.msra.mxu0 0.0
    %302 = vmatprep.subr.mxu0 0.0
    %303 = vmatpush1.msra.mxu0 0.0
    %304 = vmatprep.subr.mxu0 0.0
    %305 = vmatpush1.msra.mxu0 0.0
    %306 = vmatprep.subr.mxu0 0.0
    %307 = vmatpush1.msra.mxu0 0.0
    %308 = vmatprep.subr.mxu0 0.0
    %309 = vmatpush1.msra.mxu0 0.0
    %310 = vmatprep.subr.mxu0 0.0
    %311 = vmatpush1.msra.mxu0 0.0
    %312 = vmatprep.subr.mxu0 0.0
    %313 = vmatpush1.msra.mxu0 0.0
    %314 = vmatprep.mubr.f32.mxu0 0.0
    %315 = vmatmul.mubr.f32.gmra.mrb[0].mxu0 %v230
    %v316 = vpop.f32.mrb[0].mxu0
    %v317 = vadd.f32 0.0, %v316
    %v318 = vpop.f32.mrb[0].mxu0
    %319 = vmatprep.mubr.f32.mxu0 0.0
    %320 = vmatmul.mubr.f32.gmra.mrb[0].mxu0 %v233
    %v321 = vpop.f32.mrb[0].mxu0
    %v322 = vadd.f32 0.0, %v321
    %v323 = vpop.f32.mrb[0].mxu0
    %324 = vmatprep.mubr.f32.mxu0 0.0
    %325 = vmatmul.mubr.f32.gmra.mrb[0].mxu0 %v236
    %v326 = vpop.f32.mrb[0].mxu0
    %v327 = vadd.f32 0.0, %v326
    %v328 = vpop.f32.mrb[0].mxu0
    %329 = vmatprep.mubr.f32.mxu0 0.0
    %330 = vmatmul.mubr.f32.gmra.mrb[0].mxu0 %v239
    %v331 = vpop.f32.mrb[0].mxu0
    %v332 = vadd.f32 0.0, %v331
    %v333 = vpop.f32.mrb[0].mxu0
    %334 = vmatprep.mubr.f32.mxu0 0.0
    %335 = vmatmul.mubr.f32.gmra.mrb[0].mxu0 %v242
    %v336 = vpop.f32.mrb[0].mxu0
    %v337 = vadd.f32 0.0, %v336
    %v338 = vpop.f32.mrb[0].mxu0
    %339 = vmatprep.mubr.f32.mxu0 0.0
    %340 = vmatmul.mubr.f32.gmra.mrb[0].mxu0 %v245
    %v341 = vpop.f32.mrb[0].mxu0
    %v342 = vadd.f32 0.0, %v341
    %v343 = vpop.f32.mrb[0].mxu0
    %344 = vmatprep.mubr.f32.mxu0 0.0
    %345 = vmatmul.mubr.f32.gmra.mrb[0].mxu0 %v248
    %v346 = vpop.f32.mrb[0].mxu0
    %v347 = vadd.f32 0.0, %v346
    %v348 = vpop.f32.mrb[0].mxu0
    %349 = vdwg.mxu0
    %s350 = scalar_lea.vmem %s1, 192
    %v351 = vld [vmem:[%s350] sm:$0xff]
    %v352 = vld [vmem:[%s350 + $0x8] sm:$0xff]
    %v353 = vld [vmem:[%s350 + $0x10] sm:$0xff]
    %v354 = vld [vmem:[%s350 + $0x18] sm:$0xff]
    %v355 = vld [vmem:[%s350 + $0x20] sm:$0xff]
    %v356 = vld [vmem:[%s350 + $0x28] sm:$0xff]
    %v357 = vld [vmem:[%s350 + $0x30] sm:$0xff]
    %v358 = vld [vmem:[%s350 + $0x38] sm:$0xff]
    %v359 = vld [vmem:[%s350 + $0x40] sm:$0xff]
    %v360 = vld [vmem:[%s350 + $0x48] sm:$0xff]
    %v361 = vld [vmem:[%s350 + $0x50] sm:$0xff]
    %v362 = vld [vmem:[%s350 + $0x58] sm:$0xff]
    %v363 = vld [vmem:[%s350 + $0x60] sm:$0xff]
    %v364 = vld [vmem:[%s350 + $0x68] sm:$0xff]
    %v365 = vld [vmem:[%s350 + $0x70] sm:$0xff]
    %v366 = vld [vmem:[%s350 + $0x78] sm:$0xff]
    %v367 = vld [vmem:[%s350 + $0x80] sm:$0xff]
    %v368 = vld [vmem:[%s350 + $0x88] sm:$0xff]
    %v369 = vld [vmem:[%s350 + $0x90] sm:$0xff]
    %v370 = vld [vmem:[%s350 + $0x98] sm:$0xff]
    %v371 = vld [vmem:[%s350 + $0xa0] sm:$0xff]
    %v372 = vld [vmem:[%s350 + $0xa8] sm:$0xff]
    %v373 = vld [vmem:[%s350 + $0xb0] sm:$0xff]
    %v374 = vld [vmem:[%s350 + $0xb8] sm:$0xff]
    %vm375 = vcmask 785408
    %v377 = vsel %vm375, %v317, 0
    %v380 = vsel %vm375, %v322, 0
    %v383 = vsel %vm375, %v327, 0
    %v386 = vsel %vm375, %v332, 0
    %v389 = vsel %vm375, %v337, 0
    %v392 = vsel %vm375, %v342, 0
    %v395 = vsel %vm375, %v347, 0
    %397 = vmatprep.subr.mxu0 %v352
    %398 = vmatpush1.msra.mxu0 %v351
    %399 = vmatprep.subr.mxu0 %v354
    %400 = vmatpush1.msra.mxu0 %v353
    %401 = vmatprep.subr.mxu0 %v356
    %402 = vmatpush1.msra.mxu0 %v355
    %403 = vmatprep.subr.mxu0 %v358
    %404 = vmatpush1.msra.mxu0 %v357
    %405 = vmatprep.subr.mxu0 %v360
    %406 = vmatpush1.msra.mxu0 %v359
    %407 = vmatprep.subr.mxu0 %v362
    %408 = vmatpush1.msra.mxu0 %v361
    %409 = vmatprep.subr.mxu0 %v364
    %410 = vmatpush1.msra.mxu0 %v363
    %411 = vmatprep.subr.mxu0 %v366
    %412 = vmatpush1.msra.mxu0 %v365
    %413 = vmatprep.subr.mxu0 %v368
    %414 = vmatpush1.msra.mxu0 %v367
    %415 = vmatprep.subr.mxu0 %v370
    %416 = vmatpush1.msra.mxu0 %v369
    %417 = vmatprep.subr.mxu0 %v372
    %418 = vmatpush1.msra.mxu0 %v371
    %419 = vmatprep.subr.mxu0 %v374
    %420 = vmatpush1.msra.mxu0 %v373
    %421 = vmatprep.subr.mxu0 0.0
    %422 = vmatpush1.msra.mxu0 0.0
    %423 = vmatprep.subr.mxu0 0.0
    %424 = vmatpush1.msra.mxu0 0.0
    %425 = vmatprep.subr.mxu0 0.0
    %426 = vmatpush1.msra.mxu0 0.0
    %427 = vmatprep.subr.mxu0 0.0
    %428 = vmatpush1.msra.mxu0 0.0
    %429 = vmatprep.subr.mxu0 0.0
    %430 = vmatpush1.msra.mxu0 0.0
    %431 = vmatprep.subr.mxu0 0.0
    %432 = vmatpush1.msra.mxu0 0.0
    %433 = vmatprep.subr.mxu0 0.0
    %434 = vmatpush1.msra.mxu0 0.0
    %435 = vmatprep.subr.mxu0 0.0
    %436 = vmatpush1.msra.mxu0 0.0
    %437 = vmatprep.subr.mxu0 0.0
    %438 = vmatpush1.msra.mxu0 0.0
    %439 = vmatprep.subr.mxu0 0.0
    %440 = vmatpush1.msra.mxu0 0.0
    %441 = vmatprep.subr.mxu0 0.0
    %442 = vmatpush1.msra.mxu0 0.0
    %443 = vmatprep.subr.mxu0 0.0
    %444 = vmatpush1.msra.mxu0 0.0
    %445 = vmatprep.subr.mxu0 0.0
    %446 = vmatpush1.msra.mxu0 0.0
    %447 = vmatprep.subr.mxu0 0.0
    %448 = vmatpush1.msra.mxu0 0.0
    %449 = vmatprep.subr.mxu0 0.0
    %450 = vmatpush1.msra.mxu0 0.0
    %451 = vmatprep.subr.mxu0 0.0
    %452 = vmatpush1.msra.mxu0 0.0
    %453 = vmatprep.subr.mxu0 0.0
    %454 = vmatpush1.msra.mxu0 0.0
    %455 = vmatprep.subr.mxu0 0.0
    %456 = vmatpush1.msra.mxu0 0.0
    %457 = vmatprep.subr.mxu0 0.0
    %458 = vmatpush1.msra.mxu0 0.0
    %459 = vmatprep.subr.mxu0 0.0
    %460 = vmatpush1.msra.mxu0 0.0
    %461 = vmatprep.mubr.f32.mxu0 0.0
    %462 = vmatmul.mubr.f32.gmra.mrb[0].mxu0 %v377
    %v463 = vpop.f32.mrb[0].mxu0
    %v464 = vadd.f32 0.0, %v463
    %v465 = vpop.f32.mrb[0].mxu0
    %v466 = vadd.f32 0.0, %v465
    %467 = vmatprep.mubr.f32.mxu0 0.0
    %468 = vmatmul.mubr.f32.gmra.mrb[0].mxu0 %v380
    %v469 = vpop.f32.mrb[0].mxu0
    %v470 = vadd.f32 0.0, %v469
    %v471 = vpop.f32.mrb[0].mxu0
    %v472 = vadd.f32 0.0, %v471
    %473 = vmatprep.mubr.f32.mxu0 0.0
    %474 = vmatmul.mubr.f32.gmra.mrb[0].mxu0 %v383
    %v475 = vpop.f32.mrb[0].mxu0
    %v476 = vadd.f32 0.0, %v475
    %v477 = vpop.f32.mrb[0].mxu0
    %v478 = vadd.f32 0.0, %v477
    %479 = vmatprep.mubr.f32.mxu0 0.0
    %480 = vmatmul.mubr.f32.gmra.mrb[0].mxu0 %v386
    %v481 = vpop.f32.mrb[0].mxu0
    %v482 = vadd.f32 0.0, %v481
    %v483 = vpop.f32.mrb[0].mxu0
    %v484 = vadd.f32 0.0, %v483
    %485 = vmatprep.mubr.f32.mxu0 0.0
    %486 = vmatmul.mubr.f32.gmra.mrb[0].mxu0 %v389
    %v487 = vpop.f32.mrb[0].mxu0
    %v488 = vadd.f32 0.0, %v487
    %v489 = vpop.f32.mrb[0].mxu0
    %v490 = vadd.f32 0.0, %v489
    %491 = vmatprep.mubr.f32.mxu0 0.0
    %492 = vmatmul.mubr.f32.gmra.mrb[0].mxu0 %v392
    %v493 = vpop.f32.mrb[0].mxu0
    %v494 = vadd.f32 0.0, %v493
    %v495 = vpop.f32.mrb[0].mxu0
    %v496 = vadd.f32 0.0, %v495
    %497 = vmatprep.mubr.f32.mxu0 0.0
    %498 = vmatmul.mubr.f32.gmra.mrb[0].mxu0 %v395
    %v499 = vpop.f32.mrb[0].mxu0
    %v500 = vadd.f32 0.0, %v499
    %v501 = vpop.f32.mrb[0].mxu0
    %v502 = vadd.f32 0.0, %v501
    %503 = vdwg.mxu0
    %v505 = vsel %vm375, %v164, 0
    %v508 = vsel %vm375, %v169, 0
    %v511 = vsel %vm375, %v174, 0
    %v514 = vsel %vm375, %v179, 0
    %v517 = vsel %vm375, %v184, 0
    %v520 = vsel %vm375, %v189, 0
    %v523 = vsel %vm375, %v194, 0
    %525 = vmatprep.subr.mxu0 %v198
    %526 = vmatpush1.msra.mxu0 %v197
    %527 = vmatprep.subr.mxu0 %v200
    %528 = vmatpush1.msra.mxu0 %v199
    %529 = vmatprep.subr.mxu0 %v202
    %530 = vmatpush1.msra.mxu0 %v201
    %531 = vmatprep.subr.mxu0 %v204
    %532 = vmatpush1.msra.mxu0 %v203
    %533 = vmatprep.subr.mxu0 %v206
    %534 = vmatpush1.msra.mxu0 %v205
    %535 = vmatprep.subr.mxu0 %v208
    %536 = vmatpush1.msra.mxu0 %v207
    %537 = vmatprep.subr.mxu0 %v210
    %538 = vmatpush1.msra.mxu0 %v209
    %539 = vmatprep.subr.mxu0 %v212
    %540 = vmatpush1.msra.mxu0 %v211
    %541 = vmatprep.subr.mxu0 %v214
    %542 = vmatpush1.msra.mxu0 %v213
    %543 = vmatprep.subr.mxu0 %v216
    %544 = vmatpush1.msra.mxu0 %v215
    %545 = vmatprep.subr.mxu0 %v218
    %546 = vmatpush1.msra.mxu0 %v217
    %547 = vmatprep.subr.mxu0 %v220
    %548 = vmatpush1.msra.mxu0 %v219
    %549 = vmatprep.subr.mxu0 0.0
    %550 = vmatpush1.msra.mxu0 0.0
    %551 = vmatprep.subr.mxu0 0.0
    %552 = vmatpush1.msra.mxu0 0.0
    %553 = vmatprep.subr.mxu0 0.0
    %554 = vmatpush1.msra.mxu0 0.0
    %555 = vmatprep.subr.mxu0 0.0
    %556 = vmatpush1.msra.mxu0 0.0
    %557 = vmatprep.subr.mxu0 0.0
    %558 = vmatpush1.msra.mxu0 0.0
    %559 = vmatprep.subr.mxu0 0.0
    %560 = vmatpush1.msra.mxu0 0.0
    %561 = vmatprep.subr.mxu0 0.0
    %562 = vmatpush1.msra.mxu0 0.0
    %563 = vmatprep.subr.mxu0 0.0
    %564 = vmatpush1.msra.mxu0 0.0
    %565 = vmatprep.subr.mxu0 0.0
    %566 = vmatpush1.msra.mxu0 0.0
    %567 = vmatprep.subr.mxu0 0.0
    %568 = vmatpush1.msra.mxu0 0.0
    %569 = vmatprep.subr.mxu0 0.0
    %570 = vmatpush1.msra.mxu0 0.0
    %571 = vmatprep.subr.mxu0 0.0
    %572 = vmatpush1.msra.mxu0 0.0
    %573 = vmatprep.subr.mxu0 0.0
    %574 = vmatpush1.msra.mxu0 0.0
    %575 = vmatprep.subr.mxu0 0.0
    %576 = vmatpush1.msra.mxu0 0.0
    %577 = vmatprep.subr.mxu0 0.0
    %578 = vmatpush1.msra.mxu0 0.0
    %579 = vmatprep.subr.mxu0 0.0
    %580 = vmatpush1.msra.mxu0 0.0
    %581 = vmatprep.subr.mxu0 0.0
    %582 = vmatpush1.msra.mxu0 0.0
    %583 = vmatprep.subr.mxu0 0.0
    %584 = vmatpush1.msra.mxu0 0.0
    %585 = vmatprep.subr.mxu0 0.0
    %586 = vmatpush1.msra.mxu0 0.0
    %587 = vmatprep.subr.mxu0 0.0
    %588 = vmatpush1.msra.mxu0 0.0
    %589 = vmatprep.mubr.f32.mxu0 0.0
    %590 = vmatmul.mubr.f32.gmra.mrb[0].mxu0 %v505
    %v591 = vpop.f32.mrb[0].mxu0
    %v592 = vadd.f32 %v464, %v591
    %v593 = vpop.f32.mrb[0].mxu0
    %v594 = vadd.f32 %v466, %v593
    %595 = vmatprep.mubr.f32.mxu0 0.0
    %596 = vmatmul.mubr.f32.gmra.mrb[0].mxu0 %v508
    %v597 = vpop.f32.mrb[0].mxu0
    %v598 = vadd.f32 %v470, %v597
    %v599 = vpop.f32.mrb[0].mxu0
    %v600 = vadd.f32 %v472, %v599
    %601 = vmatprep.mubr.f32.mxu0 0.0
    %602 = vmatmul.mubr.f32.gmra.mrb[0].mxu0 %v511
    %v603 = vpop.f32.mrb[0].mxu0
    %v604 = vadd.f32 %v476, %v603
    %v605 = vpop.f32.mrb[0].mxu0
    %v606 = vadd.f32 %v478, %v605
    %607 = vmatprep.mubr.f32.mxu0 0.0
    %608 = vmatmul.mubr.f32.gmra.mrb[0].mxu0 %v514
    %v609 = vpop.f32.mrb[0].mxu0
    %v610 = vadd.f32 %v482, %v609
    %v611 = vpop.f32.mrb[0].mxu0
    %v612 = vadd.f32 %v484, %v611
    %613 = vmatprep.mubr.f32.mxu0 0.0
    %614 = vmatmul.mubr.f32.gmra.mrb[0].mxu0 %v517
    %v615 = vpop.f32.mrb[0].mxu0
    %v616 = vadd.f32 %v488, %v615
    %v617 = vpop.f32.mrb[0].mxu0
    %v618 = vadd.f32 %v490, %v617
    %619 = vmatprep.mubr.f32.mxu0 0.0
    %620 = vmatmul.mubr.f32.gmra.mrb[0].mxu0 %v520
    %v621 = vpop.f32.mrb[0].mxu0
    %v622 = vadd.f32 %v494, %v621
    %v623 = vpop.f32.mrb[0].mxu0
    %v624 = vadd.f32 %v496, %v623
    %625 = vmatprep.mubr.f32.mxu0 0.0
    %626 = vmatmul.mubr.f32.gmra.mrb[0].mxu0 %v523
    %v627 = vpop.f32.mrb[0].mxu0
    %v628 = vadd.f32 %v500, %v627
    %v629 = vpop.f32.mrb[0].mxu0
    %v630 = vadd.f32 %v502, %v629
    %631 = vdwg.mxu0
    %s632 = scalar_lea.vmem %s2, 112
    %v633 = vld [vmem:[%s632] sm:$0xff]
    %v634 = vld [vmem:[%s632 + $0x8] sm:$0xff]
    %v635 = vld [vmem:[%s632 + $0x10] sm:$0xff]
    %v636 = vld [vmem:[%s632 + $0x18] sm:$0xff]
    %v637 = vld [vmem:[%s632 + $0x20] sm:$0xff]
    %v638 = vld [vmem:[%s632 + $0x28] sm:$0xff]
    %v639 = vld [vmem:[%s632 + $0x30] sm:$0xff]
    %v641 = vsel %vm75, %v633, 0
    %v644 = vsel %vm75, %v634, 0
    %v647 = vsel %vm75, %v635, 0
    %v650 = vsel %vm75, %v636, 0
    %v653 = vsel %vm75, %v637, 0
    %v656 = vsel %vm75, %v638, 0
    %v659 = vsel %vm75, %v639, 0
    %661 = vmatprep.subr.mxu0 0.0
    %662 = vmatpush1.msra.mxu0 %v60
    %663 = vmatprep.subr.mxu0 0.0
    %664 = vmatpush1.msra.mxu0 %v61
    %665 = vmatprep.subr.mxu0 0.0
    %666 = vmatpush1.msra.mxu0 %v62
    %667 = vmatprep.subr.mxu0 0.0
    %668 = vmatpush1.msra.mxu0 %v63
    %669 = vmatprep.subr.mxu0 0.0
    %670 = vmatpush1.msra.mxu0 %v64
    %671 = vmatprep.subr.mxu0 0.0
    %672 = vmatpush1.msra.mxu0 %v65
    %673 = vmatprep.subr.mxu0 0.0
    %674 = vmatpush1.msra.mxu0 %v66
    %675 = vmatprep.subr.mxu0 0.0
    %676 = vmatpush1.msra.mxu0 %v67
    %677 = vmatprep.subr.mxu0 0.0
    %678 = vmatpush1.msra.mxu0 0.0
    %679 = vmatprep.subr.mxu0 0.0
    %680 = vmatpush1.msra.mxu0 0.0
    %681 = vmatprep.subr.mxu0 0.0
    %682 = vmatpush1.msra.mxu0 0.0
    %683 = vmatprep.subr.mxu0 0.0
    %684 = vmatpush1.msra.mxu0 0.0
    %685 = vmatprep.subr.mxu0 0.0
    %686 = vmatpush1.msra.mxu0 0.0
    %687 = vmatprep.subr.mxu0 0.0
    %688 = vmatpush1.msra.mxu0 0.0
    %689 = vmatprep.subr.mxu0 0.0
    %690 = vmatpush1.msra.mxu0 0.0
    %691 = vmatprep.subr.mxu0 0.0
    %692 = vmatpush1.msra.mxu0 0.0
    %693 = vmatprep.subr.mxu0 0.0
    %694 = vmatpush1.msra.mxu0 0.0
    %695 = vmatprep.subr.mxu0 0.0
    %696 = vmatpush1.msra.mxu0 0.0
    %697 = vmatprep.subr.mxu0 0.0
    %698 = vmatpush1.msra.mxu0 0.0
    %699 = vmatprep.subr.mxu0 0.0
    %700 = vmatpush1.msra.mxu0 0.0
    %701 = vmatprep.subr.mxu0 0.0
    %702 = vmatpush1.msra.mxu0 0.0
    %703 = vmatprep.subr.mxu0 0.0
    %704 = vmatpush1.msra.mxu0 0.0
    %705 = vmatprep.subr.mxu0 0.0
    %706 = vmatpush1.msra.mxu0 0.0
    %707 = vmatprep.subr.mxu0 0.0
    %708 = vmatpush1.msra.mxu0 0.0
    %709 = vmatprep.subr.mxu0 0.0
    %710 = vmatpush1.msra.mxu0 0.0
    %711 = vmatprep.subr.mxu0 0.0
    %712 = vmatpush1.msra.mxu0 0.0
    %713 = vmatprep.subr.mxu0 0.0
    %714 = vmatpush1.msra.mxu0 0.0
    %715 = vmatprep.subr.mxu0 0.0
    %716 = vmatpush1.msra.mxu0 0.0
    %717 = vmatprep.subr.mxu0 0.0
    %718 = vmatpush1.msra.mxu0 0.0
    %719 = vmatprep.subr.mxu0 0.0
    %720 = vmatpush1.msra.mxu0 0.0
    %721 = vmatprep.subr.mxu0 0.0
    %722 = vmatpush1.msra.mxu0 0.0
    %723 = vmatprep.subr.mxu0 0.0
    %724 = vmatpush1.msra.mxu0 0.0
    %725 = vmatprep.mubr.f32.mxu0 0.0
    %726 = vmatmul.mubr.f32.gmra.mrb[0].mxu0 %v641
    %v727 = vpop.f32.mrb[0].mxu0
    %v728 = vadd.f32 0.0, %v727
    %v729 = vpop.f32.mrb[0].mxu0
    %730 = vmatprep.mubr.f32.mxu0 0.0
    %731 = vmatmul.mubr.f32.gmra.mrb[0].mxu0 %v644
    %v732 = vpop.f32.mrb[0].mxu0
    %v733 = vadd.f32 0.0, %v732
    %v734 = vpop.f32.mrb[0].mxu0
    %735 = vmatprep.mubr.f32.mxu0 0.0
    %736 = vmatmul.mubr.f32.gmra.mrb[0].mxu0 %v647
    %v737 = vpop.f32.mrb[0].mxu0
    %v738 = vadd.f32 0.0, %v737
    %v739 = vpop.f32.mrb[0].mxu0
    %740 = vmatprep.mubr.f32.mxu0 0.0
    %741 = vmatmul.mubr.f32.gmra.mrb[0].mxu0 %v650
    %v742 = vpop.f32.mrb[0].mxu0
    %v743 = vadd.f32 0.0, %v742
    %v744 = vpop.f32.mrb[0].mxu0
    %745 = vmatprep.mubr.f32.mxu0 0.0
    %746 = vmatmul.mubr.f32.gmra.mrb[0].mxu0 %v653
    %v747 = vpop.f32.mrb[0].mxu0
    %v748 = vadd.f32 0.0, %v747
    %v749 = vpop.f32.mrb[0].mxu0
    %750 = vmatprep.mubr.f32.mxu0 0.0
    %751 = vmatmul.mubr.f32.gmra.mrb[0].mxu0 %v656
    %v752 = vpop.f32.mrb[0].mxu0
    %v753 = vadd.f32 0.0, %v752
    %v754 = vpop.f32.mrb[0].mxu0
    %755 = vmatprep.mubr.f32.mxu0 0.0
    %756 = vmatmul.mubr.f32.gmra.mrb[0].mxu0 %v659
    %v757 = vpop.f32.mrb[0].mxu0
    %v758 = vadd.f32 0.0, %v757
    %v759 = vpop.f32.mrb[0].mxu0
    %760 = vdwg.mxu0
    %s761 = scalar_lea.vmem %s1, 384
    %v762 = vld [vmem:[%s761] sm:$0xff]
    %v763 = vld [vmem:[%s761 + $0x8] sm:$0xff]
    %v764 = vld [vmem:[%s761 + $0x10] sm:$0xff]
    %v765 = vld [vmem:[%s761 + $0x18] sm:$0xff]
    %v766 = vld [vmem:[%s761 + $0x20] sm:$0xff]
    %v767 = vld [vmem:[%s761 + $0x28] sm:$0xff]
    %v768 = vld [vmem:[%s761 + $0x30] sm:$0xff]
    %v769 = vld [vmem:[%s761 + $0x38] sm:$0xff]
    %v770 = vld [vmem:[%s761 + $0x40] sm:$0xff]
    %v771 = vld [vmem:[%s761 + $0x48] sm:$0xff]
    %v772 = vld [vmem:[%s761 + $0x50] sm:$0xff]
    %v773 = vld [vmem:[%s761 + $0x58] sm:$0xff]
    %v774 = vld [vmem:[%s761 + $0x60] sm:$0xff]
    %v775 = vld [vmem:[%s761 + $0x68] sm:$0xff]
    %v776 = vld [vmem:[%s761 + $0x70] sm:$0xff]
    %v777 = vld [vmem:[%s761 + $0x78] sm:$0xff]
    %v778 = vld [vmem:[%s761 + $0x80] sm:$0xff]
    %v779 = vld [vmem:[%s761 + $0x88] sm:$0xff]
    %v780 = vld [vmem:[%s761 + $0x90] sm:$0xff]
    %v781 = vld [vmem:[%s761 + $0x98] sm:$0xff]
    %v782 = vld [vmem:[%s761 + $0xa0] sm:$0xff]
    %v783 = vld [vmem:[%s761 + $0xa8] sm:$0xff]
    %v784 = vld [vmem:[%s761 + $0xb0] sm:$0xff]
    %v785 = vld [vmem:[%s761 + $0xb8] sm:$0xff]
    %v787 = vsel %vm375, %v728, 0
    %v790 = vsel %vm375, %v733, 0
    %v793 = vsel %vm375, %v738, 0
    %v796 = vsel %vm375, %v743, 0
    %v799 = vsel %vm375, %v748, 0
    %v802 = vsel %vm375, %v753, 0
    %v805 = vsel %vm375, %v758, 0
    %807 = vmatprep.subr.mxu0 %v763
    %808 = vmatpush1.msra.mxu0 %v762
    %809 = vmatprep.subr.mxu0 %v765
    %810 = vmatpush1.msra.mxu0 %v764
    %811 = vmatprep.subr.mxu0 %v767
    %812 = vmatpush1.msra.mxu0 %v766
    %813 = vmatprep.subr.mxu0 %v769
    %814 = vmatpush1.msra.mxu0 %v768
    %815 = vmatprep.subr.mxu0 %v771
    %816 = vmatpush1.msra.mxu0 %v770
    %817 = vmatprep.subr.mxu0 %v773
    %818 = vmatpush1.msra.mxu0 %v772
    %819 = vmatprep.subr.mxu0 %v775
    %820 = vmatpush1.msra.mxu0 %v774
    %821 = vmatprep.subr.mxu0 %v777
    %822 = vmatpush1.msra.mxu0 %v776
    %823 = vmatprep.subr.mxu0 %v779
    %824 = vmatpush1.msra.mxu0 %v778
    %825 = vmatprep.subr.mxu0 %v781
    %826 = vmatpush1.msra.mxu0 %v780
    %827 = vmatprep.subr.mxu0 %v783
    %828 = vmatpush1.msra.mxu0 %v782
    %829 = vmatprep.subr.mxu0 %v785
    %830 = vmatpush1.msra.mxu0 %v784
    %831 = vmatprep.subr.mxu0 0.0
    %832 = vmatpush1.msra.mxu0 0.0
    %833 = vmatprep.subr.mxu0 0.0
    %834 = vmatpush1.msra.mxu0 0.0
    %835 = vmatprep.subr.mxu0 0.0
    %836 = vmatpush1.msra.mxu0 0.0
    %837 = vmatprep.subr.mxu0 0.0
    %838 = vmatpush1.msra.mxu0 0.0
    %839 = vmatprep.subr.mxu0 0.0
    %840 = vmatpush1.msra.mxu0 0.0
    %841 = vmatprep.subr.mxu0 0.0
    %842 = vmatpush1.msra.mxu0 0.0
    %843 = vmatprep.subr.mxu0 0.0
    %844 = vmatpush1.msra.mxu0 0.0
    %845 = vmatprep.subr.mxu0 0.0
    %846 = vmatpush1.msra.mxu0 0.0
    %847 = vmatprep.subr.mxu0 0.0
    %848 = vmatpush1.msra.mxu0 0.0
    %849 = vmatprep.subr.mxu0 0.0
    %850 = vmatpush1.msra.mxu0 0.0
    %851 = vmatprep.subr.mxu0 0.0
    %852 = vmatpush1.msra.mxu0 0.0
    %853 = vmatprep.subr.mxu0 0.0
    %854 = vmatpush1.msra.mxu0 0.0
    %855 = vmatprep.subr.mxu0 0.0
    %856 = vmatpush1.msra.mxu0 0.0
    %857 = vmatprep.subr.mxu0 0.0
    %858 = vmatpush1.msra.mxu0 0.0
    %859 = vmatprep.subr.mxu0 0.0
    %860 = vmatpush1.msra.mxu0 0.0
    %861 = vmatprep.subr.mxu0 0.0
    %862 = vmatpush1.msra.mxu0 0.0
    %863 = vmatprep.subr.mxu0 0.0
    %864 = vmatpush1.msra.mxu0 0.0
    %865 = vmatprep.subr.mxu0 0.0
    %866 = vmatpush1.msra.mxu0 0.0
    %867 = vmatprep.subr.mxu0 0.0
    %868 = vmatpush1.msra.mxu0 0.0
    %869 = vmatprep.subr.mxu0 0.0
    %870 = vmatpush1.msra.mxu0 0.0
    %871 = vmatprep.mubr.f32.mxu0 0.0
    %872 = vmatmul.mubr.f32.gmra.mrb[0].mxu0 %v787
    %v873 = vpop.f32.mrb[0].mxu0
    %v874 = vadd.f32 0.0, %v873
    %v875 = vpop.f32.mrb[0].mxu0
    %v876 = vadd.f32 0.0, %v875
    %877 = vmatprep.mubr.f32.mxu0 0.0
    %878 = vmatmul.mubr.f32.gmra.mrb[0].mxu0 %v790
    %v879 = vpop.f32.mrb[0].mxu0
    %v880 = vadd.f32 0.0, %v879
    %v881 = vpop.f32.mrb[0].mxu0
    %v882 = vadd.f32 0.0, %v881
    %883 = vmatprep.mubr.f32.mxu0 0.0
    %884 = vmatmul.mubr.f32.gmra.mrb[0].mxu0 %v793
    %v885 = vpop.f32.mrb[0].mxu0
    %v886 = vadd.f32 0.0, %v885
    %v887 = vpop.f32.mrb[0].mxu0
    %v888 = vadd.f32 0.0, %v887
    %889 = vmatprep.mubr.f32.mxu0 0.0
    %890 = vmatmul.mubr.f32.gmra.mrb[0].mxu0 %v796
    %v891 = vpop.f32.mrb[0].mxu0
    %v892 = vadd.f32 0.0, %v891
    %v893 = vpop.f32.mrb[0].mxu0
    %v894 = vadd.f32 0.0, %v893
    %895 = vmatprep.mubr.f32.mxu0 0.0
    %896 = vmatmul.mubr.f32.gmra.mrb[0].mxu0 %v799
    %v897 = vpop.f32.mrb[0].mxu0
    %v898 = vadd.f32 0.0, %v897
    %v899 = vpop.f32.mrb[0].mxu0
    %v900 = vadd.f32 0.0, %v899
    %901 = vmatprep.mubr.f32.mxu0 0.0
    %902 = vmatmul.mubr.f32.gmra.mrb[0].mxu0 %v802
    %v903 = vpop.f32.mrb[0].mxu0
    %v904 = vadd.f32 0.0, %v903
    %v905 = vpop.f32.mrb[0].mxu0
    %v906 = vadd.f32 0.0, %v905
    %907 = vmatprep.mubr.f32.mxu0 0.0
    %908 = vmatmul.mubr.f32.gmra.mrb[0].mxu0 %v805
    %v909 = vpop.f32.mrb[0].mxu0
    %v910 = vadd.f32 0.0, %v909
    %v911 = vpop.f32.mrb[0].mxu0
    %v912 = vadd.f32 0.0, %v911
    %913 = vdwg.mxu0
    %v914 = vadd.f32 %v592, %v874
    %v915 = vadd.f32 %v594, %v876
    %v916 = vadd.f32 %v598, %v880
    %v917 = vadd.f32 %v600, %v882
    %v918 = vadd.f32 %v604, %v886
    %v919 = vadd.f32 %v606, %v888
    %v920 = vadd.f32 %v610, %v892
    %v921 = vadd.f32 %v612, %v894
    %v922 = vadd.f32 %v616, %v898
    %v923 = vadd.f32 %v618, %v900
    %v924 = vadd.f32 %v622, %v904
    %v925 = vadd.f32 %v624, %v906
    %v926 = vadd.f32 %v628, %v910
    %v927 = vadd.f32 %v630, %v912
    %s928 = scalar_lea.vmem %s2, 168
    %v929 = vld [vmem:[%s928] sm:$0xff]
    %v930 = vld [vmem:[%s928 + $0x8] sm:$0xff]
    %v931 = vld [vmem:[%s928 + $0x10] sm:$0xff]
    %v932 = vld [vmem:[%s928 + $0x18] sm:$0xff]
    %v933 = vld [vmem:[%s928 + $0x20] sm:$0xff]
    %v934 = vld [vmem:[%s928 + $0x28] sm:$0xff]
    %v935 = vld [vmem:[%s928 + $0x30] sm:$0xff]
    %v937 = vsel %vm75, %v929, 0
    %v940 = vsel %vm75, %v930, 0
    %v943 = vsel %vm75, %v931, 0
    %v946 = vsel %vm75, %v932, 0
    %v949 = vsel %vm75, %v933, 0
    %v952 = vsel %vm75, %v934, 0
    %v955 = vsel %vm75, %v935, 0
    %957 = vmatprep.subr.mxu0 0.0
    %958 = vmatpush1.msra.mxu0 %v60
    %959 = vmatprep.subr.mxu0 0.0
    %960 = vmatpush1.msra.mxu0 %v61
    %961 = vmatprep.subr.mxu0 0.0
    %962 = vmatpush1.msra.mxu0 %v62
    %963 = vmatprep.subr.mxu0 0.0
    %964 = vmatpush1.msra.mxu0 %v63
    %965 = vmatprep.subr.mxu0 0.0
    %966 = vmatpush1.msra.mxu0 %v64
    %967 = vmatprep.subr.mxu0 0.0
    %968 = vmatpush1.msra.mxu0 %v65
    %969 = vmatprep.subr.mxu0 0.0
    %970 = vmatpush1.msra.mxu0 %v66
    %971 = vmatprep.subr.mxu0 0.0
    %972 = vmatpush1.msra.mxu0 %v67
    %973 = vmatprep.subr.mxu0 0.0
    %974 = vmatpush1.msra.mxu0 0.0
    %975 = vmatprep.subr.mxu0 0.0
    %976 = vmatpush1.msra.mxu0 0.0
    %977 = vmatprep.subr.mxu0 0.0
    %978 = vmatpush1.msra.mxu0 0.0
    %979 = vmatprep.subr.mxu0 0.0
    %980 = vmatpush1.msra.mxu0 0.0
    %981 = vmatprep.subr.mxu0 0.0
    %982 = vmatpush1.msra.mxu0 0.0
    %983 = vmatprep.subr.mxu0 0.0
    %984 = vmatpush1.msra.mxu0 0.0
    %985 = vmatprep.subr.mxu0 0.0
    %986 = vmatpush1.msra.mxu0 0.0
    %987 = vmatprep.subr.mxu0 0.0
    %988 = vmatpush1.msra.mxu0 0.0
    %989 = vmatprep.subr.mxu0 0.0
    %990 = vmatpush1.msra.mxu0 0.0
    %991 = vmatprep.subr.mxu0 0.0
    %992 = vmatpush1.msra.mxu0 0.0
    %993 = vmatprep.subr.mxu0 0.0
    %994 = vmatpush1.msra.mxu0 0.0
    %995 = vmatprep.subr.mxu0 0.0
    %996 = vmatpush1.msra.mxu0 0.0
    %997 = vmatprep.subr.mxu0 0.0
    %998 = vmatpush1.msra.mxu0 0.0
    %999 = vmatprep.subr.mxu0 0.0
    %1000 = vmatpush1.msra.mxu0 0.0
    %1001 = vmatprep.subr.mxu0 0.0
    %1002 = vmatpush1.msra.mxu0 0.0
    %1003 = vmatprep.subr.mxu0 0.0
    %1004 = vmatpush1.msra.mxu0 0.0
    %1005 = vmatprep.subr.mxu0 0.0
    %1006 = vmatpush1.msra.mxu0 0.0
    %1007 = vmatprep.subr.mxu0 0.0
    %1008 = vmatpush1.msra.mxu0 0.0
    %1009 = vmatprep.subr.mxu0 0.0
    %1010 = vmatpush1.msra.mxu0 0.0
    %1011 = vmatprep.subr.mxu0 0.0
    %1012 = vmatpush1.msra.mxu0 0.0
    %1013 = vmatprep.subr.mxu0 0.0
    %1014 = vmatpush1.msra.mxu0 0.0
    %1015 = vmatprep.subr.mxu0 0.0
    %1016 = vmatpush1.msra.mxu0 0.0
    %1017 = vmatprep.subr.mxu0 0.0
    %1018 = vmatpush1.msra.mxu0 0.0
    %1019 = vmatprep.subr.mxu0 0.0
    %1020 = vmatpush1.msra.mxu0 0.0
    %1021 = vmatprep.mubr.f32.mxu0 0.0
    %1022 = vmatmul.mubr.f32.gmra.mrb[0].mxu0 %v937
    %v1023 = vpop.f32.mrb[0].mxu0
    %v1024 = vadd.f32 0.0, %v1023
    %v1025 = vpop.f32.mrb[0].mxu0
    %1026 = vmatprep.mubr.f32.mxu0 0.0
    %1027 = vmatmul.mubr.f32.gmra.mrb[0].mxu0 %v940
    %v1028 = vpop.f32.mrb[0].mxu0
    %v1029 = vadd.f32 0.0, %v1028
    %v1030 = vpop.f32.mrb[0].mxu0
    %1031 = vmatprep.mubr.f32.mxu0 0.0
    %1032 = vmatmul.mubr.f32.gmra.mrb[0].mxu0 %v943
    %v1033 = vpop.f32.mrb[0].mxu0
    %v1034 = vadd.f32 0.0, %v1033
    %v1035 = vpop.f32.mrb[0].mxu0
    %1036 = vmatprep.mubr.f32.mxu0 0.0
    %1037 = vmatmul.mubr.f32.gmra.mrb[0].mxu0 %v946
    %v1038 = vpop.f32.mrb[0].mxu0
    %v1039 = vadd.f32 0.0, %v1038
    %v1040 = vpop.f32.mrb[0].mxu0
    %1041 = vmatprep.mubr.f32.mxu0 0.0
    %1042 = vmatmul.mubr.f32.gmra.mrb[0].mxu0 %v949
    %v1043 = vpop.f32.mrb[0].mxu0
    %v1044 = vadd.f32 0.0, %v1043
    %v1045 = vpop.f32.mrb[0].mxu0
    %1046 = vmatprep.mubr.f32.mxu0 0.0
    %1047 = vmatmul.mubr.f32.gmra.mrb[0].mxu0 %v952
    %v1048 = vpop.f32.mrb[0].mxu0
    %v1049 = vadd.f32 0.0, %v1048
    %v1050 = vpop.f32.mrb[0].mxu0
    %1051 = vmatprep.mubr.f32.mxu0 0.0
    %1052 = vmatmul.mubr.f32.gmra.mrb[0].mxu0 %v955
    %v1053 = vpop.f32.mrb[0].mxu0
    %v1054 = vadd.f32 0.0, %v1053
    %v1055 = vpop.f32.mrb[0].mxu0
    %1056 = vdwg.mxu0
    %s1057 = scalar_lea.vmem %s1, 576
    %v1058 = vld [vmem:[%s1057] sm:$0xff]
    %v1059 = vld [vmem:[%s1057 + $0x8] sm:$0xff]
    %v1060 = vld [vmem:[%s1057 + $0x10] sm:$0xff]
    %v1061 = vld [vmem:[%s1057 + $0x18] sm:$0xff]
    %v1062 = vld [vmem:[%s1057 + $0x20] sm:$0xff]
    %v1063 = vld [vmem:[%s1057 + $0x28] sm:$0xff]
    %v1064 = vld [vmem:[%s1057 + $0x30] sm:$0xff]
    %v1065 = vld [vmem:[%s1057 + $0x38] sm:$0xff]
    %v1066 = vld [vmem:[%s1057 + $0x40] sm:$0xff]
    %v1067 = vld [vmem:[%s1057 + $0x48] sm:$0xff]
    %v1068 = vld [vmem:[%s1057 + $0x50] sm:$0xff]
    %v1069 = vld [vmem:[%s1057 + $0x58] sm:$0xff]
    %v1070 = vld [vmem:[%s1057 + $0x60] sm:$0xff]
    %v1071 = vld [vmem:[%s1057 + $0x68] sm:$0xff]
    %v1072 = vld [vmem:[%s1057 + $0x70] sm:$0xff]
    %v1073 = vld [vmem:[%s1057 + $0x78] sm:$0xff]
    %v1074 = vld [vmem:[%s1057 + $0x80] sm:$0xff]
    %v1075 = vld [vmem:[%s1057 + $0x88] sm:$0xff]
    %v1076 = vld [vmem:[%s1057 + $0x90] sm:$0xff]
    %v1077 = vld [vmem:[%s1057 + $0x98] sm:$0xff]
    %v1078 = vld [vmem:[%s1057 + $0xa0] sm:$0xff]
    %v1079 = vld [vmem:[%s1057 + $0xa8] sm:$0xff]
    %v1080 = vld [vmem:[%s1057 + $0xb0] sm:$0xff]
    %v1081 = vld [vmem:[%s1057 + $0xb8] sm:$0xff]
    %v1083 = vsel %vm375, %v1024, 0
    %v1086 = vsel %vm375, %v1029, 0
    %v1089 = vsel %vm375, %v1034, 0
    %v1092 = vsel %vm375, %v1039, 0
    %v1095 = vsel %vm375, %v1044, 0
    %v1098 = vsel %vm375, %v1049, 0
    %v1101 = vsel %vm375, %v1054, 0
    %1103 = vmatprep.subr.mxu0 %v1059
    %1104 = vmatpush1.msra.mxu0 %v1058
    %1105 = vmatprep.subr.mxu0 %v1061
    %1106 = vmatpush1.msra.mxu0 %v1060
    %1107 = vmatprep.subr.mxu0 %v1063
    %1108 = vmatpush1.msra.mxu0 %v1062
    %1109 = vmatprep.subr.mxu0 %v1065
    %1110 = vmatpush1.msra.mxu0 %v1064
    %1111 = vmatprep.subr.mxu0 %v1067
    %1112 = vmatpush1.msra.mxu0 %v1066
    %1113 = vmatprep.subr.mxu0 %v1069
    %1114 = vmatpush1.msra.mxu0 %v1068
    %1115 = vmatprep.subr.mxu0 %v1071
    %1116 = vmatpush1.msra.mxu0 %v1070
    %1117 = vmatprep.subr.mxu0 %v1073
    %1118 = vmatpush1.msra.mxu0 %v1072
    %1119 = vmatprep.subr.mxu0 %v1075
    %1120 = vmatpush1.msra.mxu0 %v1074
    %1121 = vmatprep.subr.mxu0 %v1077
    %1122 = vmatpush1.msra.mxu0 %v1076
    %1123 = vmatprep.subr.mxu0 %v1079
    %1124 = vmatpush1.msra.mxu0 %v1078
    %1125 = vmatprep.subr.mxu0 %v1081
    %1126 = vmatpush1.msra.mxu0 %v1080
    %1127 = vmatprep.subr.mxu0 0.0
    %1128 = vmatpush1.msra.mxu0 0.0
    %1129 = vmatprep.subr.mxu0 0.0
    %1130 = vmatpush1.msra.mxu0 0.0
    %1131 = vmatprep.subr.mxu0 0.0
    %1132 = vmatpush1.msra.mxu0 0.0
    %1133 = vmatprep.subr.mxu0 0.0
    %1134 = vmatpush1.msra.mxu0 0.0
    %1135 = vmatprep.subr.mxu0 0.0
    %1136 = vmatpush1.msra.mxu0 0.0
    %1137 = vmatprep.subr.mxu0 0.0
    %1138 = vmatpush1.msra.mxu0 0.0
    %1139 = vmatprep.subr.mxu0 0.0
    %1140 = vmatpush1.msra.mxu0 0.0
    %1141 = vmatprep.subr.mxu0 0.0
    %1142 = vmatpush1.msra.mxu0 0.0
    %1143 = vmatprep.subr.mxu0 0.0
    %1144 = vmatpush1.msra.mxu0 0.0
    %1145 = vmatprep.subr.mxu0 0.0
    %1146 = vmatpush1.msra.mxu0 0.0
    %1147 = vmatprep.subr.mxu0 0.0
    %1148 = vmatpush1.msra.mxu0 0.0
    %1149 = vmatprep.subr.mxu0 0.0
    %1150 = vmatpush1.msra.mxu0 0.0
    %1151 = vmatprep.subr.mxu0 0.0
    %1152 = vmatpush1.msra.mxu0 0.0
    %1153 = vmatprep.subr.mxu0 0.0
    %1154 = vmatpush1.msra.mxu0 0.0
    %1155 = vmatprep.subr.mxu0 0.0
    %1156 = vmatpush1.msra.mxu0 0.0
    %1157 = vmatprep.subr.mxu0 0.0
    %1158 = vmatpush1.msra.mxu0 0.0
    %1159 = vmatprep.subr.mxu0 0.0
    %1160 = vmatpush1.msra.mxu0 0.0
    %1161 = vmatprep.subr.mxu0 0.0
    %1162 = vmatpush1.msra.mxu0 0.0
    %1163 = vmatprep.subr.mxu0 0.0
    %1164 = vmatpush1.msra.mxu0 0.0
    %1165 = vmatprep.subr.mxu0 0.0
    %1166 = vmatpush1.msra.mxu0 0.0
    %1167 = vmatprep.mubr.f32.mxu0 0.0
    %1168 = vmatmul.mubr.f32.gmra.mrb[0].mxu0 %v1083
    %v1169 = vpop.f32.mrb[0].mxu0
    %v1170 = vadd.f32 0.0, %v1169
    %v1171 = vpop.f32.mrb[0].mxu0
    %v1172 = vadd.f32 0.0, %v1171
    %1173 = vmatprep.mubr.f32.mxu0 0.0
    %1174 = vmatmul.mubr.f32.gmra.mrb[0].mxu0 %v1086
    %v1175 = vpop.f32.mrb[0].mxu0
    %v1176 = vadd.f32 0.0, %v1175
    %v1177 = vpop.f32.mrb[0].mxu0
    %v1178 = vadd.f32 0.0, %v1177
    %1179 = vmatprep.mubr.f32.mxu0 0.0
    %1180 = vmatmul.mubr.f32.gmra.mrb[0].mxu0 %v1089
    %v1181 = vpop.f32.mrb[0].mxu0
    %v1182 = vadd.f32 0.0, %v1181
    %v1183 = vpop.f32.mrb[0].mxu0
    %v1184 = vadd.f32 0.0, %v1183
    %1185 = vmatprep.mubr.f32.mxu0 0.0
    %1186 = vmatmul.mubr.f32.gmra.mrb[0].mxu0 %v1092
    %v1187 = vpop.f32.mrb[0].mxu0
    %v1188 = vadd.f32 0.0, %v1187
    %v1189 = vpop.f32.mrb[0].mxu0
    %v1190 = vadd.f32 0.0, %v1189
    %1191 = vmatprep.mubr.f32.mxu0 0.0
    %1192 = vmatmul.mubr.f32.gmra.mrb[0].mxu0 %v1095
    %v1193 = vpop.f32.mrb[0].mxu0
    %v1194 = vadd.f32 0.0, %v1193
    %v1195 = vpop.f32.mrb[0].mxu0
    %v1196 = vadd.f32 0.0, %v1195
    %1197 = vmatprep.mubr.f32.mxu0 0.0
    %1198 = vmatmul.mubr.f32.gmra.mrb[0].mxu0 %v1098
    %v1199 = vpop.f32.mrb[0].mxu0
    %v1200 = vadd.f32 0.0, %v1199
    %v1201 = vpop.f32.mrb[0].mxu0
    %v1202 = vadd.f32 0.0, %v1201
    %1203 = vmatprep.mubr.f32.mxu0 0.0
    %1204 = vmatmul.mubr.f32.gmra.mrb[0].mxu0 %v1101
    %v1205 = vpop.f32.mrb[0].mxu0
    %v1206 = vadd.f32 0.0, %v1205
    %v1207 = vpop.f32.mrb[0].mxu0
    %v1208 = vadd.f32 0.0, %v1207
    %1209 = vdwg.mxu0
    %v1210 = vadd.f32 %v914, %v1170
    %v1211 = vadd.f32 %v915, %v1172
    %v1212 = vadd.f32 %v916, %v1176
    %v1213 = vadd.f32 %v917, %v1178
    %v1214 = vadd.f32 %v918, %v1182
    %v1215 = vadd.f32 %v919, %v1184
    %v1216 = vadd.f32 %v920, %v1188
    %v1217 = vadd.f32 %v921, %v1190
    %v1218 = vadd.f32 %v922, %v1194
    %v1219 = vadd.f32 %v923, %v1196
    %v1220 = vadd.f32 %v924, %v1200
    %v1221 = vadd.f32 %v925, %v1202
    %v1222 = vadd.f32 %v926, %v1206
    %v1223 = vadd.f32 %v927, %v1208
    %s1224 = scalar_lea.vmem %s2, 224
    %v1225 = vld [vmem:[%s1224] sm:$0xff]
    %v1226 = vld [vmem:[%s1224 + $0x8] sm:$0xff]
    %v1227 = vld [vmem:[%s1224 + $0x10] sm:$0xff]
    %v1228 = vld [vmem:[%s1224 + $0x18] sm:$0xff]
    %v1229 = vld [vmem:[%s1224 + $0x20] sm:$0xff]
    %v1230 = vld [vmem:[%s1224 + $0x28] sm:$0xff]
    %v1231 = vld [vmem:[%s1224 + $0x30] sm:$0xff]
    %v1233 = vsel %vm75, %v1225, 0
    %v1236 = vsel %vm75, %v1226, 0
    %v1239 = vsel %vm75, %v1227, 0
    %v1242 = vsel %vm75, %v1228, 0
    %v1245 = vsel %vm75, %v1229, 0
    %v1248 = vsel %vm75, %v1230, 0
    %v1251 = vsel %vm75, %v1231, 0
    %1253 = vmatprep.subr.mxu0 0.0
    %1254 = vmatpush1.msra.mxu0 %v60
    %1255 = vmatprep.subr.mxu0 0.0
    %1256 = vmatpush1.msra.mxu0 %v61
    %1257 = vmatprep.subr.mxu0 0.0
    %1258 = vmatpush1.msra.mxu0 %v62
    %1259 = vmatprep.subr.mxu0 0.0
    %1260 = vmatpush1.msra.mxu0 %v63
    %1261 = vmatprep.subr.mxu0 0.0
    %1262 = vmatpush1.msra.mxu0 %v64
    %1263 = vmatprep.subr.mxu0 0.0
    %1264 = vmatpush1.msra.mxu0 %v65
    %1265 = vmatprep.subr.mxu0 0.0
    %1266 = vmatpush1.msra.mxu0 %v66
    %1267 = vmatprep.subr.mxu0 0.0
    %1268 = vmatpush1.msra.mxu0 %v67
    %1269 = vmatprep.subr.mxu0 0.0
    %1270 = vmatpush1.msra.mxu0 0.0
    %1271 = vmatprep.subr.mxu0 0.0
    %1272 = vmatpush1.msra.mxu0 0.0
    %1273 = vmatprep.subr.mxu0 0.0
    %1274 = vmatpush1.msra.mxu0 0.0
    %1275 = vmatprep.subr.mxu0 0.0
    %1276 = vmatpush1.msra.mxu0 0.0
    %1277 = vmatprep.subr.mxu0 0.0
    %1278 = vmatpush1.msra.mxu0 0.0
    %1279 = vmatprep.subr.mxu0 0.0
    %1280 = vmatpush1.msra.mxu0 0.0
    %1281 = vmatprep.subr.mxu0 0.0
    %1282 = vmatpush1.msra.mxu0 0.0
    %1283 = vmatprep.subr.mxu0 0.0
    %1284 = vmatpush1.msra.mxu0 0.0
    %1285 = vmatprep.subr.mxu0 0.0
    %1286 = vmatpush1.msra.mxu0 0.0
    %1287 = vmatprep.subr.mxu0 0.0
    %1288 = vmatpush1.msra.mxu0 0.0
    %1289 = vmatprep.subr.mxu0 0.0
    %1290 = vmatpush1.msra.mxu0 0.0
    %1291 = vmatprep.subr.mxu0 0.0
    %1292 = vmatpush1.msra.mxu0 0.0
    %1293 = vmatprep.subr.mxu0 0.0
    %1294 = vmatpush1.msra.mxu0 0.0
    %1295 = vmatprep.subr.mxu0 0.0
    %1296 = vmatpush1.msra.mxu0 0.0
    %1297 = vmatprep.subr.mxu0 0.0
    %1298 = vmatpush1.msra.mxu0 0.0
    %1299 = vmatprep.subr.mxu0 0.0
    %1300 = vmatpush1.msra.mxu0 0.0
    %1301 = vmatprep.subr.mxu0 0.0
    %1302 = vmatpush1.msra.mxu0 0.0
    %1303 = vmatprep.subr.mxu0 0.0
    %1304 = vmatpush1.msra.mxu0 0.0
    %1305 = vmatprep.subr.mxu0 0.0
    %1306 = vmatpush1.msra.mxu0 0.0
    %1307 = vmatprep.subr.mxu0 0.0
    %1308 = vmatpush1.msra.mxu0 0.0
    %1309 = vmatprep.subr.mxu0 0.0
    %1310 = vmatpush1.msra.mxu0 0.0
    %1311 = vmatprep.subr.mxu0 0.0
    %1312 = vmatpush1.msra.mxu0 0.0
    %1313 = vmatprep.subr.mxu0 0.0
    %1314 = vmatpush1.msra.mxu0 0.0
    %1315 = vmatprep.subr.mxu0 0.0
    %1316 = vmatpush1.msra.mxu0 0.0
    %1317 = vmatprep.mubr.f32.mxu0 0.0
    %1318 = vmatmul.mubr.f32.gmra.mrb[0].mxu0 %v1233
    %v1319 = vpop.f32.mrb[0].mxu0
    %v1320 = vadd.f32 0.0, %v1319
    %v1321 = vpop.f32.mrb[0].mxu0
    %1322 = vmatprep.mubr.f32.mxu0 0.0
    %1323 = vmatmul.mubr.f32.gmra.mrb[0].mxu0 %v1236
    %v1324 = vpop.f32.mrb[0].mxu0
    %v1325 = vadd.f32 0.0, %v1324
    %v1326 = vpop.f32.mrb[0].mxu0
    %1327 = vmatprep.mubr.f32.mxu0 0.0
    %1328 = vmatmul.mubr.f32.gmra.mrb[0].mxu0 %v1239
    %v1329 = vpop.f32.mrb[0].mxu0
    %v1330 = vadd.f32 0.0, %v1329
    %v1331 = vpop.f32.mrb[0].mxu0
    %1332 = vmatprep.mubr.f32.mxu0 0.0
    %1333 = vmatmul.mubr.f32.gmra.mrb[0].mxu0 %v1242
    %v1334 = vpop.f32.mrb[0].mxu0
    %v1335 = vadd.f32 0.0, %v1334
    %v1336 = vpop.f32.mrb[0].mxu0
    %1337 = vmatprep.mubr.f32.mxu0 0.0
    %1338 = vmatmul.mubr.f32.gmra.mrb[0].mxu0 %v1245
    %v1339 = vpop.f32.mrb[0].mxu0
    %v1340 = vadd.f32 0.0, %v1339
    %v1341 = vpop.f32.mrb[0].mxu0
    %1342 = vmatprep.mubr.f32.mxu0 0.0
    %1343 = vmatmul.mubr.f32.gmra.mrb[0].mxu0 %v1248
    %v1344 = vpop.f32.mrb[0].mxu0
    %v1345 = vadd.f32 0.0, %v1344
    %v1346 = vpop.f32.mrb[0].mxu0
    %1347 = vmatprep.mubr.f32.mxu0 0.0
    %1348 = vmatmul.mubr.f32.gmra.mrb[0].mxu0 %v1251
    %v1349 = vpop.f32.mrb[0].mxu0
    %v1350 = vadd.f32 0.0, %v1349
    %v1351 = vpop.f32.mrb[0].mxu0
    %1352 = vdwg.mxu0
    %s1353 = scalar_lea.vmem %s1, 768
    %v1354 = vld [vmem:[%s1353] sm:$0xff]
    %v1355 = vld [vmem:[%s1353 + $0x8] sm:$0xff]
    %v1356 = vld [vmem:[%s1353 + $0x10] sm:$0xff]
    %v1357 = vld [vmem:[%s1353 + $0x18] sm:$0xff]
    %v1358 = vld [vmem:[%s1353 + $0x20] sm:$0xff]
    %v1359 = vld [vmem:[%s1353 + $0x28] sm:$0xff]
    %v1360 = vld [vmem:[%s1353 + $0x30] sm:$0xff]
    %v1361 = vld [vmem:[%s1353 + $0x38] sm:$0xff]
    %v1362 = vld [vmem:[%s1353 + $0x40] sm:$0xff]
    %v1363 = vld [vmem:[%s1353 + $0x48] sm:$0xff]
    %v1364 = vld [vmem:[%s1353 + $0x50] sm:$0xff]
    %v1365 = vld [vmem:[%s1353 + $0x58] sm:$0xff]
    %v1366 = vld [vmem:[%s1353 + $0x60] sm:$0xff]
    %v1367 = vld [vmem:[%s1353 + $0x68] sm:$0xff]
    %v1368 = vld [vmem:[%s1353 + $0x70] sm:$0xff]
    %v1369 = vld [vmem:[%s1353 + $0x78] sm:$0xff]
    %v1370 = vld [vmem:[%s1353 + $0x80] sm:$0xff]
    %v1371 = vld [vmem:[%s1353 + $0x88] sm:$0xff]
    %v1372 = vld [vmem:[%s1353 + $0x90] sm:$0xff]
    %v1373 = vld [vmem:[%s1353 + $0x98] sm:$0xff]
    %v1374 = vld [vmem:[%s1353 + $0xa0] sm:$0xff]
    %v1375 = vld [vmem:[%s1353 + $0xa8] sm:$0xff]
    %v1376 = vld [vmem:[%s1353 + $0xb0] sm:$0xff]
    %v1377 = vld [vmem:[%s1353 + $0xb8] sm:$0xff]
    %v1379 = vsel %vm375, %v1320, 0
    %v1382 = vsel %vm375, %v1325, 0
    %v1385 = vsel %vm375, %v1330, 0
    %v1388 = vsel %vm375, %v1335, 0
    %v1391 = vsel %vm375, %v1340, 0
    %v1394 = vsel %vm375, %v1345, 0
    %v1397 = vsel %vm375, %v1350, 0
    %1399 = vmatprep.subr.mxu0 %v1355
    %1400 = vmatpush1.msra.mxu0 %v1354
    %1401 = vmatprep.subr.mxu0 %v1357
    %1402 = vmatpush1.msra.mxu0 %v1356
    %1403 = vmatprep.subr.mxu0 %v1359
    %1404 = vmatpush1.msra.mxu0 %v1358
    %1405 = vmatprep.subr.mxu0 %v1361
    %1406 = vmatpush1.msra.mxu0 %v1360
    %1407 = vmatprep.subr.mxu0 %v1363
    %1408 = vmatpush1.msra.mxu0 %v1362
    %1409 = vmatprep.subr.mxu0 %v1365
    %1410 = vmatpush1.msra.mxu0 %v1364
    %1411 = vmatprep.subr.mxu0 %v1367
    %1412 = vmatpush1.msra.mxu0 %v1366
    %1413 = vmatprep.subr.mxu0 %v1369
    %1414 = vmatpush1.msra.mxu0 %v1368
    %1415 = vmatprep.subr.mxu0 %v1371
    %1416 = vmatpush1.msra.mxu0 %v1370
    %1417 = vmatprep.subr.mxu0 %v1373
    %1418 = vmatpush1.msra.mxu0 %v1372
    %1419 = vmatprep.subr.mxu0 %v1375
    %1420 = vmatpush1.msra.mxu0 %v1374
    %1421 = vmatprep.subr.mxu0 %v1377
    %1422 = vmatpush1.msra.mxu0 %v1376
    %1423 = vmatprep.subr.mxu0 0.0
    %1424 = vmatpush1.msra.mxu0 0.0
    %1425 = vmatprep.subr.mxu0 0.0
    %1426 = vmatpush1.msra.mxu0 0.0
    %1427 = vmatprep.subr.mxu0 0.0
    %1428 = vmatpush1.msra.mxu0 0.0
    %1429 = vmatprep.subr.mxu0 0.0
    %1430 = vmatpush1.msra.mxu0 0.0
    %1431 = vmatprep.subr.mxu0 0.0
    %1432 = vmatpush1.msra.mxu0 0.0
    %1433 = vmatprep.subr.mxu0 0.0
    %1434 = vmatpush1.msra.mxu0 0.0
    %1435 = vmatprep.subr.mxu0 0.0
    %1436 = vmatpush1.msra.mxu0 0.0
    %1437 = vmatprep.subr.mxu0 0.0
    %1438 = vmatpush1.msra.mxu0 0.0
    %1439 = vmatprep.subr.mxu0 0.0
    %1440 = vmatpush1.msra.mxu0 0.0
    %1441 = vmatprep.subr.mxu0 0.0
    %1442 = vmatpush1.msra.mxu0 0.0
    %1443 = vmatprep.subr.mxu0 0.0
    %1444 = vmatpush1.msra.mxu0 0.0
    %1445 = vmatprep.subr.mxu0 0.0
    %1446 = vmatpush1.msra.mxu0 0.0
    %1447 = vmatprep.subr.mxu0 0.0
    %1448 = vmatpush1.msra.mxu0 0.0
    %1449 = vmatprep.subr.mxu0 0.0
    %1450 = vmatpush1.msra.mxu0 0.0
    %1451 = vmatprep.subr.mxu0 0.0
    %1452 = vmatpush1.msra.mxu0 0.0
    %1453 = vmatprep.subr.mxu0 0.0
    %1454 = vmatpush1.msra.mxu0 0.0
    %1455 = vmatprep.subr.mxu0 0.0
    %1456 = vmatpush1.msra.mxu0 0.0
    %1457 = vmatprep.subr.mxu0 0.0
    %1458 = vmatpush1.msra.mxu0 0.0
    %1459 = vmatprep.subr.mxu0 0.0
    %1460 = vmatpush1.msra.mxu0 0.0
    %1461 = vmatprep.subr.mxu0 0.0
    %1462 = vmatpush1.msra.mxu0 0.0
    %1463 = vmatprep.mubr.f32.mxu0 0.0
    %1464 = vmatmul.mubr.f32.gmra.mrb[0].mxu0 %v1379
    %v1465 = vpop.f32.mrb[0].mxu0
    %v1466 = vadd.f32 0.0, %v1465
    %v1467 = vpop.f32.mrb[0].mxu0
    %v1468 = vadd.f32 0.0, %v1467
    %1469 = vmatprep.mubr.f32.mxu0 0.0
    %1470 = vmatmul.mubr.f32.gmra.mrb[0].mxu0 %v1382
    %v1471 = vpop.f32.mrb[0].mxu0
    %v1472 = vadd.f32 0.0, %v1471
    %v1473 = vpop.f32.mrb[0].mxu0
    %v1474 = vadd.f32 0.0, %v1473
    %1475 = vmatprep.mubr.f32.mxu0 0.0
    %1476 = vmatmul.mubr.f32.gmra.mrb[0].mxu0 %v1385
    %v1477 = vpop.f32.mrb[0].mxu0
    %v1478 = vadd.f32 0.0, %v1477
    %v1479 = vpop.f32.mrb[0].mxu0
    %v1480 = vadd.f32 0.0, %v1479
    %1481 = vmatprep.mubr.f32.mxu0 0.0
    %1482 = vmatmul.mubr.f32.gmra.mrb[0].mxu0 %v1388
    %v1483 = vpop.f32.mrb[0].mxu0
    %v1484 = vadd.f32 0.0, %v1483
    %v1485 = vpop.f32.mrb[0].mxu0
    %v1486 = vadd.f32 0.0, %v1485
    %1487 = vmatprep.mubr.f32.mxu0 0.0
    %1488 = vmatmul.mubr.f32.gmra.mrb[0].mxu0 %v1391
    %v1489 = vpop.f32.mrb[0].mxu0
    %v1490 = vadd.f32 0.0, %v1489
    %v1491 = vpop.f32.mrb[0].mxu0
    %v1492 = vadd.f32 0.0, %v1491
    %1493 = vmatprep.mubr.f32.mxu0 0.0
    %1494 = vmatmul.mubr.f32.gmra.mrb[0].mxu0 %v1394
    %v1495 = vpop.f32.mrb[0].mxu0
    %v1496 = vadd.f32 0.0, %v1495
    %v1497 = vpop.f32.mrb[0].mxu0
    %v1498 = vadd.f32 0.0, %v1497
    %1499 = vmatprep.mubr.f32.mxu0 0.0
    %1500 = vmatmul.mubr.f32.gmra.mrb[0].mxu0 %v1397
    %v1501 = vpop.f32.mrb[0].mxu0
    %v1502 = vadd.f32 0.0, %v1501
    %v1503 = vpop.f32.mrb[0].mxu0
    %v1504 = vadd.f32 0.0, %v1503
    %1505 = vdwg.mxu0
    %v1506 = vadd.f32 %v1210, %v1466
    %v1507 = vadd.f32 %v1211, %v1468
    %v1508 = vadd.f32 %v1212, %v1472
    %v1509 = vadd.f32 %v1213, %v1474
    %v1510 = vadd.f32 %v1214, %v1478
    %v1511 = vadd.f32 %v1215, %v1480
    %v1512 = vadd.f32 %v1216, %v1484
    %v1513 = vadd.f32 %v1217, %v1486
    %v1514 = vadd.f32 %v1218, %v1490
    %v1515 = vadd.f32 %v1219, %v1492
    %v1516 = vadd.f32 %v1220, %v1496
    %v1517 = vadd.f32 %v1221, %v1498
    %v1518 = vadd.f32 %v1222, %v1502
    %v1519 = vadd.f32 %v1223, %v1504
    %v1520 = vld [vmem:[%s3] sm:$0x3]
    %v1522 = vlaneseq
    %v1523 = vshrl.u32 %v1522, 7
    %v1524 = vsub.s32 0, %v1523
    %v1525 = vrot.slane %v1520, %v1524
    %v1526 = vlaneseq
    %v1527 = vshrl.u32 %v1526, 7
    %v1528 = vsub.s32 1, %v1527
    %v1529 = vrot.slane %v1520, %v1528
    %v1532 = vadd.f32 %v1506, %v1525
    %v1533 = vadd.f32 %v1507, %v1529
    %v1534 = vadd.f32 %v1508, %v1525
    %v1535 = vadd.f32 %v1509, %v1529
    %v1536 = vadd.f32 %v1510, %v1525
    %v1537 = vadd.f32 %v1511, %v1529
    %v1538 = vadd.f32 %v1512, %v1525
    %v1539 = vadd.f32 %v1513, %v1529
    %v1540 = vadd.f32 %v1514, %v1525
    %v1541 = vadd.f32 %v1515, %v1529
    %v1542 = vadd.f32 %v1516, %v1525
    %v1543 = vadd.f32 %v1517, %v1529
    %v1544 = vadd.f32 %v1518, %v1525
    %v1545 = vadd.f32 %v1519, %v1529
    %v1546 = vmax.f32 %v1532, 0.0
    %v1547 = vmax.f32 %v1533, 0.0
    %v1548 = vmax.f32 %v1534, 0.0
    %v1549 = vmax.f32 %v1535, 0.0
    %v1550 = vmax.f32 %v1536, 0.0
    %v1551 = vmax.f32 %v1537, 0.0
    %v1552 = vmax.f32 %v1538, 0.0
    %v1553 = vmax.f32 %v1539, 0.0
    %v1554 = vmax.f32 %v1540, 0.0
    %v1555 = vmax.f32 %v1541, 0.0
    %v1556 = vmax.f32 %v1542, 0.0
    %v1557 = vmax.f32 %v1543, 0.0
    %v1558 = vmax.f32 %v1544, 0.0
    %v1559 = vmax.f32 %v1545, 0.0
    %v1560 = vld [vmem:[%s7] sm:$0xff]
    %v1561 = vld [vmem:[%s7 + $0x8] sm:$0xff]
    %v1562 = vld [vmem:[%s7 + $0x10] sm:$0xff]
    %v1563 = vld [vmem:[%s7 + $0x18] sm:$0xf]
    %vm1564 = vcmask 457728
    %v1566 = vsel %vm1564, %v1560, 0
    %v1569 = vsel %vm1564, %v1561, 0
    %v1572 = vsel %vm1564, %v1562, 0
    %v1575 = vsel %vm1564, %v1563, 0
    %1577 = vmatprep.subr.mxu0 %v1547
    %1578 = vmatpush1.msra.mxu0 %v1546
    %1579 = vmatprep.subr.mxu0 %v1549
    %1580 = vmatpush1.msra.mxu0 %v1548
    %1581 = vmatprep.subr.mxu0 %v1551
    %1582 = vmatpush1.msra.mxu0 %v1550
    %1583 = vmatprep.subr.mxu0 %v1553
    %1584 = vmatpush1.msra.mxu0 %v1552
    %1585 = vmatprep.subr.mxu0 %v1555
    %1586 = vmatpush1.msra.mxu0 %v1554
    %1587 = vmatprep.subr.mxu0 %v1557
    %1588 = vmatpush1.msra.mxu0 %v1556
    %1589 = vmatprep.subr.mxu0 %v1559
    %1590 = vmatpush1.msra.mxu0 %v1558
    %1591 = vmatprep.subr.mxu0 0.0
    %1592 = vmatpush1.msra.mxu0 0.0
    %1593 = vmatprep.subr.mxu0 0.0
    %1594 = vmatpush1.msra.mxu0 0.0
    %1595 = vmatprep.subr.mxu0 0.0
    %1596 = vmatpush1.msra.mxu0 0.0
    %1597 = vmatprep.subr.mxu0 0.0
    %1598 = vmatpush1.msra.mxu0 0.0
    %1599 = vmatprep.subr.mxu0 0.0
    %1600 = vmatpush1.msra.mxu0 0.0
    %1601 = vmatprep.subr.mxu0 0.0
    %1602 = vmatpush1.msra.mxu0 0.0
    %1603 = vmatprep.subr.mxu0 0.0
    %1604 = vmatpush1.msra.mxu0 0.0
    %1605 = vmatprep.subr.mxu0 0.0
    %1606 = vmatpush1.msra.mxu0 0.0
    %1607 = vmatprep.subr.mxu0 0.0
    %1608 = vmatpush1.msra.mxu0 0.0
    %1609 = vmatprep.subr.mxu0 0.0
    %1610 = vmatpush1.msra.mxu0 0.0
    %1611 = vmatprep.subr.mxu0 0.0
    %1612 = vmatpush1.msra.mxu0 0.0
    %1613 = vmatprep.subr.mxu0 0.0
    %1614 = vmatpush1.msra.mxu0 0.0
    %1615 = vmatprep.subr.mxu0 0.0
    %1616 = vmatpush1.msra.mxu0 0.0
    %1617 = vmatprep.subr.mxu0 0.0
    %1618 = vmatpush1.msra.mxu0 0.0
    %1619 = vmatprep.subr.mxu0 0.0
    %1620 = vmatpush1.msra.mxu0 0.0
    %1621 = vmatprep.subr.mxu0 0.0
    %1622 = vmatpush1.msra.mxu0 0.0
    %1623 = vmatprep.subr.mxu0 0.0
    %1624 = vmatpush1.msra.mxu0 0.0
    %1625 = vmatprep.subr.mxu0 0.0
    %1626 = vmatpush1.msra.mxu0 0.0
    %1627 = vmatprep.subr.mxu0 0.0
    %1628 = vmatpush1.msra.mxu0 0.0
    %1629 = vmatprep.subr.mxu0 0.0
    %1630 = vmatpush1.msra.mxu0 0.0
    %1631 = vmatprep.subr.mxu0 0.0
    %1632 = vmatpush1.msra.mxu0 0.0
    %1633 = vmatprep.subr.mxu0 0.0
    %1634 = vmatpush1.msra.mxu0 0.0
    %1635 = vmatprep.subr.mxu0 0.0
    %1636 = vmatpush1.msra.mxu0 0.0
    %1637 = vmatprep.subr.mxu0 0.0
    %1638 = vmatpush1.msra.mxu0 0.0
    %1639 = vmatprep.subr.mxu0 0.0
    %1640 = vmatpush1.msra.mxu0 0.0
    %1641 = vmatprep.mubr.f32.mxu0 0.0
    %1642 = vmatmul.mubr.f32.gmra.mrb[0].mxu0 %v1566
    %v1643 = vpop.f32.mrb[0].mxu0
    %v1644 = vadd.f32 0.0, %v1643
    %v1645 = vpop.f32.mrb[0].mxu0
    %v1646 = vadd.f32 0.0, %v1645
    %1647 = vmatprep.mubr.f32.mxu0 0.0
    %1648 = vmatmul.mubr.f32.gmra.mrb[0].mxu0 %v1569
    %v1649 = vpop.f32.mrb[0].mxu0
    %v1650 = vadd.f32 0.0, %v1649
    %v1651 = vpop.f32.mrb[0].mxu0
    %v1652 = vadd.f32 0.0, %v1651
    %1653 = vmatprep.mubr.f32.mxu0 0.0
    %1654 = vmatmul.mubr.f32.gmra.mrb[0].mxu0 %v1572
    %v1655 = vpop.f32.mrb[0].mxu0
    %v1656 = vadd.f32 0.0, %v1655
    %v1657 = vpop.f32.mrb[0].mxu0
    %v1658 = vadd.f32 0.0, %v1657
    %1659 = vmatprep.mubr.f32.mxu0 0.0
    %1660 = vmatmul.mubr.f32.gmra.mrb[0].mxu0 %v1575
    %v1661 = vpop.f32.mrb[0].mxu0
    %v1662 = vadd.f32 0.0, %v1661
    %v1663 = vpop.f32.mrb[0].mxu0
    %v1664 = vadd.f32 0.0, %v1663
    %1665 = vdwg.mxu0
    %s1666 = scalar_lea.vmem %s7, 32
    %v1667 = vld [vmem:[%s1666] sm:$0xff]
    %v1668 = vld [vmem:[%s1666 + $0x8] sm:$0xff]
    %v1669 = vld [vmem:[%s1666 + $0x10] sm:$0xff]
    %v1670 = vld [vmem:[%s1666 + $0x18] sm:$0xf]
    %v1672 = vsel %vm1564, %v1667, 0
    %v1675 = vsel %vm1564, %v1668, 0
    %v1678 = vsel %vm1564, %v1669, 0
    %v1681 = vsel %vm1564, %v1670, 0
    %1683 = vmatprep.subr.mxu0 %v1547
    %1684 = vmatpush1.msra.mxu0 %v1546
    %1685 = vmatprep.subr.mxu0 %v1549
    %1686 = vmatpush1.msra.mxu0 %v1548
    %1687 = vmatprep.subr.mxu0 %v1551
    %1688 = vmatpush1.msra.mxu0 %v1550
    %1689 = vmatprep.subr.mxu0 %v1553
    %1690 = vmatpush1.msra.mxu0 %v1552
    %1691 = vmatprep.subr.mxu0 %v1555
    %1692 = vmatpush1.msra.mxu0 %v1554
    %1693 = vmatprep.subr.mxu0 %v1557
    %1694 = vmatpush1.msra.mxu0 %v1556
    %1695 = vmatprep.subr.mxu0 %v1559
    %1696 = vmatpush1.msra.mxu0 %v1558
    %1697 = vmatprep.subr.mxu0 0.0
    %1698 = vmatpush1.msra.mxu0 0.0
    %1699 = vmatprep.subr.mxu0 0.0
    %1700 = vmatpush1.msra.mxu0 0.0
    %1701 = vmatprep.subr.mxu0 0.0
    %1702 = vmatpush1.msra.mxu0 0.0
    %1703 = vmatprep.subr.mxu0 0.0
    %1704 = vmatpush1.msra.mxu0 0.0
    %1705 = vmatprep.subr.mxu0 0.0
    %1706 = vmatpush1.msra.mxu0 0.0
    %1707 = vmatprep.subr.mxu0 0.0
    %1708 = vmatpush1.msra.mxu0 0.0
    %1709 = vmatprep.subr.mxu0 0.0
    %1710 = vmatpush1.msra.mxu0 0.0
    %1711 = vmatprep.subr.mxu0 0.0
    %1712 = vmatpush1.msra.mxu0 0.0
    %1713 = vmatprep.subr.mxu0 0.0
    %1714 = vmatpush1.msra.mxu0 0.0
    %1715 = vmatprep.subr.mxu0 0.0
    %1716 = vmatpush1.msra.mxu0 0.0
    %1717 = vmatprep.subr.mxu0 0.0
    %1718 = vmatpush1.msra.mxu0 0.0
    %1719 = vmatprep.subr.mxu0 0.0
    %1720 = vmatpush1.msra.mxu0 0.0
    %1721 = vmatprep.subr.mxu0 0.0
    %1722 = vmatpush1.msra.mxu0 0.0
    %1723 = vmatprep.subr.mxu0 0.0
    %1724 = vmatpush1.msra.mxu0 0.0
    %1725 = vmatprep.subr.mxu0 0.0
    %1726 = vmatpush1.msra.mxu0 0.0
    %1727 = vmatprep.subr.mxu0 0.0
    %1728 = vmatpush1.msra.mxu0 0.0
    %1729 = vmatprep.subr.mxu0 0.0
    %1730 = vmatpush1.msra.mxu0 0.0
    %1731 = vmatprep.subr.mxu0 0.0
    %1732 = vmatpush1.msra.mxu0 0.0
    %1733 = vmatprep.subr.mxu0 0.0
    %1734 = vmatpush1.msra.mxu0 0.0
    %1735 = vmatprep.subr.mxu0 0.0
    %1736 = vmatpush1.msra.mxu0 0.0
    %1737 = vmatprep.subr.mxu0 0.0
    %1738 = vmatpush1.msra.mxu0 0.0
    %1739 = vmatprep.subr.mxu0 0.0
    %1740 = vmatpush1.msra.mxu0 0.0
    %1741 = vmatprep.subr.mxu0 0.0
    %1742 = vmatpush1.msra.mxu0 0.0
    %1743 = vmatprep.subr.mxu0 0.0
    %1744 = vmatpush1.msra.mxu0 0.0
    %1745 = vmatprep.subr.mxu0 0.0
    %1746 = vmatpush1.msra.mxu0 0.0
    %1747 = vmatprep.mubr.f32.mxu0 0.0
    %1748 = vmatmul.mubr.f32.gmra.mrb[0].mxu0 %v1672
    %v1749 = vpop.f32.mrb[0].mxu0
    %v1750 = vadd.f32 0.0, %v1749
    %v1751 = vpop.f32.mrb[0].mxu0
    %v1752 = vadd.f32 0.0, %v1751
    %1753 = vmatprep.mubr.f32.mxu0 0.0
    %1754 = vmatmul.mubr.f32.gmra.mrb[0].mxu0 %v1675
    %v1755 = vpop.f32.mrb[0].mxu0
    %v1756 = vadd.f32 0.0, %v1755
    %v1757 = vpop.f32.mrb[0].mxu0
    %v1758 = vadd.f32 0.0, %v1757
    %1759 = vmatprep.mubr.f32.mxu0 0.0
    %1760 = vmatmul.mubr.f32.gmra.mrb[0].mxu0 %v1678
    %v1761 = vpop.f32.mrb[0].mxu0
    %v1762 = vadd.f32 0.0, %v1761
    %v1763 = vpop.f32.mrb[0].mxu0
    %v1764 = vadd.f32 0.0, %v1763
    %1765 = vmatprep.mubr.f32.mxu0 0.0
    %1766 = vmatmul.mubr.f32.gmra.mrb[0].mxu0 %v1681
    %v1767 = vpop.f32.mrb[0].mxu0
    %v1768 = vadd.f32 0.0, %v1767
    %v1769 = vpop.f32.mrb[0].mxu0
    %v1770 = vadd.f32 0.0, %v1769
    %1771 = vdwg.mxu0
    %v1772 = vmax.f32 %v1644, %v1750
    %v1773 = vmax.f32 %v1646, %v1752
    %v1774 = vmax.f32 %v1650, %v1756
    %v1775 = vmax.f32 %v1652, %v1758
    %v1776 = vmax.f32 %v1656, %v1762
    %v1777 = vmax.f32 %v1658, %v1764
    %v1778 = vmax.f32 %v1662, %v1768
    %v1779 = vmax.f32 %v1664, %v1770
    %v1780 = vld [vmem:[%s8] sm:$0xff]
    %v1781 = vld [vmem:[%s8 + $0x8] sm:$0xff]
    %v1782 = vld [vmem:[%s8 + $0x10] sm:$0xff]
    %v1783 = vld [vmem:[%s8 + $0x18] sm:$0xff]
    %v1784 = vld [vmem:[%s8 + $0x20] sm:$0xff]
    %v1785 = vld [vmem:[%s8 + $0x28] sm:$0xff]
    %v1786 = vld [vmem:[%s8 + $0x30] sm:$0xff]
    %v1787 = vld [vmem:[%s8 + $0x38] sm:$0xff]
    %v1788 = vld [vmem:[%s8 + $0x40] sm:$0xff]
    %v1789 = vld [vmem:[%s8 + $0x48] sm:$0xff]
    %v1790 = vld [vmem:[%s8 + $0x50] sm:$0xff]
    %v1791 = vld [vmem:[%s8 + $0x58] sm:$0xff]
    %v1792 = vld [vmem:[%s8 + $0x60] sm:$0xff]
    %v1793 = vld [vmem:[%s8 + $0x68] sm:$0xff]
    %v1794 = vld [vmem:[%s8 + $0x70] sm:$0xff]
    %v1795 = vld [vmem:[%s8 + $0x78] sm:$0xff]
    %v1796 = vld [vmem:[%s8 + $0x80] sm:$0xff]
    %v1797 = vld [vmem:[%s8 + $0x88] sm:$0xff]
    %v1798 = vld [vmem:[%s8 + $0x90] sm:$0xff]
    %v1799 = vld [vmem:[%s8 + $0x98] sm:$0xff]
    %v1800 = vld [vmem:[%s8 + $0xa0] sm:$0xff]
    %vm1801 = vcmask 326656
    %v1803 = vsel %vm1801, %v1773, 0
    %v1806 = vsel %vm1801, %v1775, 0
    %v1809 = vsel %vm1801, %v1777, 0
    %v1812 = vsel %vm1801, %v1779, 0
    %1814 = vmatprep.subr.mxu0 0.0
    %1815 = vmatpush1.msra.mxu0 %v1780
    %1816 = vmatprep.subr.mxu0 0.0
    %1817 = vmatpush1.msra.mxu0 %v1781
    %1818 = vmatprep.subr.mxu0 0.0
    %1819 = vmatpush1.msra.mxu0 %v1782
    %1820 = vmatprep.subr.mxu0 0.0
    %1821 = vmatpush1.msra.mxu0 %v1783
    %1822 = vmatprep.subr.mxu0 0.0
    %1823 = vmatpush1.msra.mxu0 %v1784
    %1824 = vmatprep.subr.mxu0 0.0
    %1825 = vmatpush1.msra.mxu0 %v1785
    %1826 = vmatprep.subr.mxu0 0.0
    %1827 = vmatpush1.msra.mxu0 %v1786
    %1828 = vmatprep.subr.mxu0 0.0
    %1829 = vmatpush1.msra.mxu0 %v1787
    %1830 = vmatprep.subr.mxu0 0.0
    %1831 = vmatpush1.msra.mxu0 %v1788
    %1832 = vmatprep.subr.mxu0 0.0
    %1833 = vmatpush1.msra.mxu0 %v1789
    %1834 = vmatprep.subr.mxu0 0.0
    %1835 = vmatpush1.msra.mxu0 %v1790
    %1836 = vmatprep.subr.mxu0 0.0
    %1837 = vmatpush1.msra.mxu0 %v1791
    %1838 = vmatprep.subr.mxu0 0.0
    %1839 = vmatpush1.msra.mxu0 %v1792
    %1840 = vmatprep.subr.mxu0 0.0
    %1841 = vmatpush1.msra.mxu0 %v1793
    %1842 = vmatprep.subr.mxu0 0.0
    %1843 = vmatpush1.msra.mxu0 %v1794
    %1844 = vmatprep.subr.mxu0 0.0
    %1845 = vmatpush1.msra.mxu0 %v1795
    %1846 = vmatprep.subr.mxu0 0.0
    %1847 = vmatpush1.msra.mxu0 %v1796
    %1848 = vmatprep.subr.mxu0 0.0
    %1849 = vmatpush1.msra.mxu0 %v1797
    %1850 = vmatprep.subr.mxu0 0.0
    %1851 = vmatpush1.msra.mxu0 %v1798
    %1852 = vmatprep.subr.mxu0 0.0
    %1853 = vmatpush1.msra.mxu0 %v1799
    %1854 = vmatprep.subr.mxu0 0.0
    %1855 = vmatpush1.msra.mxu0 %v1800
    %1856 = vmatprep.subr.mxu0 0.0
    %1857 = vmatpush1.msra.mxu0 0.0
    %1858 = vmatprep.subr.mxu0 0.0
    %1859 = vmatpush1.msra.mxu0 0.0
    %1860 = vmatprep.subr.mxu0 0.0
    %1861 = vmatpush1.msra.mxu0 0.0
    %1862 = vmatprep.subr.mxu0 0.0
    %1863 = vmatpush1.msra.mxu0 0.0
    %1864 = vmatprep.subr.mxu0 0.0
    %1865 = vmatpush1.msra.mxu0 0.0
    %1866 = vmatprep.subr.mxu0 0.0
    %1867 = vmatpush1.msra.mxu0 0.0
    %1868 = vmatprep.subr.mxu0 0.0
    %1869 = vmatpush1.msra.mxu0 0.0
    %1870 = vmatprep.subr.mxu0 0.0
    %1871 = vmatpush1.msra.mxu0 0.0
    %1872 = vmatprep.subr.mxu0 0.0
    %1873 = vmatpush1.msra.mxu0 0.0
    %1874 = vmatprep.subr.mxu0 0.0
    %1875 = vmatpush1.msra.mxu0 0.0
    %1876 = vmatprep.subr.mxu0 0.0
    %1877 = vmatpush1.msra.mxu0 0.0
    %1878 = vmatprep.mubr.f32.mxu0 %v1803
    %1879 = vmatmul.mubr.f32.gmra.mrb[0].mxu0 %v1772
    %v1880 = vpop.f32.mrb[0].mxu0
    %v1881 = vadd.f32 0.0, %v1880
    %v1882 = vpop.f32.mrb[0].mxu0
    %1883 = vmatprep.mubr.f32.mxu0 %v1806
    %1884 = vmatmul.mubr.f32.gmra.mrb[0].mxu0 %v1774
    %v1885 = vpop.f32.mrb[0].mxu0
    %v1886 = vadd.f32 0.0, %v1885
    %v1887 = vpop.f32.mrb[0].mxu0
    %1888 = vmatprep.mubr.f32.mxu0 %v1809
    %1889 = vmatmul.mubr.f32.gmra.mrb[0].mxu0 %v1776
    %v1890 = vpop.f32.mrb[0].mxu0
    %v1891 = vadd.f32 0.0, %v1890
    %v1892 = vpop.f32.mrb[0].mxu0
    %1893 = vmatprep.mubr.f32.mxu0 %v1812
    %1894 = vmatmul.mubr.f32.gmra.mrb[0].mxu0 %v1778
    %v1895 = vpop.f32.mrb[0].mxu0
    %v1896 = vadd.f32 0.0, %v1895
    %v1897 = vpop.f32.mrb[0].mxu0
    %1898 = vdwg.mxu0
    %s1899 = scalar_lea.vmem %s8, 168
    %v1900 = vld [vmem:[%s1899] sm:$0xff]
    %v1901 = vld [vmem:[%s1899 + $0x8] sm:$0xff]
    %v1902 = vld [vmem:[%s1899 + $0x10] sm:$0xff]
    %v1903 = vld [vmem:[%s1899 + $0x18] sm:$0xff]
    %v1904 = vld [vmem:[%s1899 + $0x20] sm:$0xff]
    %v1905 = vld [vmem:[%s1899 + $0x28] sm:$0xff]
    %v1906 = vld [vmem:[%s1899 + $0x30] sm:$0xff]
    %v1907 = vld [vmem:[%s1899 + $0x38] sm:$0xff]
    %v1908 = vld [vmem:[%s1899 + $0x40] sm:$0xff]
    %v1909 = vld [vmem:[%s1899 + $0x48] sm:$0xff]
    %v1910 = vld [vmem:[%s1899 + $0x50] sm:$0xff]
    %v1911 = vld [vmem:[%s1899 + $0x58] sm:$0xff]
    %v1912 = vld [vmem:[%s1899 + $0x60] sm:$0xff]
    %v1913 = vld [vmem:[%s1899 + $0x68] sm:$0xff]
    %v1914 = vld [vmem:[%s1899 + $0x70] sm:$0xff]
    %v1915 = vld [vmem:[%s1899 + $0x78] sm:$0xff]
    %v1916 = vld [vmem:[%s1899 + $0x80] sm:$0xff]
    %v1917 = vld [vmem:[%s1899 + $0x88] sm:$0xff]
    %v1918 = vld [vmem:[%s1899 + $0x90] sm:$0xff]
    %v1919 = vld [vmem:[%s1899 + $0x98] sm:$0xff]
    %v1920 = vld [vmem:[%s1899 + $0xa0] sm:$0xff]
    %1921 = vmatprep.subr.mxu0 0.0
    %1922 = vmatpush1.msra.mxu0 %v1900
    %1923 = vmatprep.subr.mxu0 0.0
    %1924 = vmatpush1.msra.mxu0 %v1901
    %1925 = vmatprep.subr.mxu0 0.0
    %1926 = vmatpush1.msra.mxu0 %v1902
    %1927 = vmatprep.subr.mxu0 0.0
    %1928 = vmatpush1.msra.mxu0 %v1903
    %1929 = vmatprep.subr.mxu0 0.0
    %1930 = vmatpush1.msra.mxu0 %v1904
    %1931 = vmatprep.subr.mxu0 0.0
    %1932 = vmatpush1.msra.mxu0 %v1905
    %1933 = vmatprep.subr.mxu0 0.0
    %1934 = vmatpush1.msra.mxu0 %v1906
    %1935 = vmatprep.subr.mxu0 0.0
    %1936 = vmatpush1.msra.mxu0 %v1907
    %1937 = vmatprep.subr.mxu0 0.0
    %1938 = vmatpush1.msra.mxu0 %v1908
    %1939 = vmatprep.subr.mxu0 0.0
    %1940 = vmatpush1.msra.mxu0 %v1909
    %1941 = vmatprep.subr.mxu0 0.0
    %1942 = vmatpush1.msra.mxu0 %v1910
    %1943 = vmatprep.subr.mxu0 0.0
    %1944 = vmatpush1.msra.mxu0 %v1911
    %1945 = vmatprep.subr.mxu0 0.0
    %1946 = vmatpush1.msra.mxu0 %v1912
    %1947 = vmatprep.subr.mxu0 0.0
    %1948 = vmatpush1.msra.mxu0 %v1913
    %1949 = vmatprep.subr.mxu0 0.0
    %1950 = vmatpush1.msra.mxu0 %v1914
    %1951 = vmatprep.subr.mxu0 0.0
    %1952 = vmatpush1.msra.mxu0 %v1915
    %1953 = vmatprep.subr.mxu0 0.0
    %1954 = vmatpush1.msra.mxu0 %v1916
    %1955 = vmatprep.subr.mxu0 0.0
    %1956 = vmatpush1.msra.mxu0 %v1917
    %1957 = vmatprep.subr.mxu0 0.0
    %1958 = vmatpush1.msra.mxu0 %v1918
    %1959 = vmatprep.subr.mxu0 0.0
    %1960 = vmatpush1.msra.mxu0 %v1919
    %1961 = vmatprep.subr.mxu0 0.0
    %1962 = vmatpush1.msra.mxu0 %v1920
    %1963 = vmatprep.subr.mxu0 0.0
    %1964 = vmatpush1.msra.mxu0 0.0
    %1965 = vmatprep.subr.mxu0 0.0
    %1966 = vmatpush1.msra.mxu0 0.0
    %1967 = vmatprep.subr.mxu0 0.0
    %1968 = vmatpush1.msra.mxu0 0.0
    %1969 = vmatprep.subr.mxu0 0.0
    %1970 = vmatpush1.msra.mxu0 0.0
    %1971 = vmatprep.subr.mxu0 0.0
    %1972 = vmatpush1.msra.mxu0 0.0
    %1973 = vmatprep.subr.mxu0 0.0
    %1974 = vmatpush1.msra.mxu0 0.0
    %1975 = vmatprep.subr.mxu0 0.0
    %1976 = vmatpush1.msra.mxu0 0.0
    %1977 = vmatprep.subr.mxu0 0.0
    %1978 = vmatpush1.msra.mxu0 0.0
    %1979 = vmatprep.subr.mxu0 0.0
    %1980 = vmatpush1.msra.mxu0 0.0
    %1981 = vmatprep.subr.mxu0 0.0
    %1982 = vmatpush1.msra.mxu0 0.0
    %1983 = vmatprep.subr.mxu0 0.0
    %1984 = vmatpush1.msra.mxu0 0.0
    %1985 = vmatprep.mubr.f32.mxu0 %v1803
    %1986 = vmatmul.mubr.f32.gmra.mrb[0].mxu0 %v1772
    %v1987 = vpop.f32.mrb[0].mxu0
    %v1988 = vadd.f32 0.0, %v1987
    %v1989 = vpop.f32.mrb[0].mxu0
    %1990 = vmatprep.mubr.f32.mxu0 %v1806
    %1991 = vmatmul.mubr.f32.gmra.mrb[0].mxu0 %v1774
    %v1992 = vpop.f32.mrb[0].mxu0
    %v1993 = vadd.f32 0.0, %v1992
    %v1994 = vpop.f32.mrb[0].mxu0
    %1995 = vmatprep.mubr.f32.mxu0 %v1809
    %1996 = vmatmul.mubr.f32.gmra.mrb[0].mxu0 %v1776
    %v1997 = vpop.f32.mrb[0].mxu0
    %v1998 = vadd.f32 0.0, %v1997
    %v1999 = vpop.f32.mrb[0].mxu0
    %2000 = vmatprep.mubr.f32.mxu0 %v1812
    %2001 = vmatmul.mubr.f32.gmra.mrb[0].mxu0 %v1778
    %v2002 = vpop.f32.mrb[0].mxu0
    %v2003 = vadd.f32 0.0, %v2002
    %v2004 = vpop.f32.mrb[0].mxu0
    %2005 = vdwg.mxu0
    %v2006 = vmax.f32 %v1881, %v1988
    %v2007 = vmax.f32 %v1886, %v1993
    %v2008 = vmax.f32 %v1891, %v1998
    %v2009 = vmax.f32 %v1896, %v2003
    %v2010 = vld [vmem:[%s5] sm:$0xff]
    %v2011 = vld [vmem:[%s5 + $0x8] sm:$0xff]
    %v2012 = vld [vmem:[%s5 + $0x10] sm:$0xf]
    %vm2013 = vcmask 228352
    %v2015 = vsel %vm2013, %v2010, 0
    %v2018 = vsel %vm2013, %v2011, 0
    %v2021 = vsel %vm2013, %v2012, 0
    %vm2023 = vcmask 1043456
    %v2025 = vsel %vm2023, %v2009, 0
    %2027 = vmatprep.subr.mxu0 0.0
    %2028 = vmatpush1.msra.mxu0 %v2006
    %2029 = vmatprep.subr.mxu0 0.0
    %2030 = vmatpush1.msra.mxu0 %v2007
    %2031 = vmatprep.subr.mxu0 0.0
    %2032 = vmatpush1.msra.mxu0 %v2008
    %2033 = vmatprep.subr.mxu0 0.0
    %2034 = vmatpush1.msra.mxu0 %v2025
    %2035 = vmatprep.subr.mxu0 0.0
    %2036 = vmatpush1.msra.mxu0 0.0
    %2037 = vmatprep.subr.mxu0 0.0
    %2038 = vmatpush1.msra.mxu0 0.0
    %2039 = vmatprep.subr.mxu0 0.0
    %2040 = vmatpush1.msra.mxu0 0.0
    %2041 = vmatprep.subr.mxu0 0.0
    %2042 = vmatpush1.msra.mxu0 0.0
    %2043 = vmatprep.subr.mxu0 0.0
    %2044 = vmatpush1.msra.mxu0 0.0
    %2045 = vmatprep.subr.mxu0 0.0
    %2046 = vmatpush1.msra.mxu0 0.0
    %2047 = vmatprep.subr.mxu0 0.0
    %2048 = vmatpush1.msra.mxu0 0.0
    %2049 = vmatprep.subr.mxu0 0.0
    %2050 = vmatpush1.msra.mxu0 0.0
    %2051 = vmatprep.subr.mxu0 0.0
    %2052 = vmatpush1.msra.mxu0 0.0
    %2053 = vmatprep.subr.mxu0 0.0
    %2054 = vmatpush1.msra.mxu0 0.0
    %2055 = vmatprep.subr.mxu0 0.0
    %2056 = vmatpush1.msra.mxu0 0.0
    %2057 = vmatprep.subr.mxu0 0.0
    %2058 = vmatpush1.msra.mxu0 0.0
    %2059 = vmatprep.subr.mxu0 0.0
    %2060 = vmatpush1.msra.mxu0 0.0
    %2061 = vmatprep.subr.mxu0 0.0
    %2062 = vmatpush1.msra.mxu0 0.0
    %2063 = vmatprep.subr.mxu0 0.0
    %2064 = vmatpush1.msra.mxu0 0.0
    %2065 = vmatprep.subr.mxu0 0.0
    %2066 = vmatpush1.msra.mxu0 0.0
    %2067 = vmatprep.subr.mxu0 0.0
    %2068 = vmatpush1.msra.mxu0 0.0
    %2069 = vmatprep.subr.mxu0 0.0
    %2070 = vmatpush1.msra.mxu0 0.0
    %2071 = vmatprep.subr.mxu0 0.0
    %2072 = vmatpush1.msra.mxu0 0.0
    %2073 = vmatprep.subr.mxu0 0.0
    %2074 = vmatpush1.msra.mxu0 0.0
    %2075 = vmatprep.subr.mxu0 0.0
    %2076 = vmatpush1.msra.mxu0 0.0
    %2077 = vmatprep.subr.mxu0 0.0
    %2078 = vmatpush1.msra.mxu0 0.0
    %2079 = vmatprep.subr.mxu0 0.0
    %2080 = vmatpush1.msra.mxu0 0.0
    %2081 = vmatprep.subr.mxu0 0.0
    %2082 = vmatpush1.msra.mxu0 0.0
    %2083 = vmatprep.subr.mxu0 0.0
    %2084 = vmatpush1.msra.mxu0 0.0
    %2085 = vmatprep.subr.mxu0 0.0
    %2086 = vmatpush1.msra.mxu0 0.0
    %2087 = vmatprep.subr.mxu0 0.0
    %2088 = vmatpush1.msra.mxu0 0.0
    %2089 = vmatprep.subr.mxu0 0.0
    %2090 = vmatpush1.msra.mxu0 0.0
    %2091 = vmatprep.mubr.f32.mxu0 0.0
    %2092 = vmatmul.mubr.f32.gmra.mrb[0].mxu0 %v2015
    %v2093 = vpop.f32.mrb[0].mxu0
    %v2094 = vadd.f32 0.0, %v2093
    %v2095 = vpop.f32.mrb[0].mxu0
    %2096 = vmatprep.mubr.f32.mxu0 0.0
    %2097 = vmatmul.mubr.f32.gmra.mrb[0].mxu0 %v2018
    %v2098 = vpop.f32.mrb[0].mxu0
    %v2099 = vadd.f32 0.0, %v2098
    %v2100 = vpop.f32.mrb[0].mxu0
    %2101 = vmatprep.mubr.f32.mxu0 0.0
    %2102 = vmatmul.mubr.f32.gmra.mrb[0].mxu0 %v2021
    %v2103 = vpop.f32.mrb[0].mxu0
    %v2104 = vadd.f32 0.0, %v2103
    %v2105 = vpop.f32.mrb[0].mxu0
    %2106 = vdwg.mxu0
    %v2107 = vld [vmem:[%s4] sm:$0xff]
    %v2108 = vld [vmem:[%s4 + $0x8] sm:$0xff]
    %v2109 = vld [vmem:[%s4 + $0x10] sm:$0xff]
    %v2110 = vld [vmem:[%s4 + $0x18] sm:$0xff]
    %v2111 = vld [vmem:[%s4 + $0x20] sm:$0xff]
    %v2112 = vld [vmem:[%s4 + $0x28] sm:$0xff]
    %v2113 = vld [vmem:[%s4 + $0x30] sm:$0xff]
    %v2114 = vld [vmem:[%s4 + $0x38] sm:$0xff]
    %v2115 = vld [vmem:[%s4 + $0x40] sm:$0xff]
    %v2116 = vld [vmem:[%s4 + $0x48] sm:$0xff]
    %v2117 = vld [vmem:[%s4 + $0x50] sm:$0xff]
    %v2118 = vld [vmem:[%s4 + $0x58] sm:$0xff]
    %v2119 = vld [vmem:[%s4 + $0x60] sm:$0xff]
    %v2120 = vld [vmem:[%s4 + $0x68] sm:$0xff]
    %v2121 = vld [vmem:[%s4 + $0x70] sm:$0xff]
    %v2122 = vld [vmem:[%s4 + $0x78] sm:$0xff]
    %v2123 = vld [vmem:[%s4 + $0x80] sm:$0xff]
    %v2124 = vld [vmem:[%s4 + $0x88] sm:$0xff]
    %v2125 = vld [vmem:[%s4 + $0x90] sm:$0xff]
    %v2126 = vld [vmem:[%s4 + $0x98] sm:$0xff]
    %v2127 = vld [vmem:[%s4 + $0xa0] sm:$0xf]
    %v2128 = vld [vmem:[%s4 + $0xa8] sm:$0xf]
    %s2129 = scalar_lea.vmem %s5, 24
    %v2130 = vld [vmem:[%s2129] sm:$0xff]
    %v2131 = vld [vmem:[%s2129 + $0x8] sm:$0xff]
    %v2132 = vld [vmem:[%s2129 + $0x10] sm:$0xf]
    %v2134 = vsel %vm2013, %v2130, 0
    %v2137 = vsel %vm2013, %v2131, 0
    %v2140 = vsel %vm2013, %v2132, 0
    %2142 = vmatprep.subr.mxu0 0.0
    %2143 = vmatpush1.msra.mxu0 %v2006
    %2144 = vmatprep.subr.mxu0 0.0
    %2145 = vmatpush1.msra.mxu0 %v2007
    %2146 = vmatprep.subr.mxu0 0.0
    %2147 = vmatpush1.msra.mxu0 %v2008
    %2148 = vmatprep.subr.mxu0 0.0
    %2149 = vmatpush1.msra.mxu0 %v2025
    %2150 = vmatprep.subr.mxu0 0.0
    %2151 = vmatpush1.msra.mxu0 0.0
    %2152 = vmatprep.subr.mxu0 0.0
    %2153 = vmatpush1.msra.mxu0 0.0
    %2154 = vmatprep.subr.mxu0 0.0
    %2155 = vmatpush1.msra.mxu0 0.0
    %2156 = vmatprep.subr.mxu0 0.0
    %2157 = vmatpush1.msra.mxu0 0.0
    %2158 = vmatprep.subr.mxu0 0.0
    %2159 = vmatpush1.msra.mxu0 0.0
    %2160 = vmatprep.subr.mxu0 0.0
    %2161 = vmatpush1.msra.mxu0 0.0
    %2162 = vmatprep.subr.mxu0 0.0
    %2163 = vmatpush1.msra.mxu0 0.0
    %2164 = vmatprep.subr.mxu0 0.0
    %2165 = vmatpush1.msra.mxu0 0.0
    %2166 = vmatprep.subr.mxu0 0.0
    %2167 = vmatpush1.msra.mxu0 0.0
    %2168 = vmatprep.subr.mxu0 0.0
    %2169 = vmatpush1.msra.mxu0 0.0
    %2170 = vmatprep.subr.mxu0 0.0
    %2171 = vmatpush1.msra.mxu0 0.0
    %2172 = vmatprep.subr.mxu0 0.0
    %2173 = vmatpush1.msra.mxu0 0.0
    %2174 = vmatprep.subr.mxu0 0.0
    %2175 = vmatpush1.msra.mxu0 0.0
    %2176 = vmatprep.subr.mxu0 0.0
    %2177 = vmatpush1.msra.mxu0 0.0
    %2178 = vmatprep.subr.mxu0 0.0
    %2179 = vmatpush1.msra.mxu0 0.0
    %2180 = vmatprep.subr.mxu0 0.0
    %2181 = vmatpush1.msra.mxu0 0.0
    %2182 = vmatprep.subr.mxu0 0.0
    %2183 = vmatpush1.msra.mxu0 0.0
    %2184 = vmatprep.subr.mxu0 0.0
    %2185 = vmatpush1.msra.mxu0 0.0
    %2186 = vmatprep.subr.mxu0 0.0
    %2187 = vmatpush1.msra.mxu0 0.0
    %2188 = vmatprep.subr.mxu0 0.0
    %2189 = vmatpush1.msra.mxu0 0.0
    %2190 = vmatprep.subr.mxu0 0.0
    %2191 = vmatpush1.msra.mxu0 0.0
    %2192 = vmatprep.subr.mxu0 0.0
    %2193 = vmatpush1.msra.mxu0 0.0
    %2194 = vmatprep.subr.mxu0 0.0
    %2195 = vmatpush1.msra.mxu0 0.0
    %2196 = vmatprep.subr.mxu0 0.0
    %2197 = vmatpush1.msra.mxu0 0.0
    %2198 = vmatprep.subr.mxu0 0.0
    %2199 = vmatpush1.msra.mxu0 0.0
    %2200 = vmatprep.subr.mxu0 0.0
    %2201 = vmatpush1.msra.mxu0 0.0
    %2202 = vmatprep.subr.mxu0 0.0
    %2203 = vmatpush1.msra.mxu0 0.0
    %2204 = vmatprep.subr.mxu0 0.0
    %2205 = vmatpush1.msra.mxu0 0.0
    %2206 = vmatprep.mubr.f32.mxu0 0.0
    %2207 = vmatmul.mubr.f32.gmra.mrb[0].mxu0 %v2134
    %v2208 = vpop.f32.mrb[0].mxu0
    %v2209 = vadd.f32 0.0, %v2208
    %v2210 = vpop.f32.mrb[0].mxu0
    %2211 = vmatprep.mubr.f32.mxu0 0.0
    %2212 = vmatmul.mubr.f32.gmra.mrb[0].mxu0 %v2137
    %v2213 = vpop.f32.mrb[0].mxu0
    %v2214 = vadd.f32 0.0, %v2213
    %v2215 = vpop.f32.mrb[0].mxu0
    %2216 = vmatprep.mubr.f32.mxu0 0.0
    %2217 = vmatmul.mubr.f32.gmra.mrb[0].mxu0 %v2140
    %v2218 = vpop.f32.mrb[0].mxu0
    %v2219 = vadd.f32 0.0, %v2218
    %v2220 = vpop.f32.mrb[0].mxu0
    %2221 = vdwg.mxu0
    %s2222 = scalar_lea.vmem %s4, 176
    %v2223 = vld [vmem:[%s2222] sm:$0xff]
    %v2224 = vld [vmem:[%s2222 + $0x8] sm:$0xff]
    %v2225 = vld [vmem:[%s2222 + $0x10] sm:$0xff]
    %v2226 = vld [vmem:[%s2222 + $0x18] sm:$0xff]
    %v2227 = vld [vmem:[%s2222 + $0x20] sm:$0xff]
    %v2228 = vld [vmem:[%s2222 + $0x28] sm:$0xff]
    %v2229 = vld [vmem:[%s2222 + $0x30] sm:$0xff]
    %v2230 = vld [vmem:[%s2222 + $0x38] sm:$0xff]
    %v2231 = vld [vmem:[%s2222 + $0x40] sm:$0xff]
    %v2232 = vld [vmem:[%s2222 + $0x48] sm:$0xff]
    %v2233 = vld [vmem:[%s2222 + $0x50] sm:$0xff]
    %v2234 = vld [vmem:[%s2222 + $0x58] sm:$0xff]
    %v2235 = vld [vmem:[%s2222 + $0x60] sm:$0xff]
    %v2236 = vld [vmem:[%s2222 + $0x68] sm:$0xff]
    %v2237 = vld [vmem:[%s2222 + $0x70] sm:$0xff]
    %v2238 = vld [vmem:[%s2222 + $0x78] sm:$0xff]
    %v2239 = vld [vmem:[%s2222 + $0x80] sm:$0xff]
    %v2240 = vld [vmem:[%s2222 + $0x88] sm:$0xff]
    %v2241 = vld [vmem:[%s2222 + $0x90] sm:$0xff]
    %v2242 = vld [vmem:[%s2222 + $0x98] sm:$0xff]
    %v2243 = vld [vmem:[%s2222 + $0xa0] sm:$0xf]
    %v2244 = vld [vmem:[%s2222 + $0xa8] sm:$0xf]
    %vm2245 = vcmask 687104
    %v2247 = vsel %vm2245, %v2209, 0
    %v2250 = vsel %vm2245, %v2214, 0
    %v2253 = vsel %vm2245, %v2219, 0
    %v2256 = vsel %vm2023, %v2243, 0
    %v2259 = vsel %vm2023, %v2244, 0
    %2261 = vmatprep.subr.mxu0 %v2224
    %2262 = vmatpush1.msra.mxu0 %v2223
    %2263 = vmatprep.subr.mxu0 %v2226
    %2264 = vmatpush1.msra.mxu0 %v2225
    %2265 = vmatprep.subr.mxu0 %v2228
    %2266 = vmatpush1.msra.mxu0 %v2227
    %2267 = vmatprep.subr.mxu0 %v2230
    %2268 = vmatpush1.msra.mxu0 %v2229
    %2269 = vmatprep.subr.mxu0 %v2232
    %2270 = vmatpush1.msra.mxu0 %v2231
    %2271 = vmatprep.subr.mxu0 %v2234
    %2272 = vmatpush1.msra.mxu0 %v2233
    %2273 = vmatprep.subr.mxu0 %v2236
    %2274 = vmatpush1.msra.mxu0 %v2235
    %2275 = vmatprep.subr.mxu0 %v2238
    %2276 = vmatpush1.msra.mxu0 %v2237
    %2277 = vmatprep.subr.mxu0 %v2240
    %2278 = vmatpush1.msra.mxu0 %v2239
    %2279 = vmatprep.subr.mxu0 %v2242
    %2280 = vmatpush1.msra.mxu0 %v2241
    %2281 = vmatprep.subr.mxu0 %v2259
    %2282 = vmatpush1.msra.mxu0 %v2256
    %2283 = vmatprep.subr.mxu0 0.0
    %2284 = vmatpush1.msra.mxu0 0.0
    %2285 = vmatprep.subr.mxu0 0.0
    %2286 = vmatpush1.msra.mxu0 0.0
    %2287 = vmatprep.subr.mxu0 0.0
    %2288 = vmatpush1.msra.mxu0 0.0
    %2289 = vmatprep.subr.mxu0 0.0
    %2290 = vmatpush1.msra.mxu0 0.0
    %2291 = vmatprep.subr.mxu0 0.0
    %2292 = vmatpush1.msra.mxu0 0.0
    %2293 = vmatprep.subr.mxu0 0.0
    %2294 = vmatpush1.msra.mxu0 0.0
    %2295 = vmatprep.subr.mxu0 0.0
    %2296 = vmatpush1.msra.mxu0 0.0
    %2297 = vmatprep.subr.mxu0 0.0
    %2298 = vmatpush1.msra.mxu0 0.0
    %2299 = vmatprep.subr.mxu0 0.0
    %2300 = vmatpush1.msra.mxu0 0.0
    %2301 = vmatprep.subr.mxu0 0.0
    %2302 = vmatpush1.msra.mxu0 0.0
    %2303 = vmatprep.subr.mxu0 0.0
    %2304 = vmatpush1.msra.mxu0 0.0
    %2305 = vmatprep.subr.mxu0 0.0
    %2306 = vmatpush1.msra.mxu0 0.0
    %2307 = vmatprep.subr.mxu0 0.0
    %2308 = vmatpush1.msra.mxu0 0.0
    %2309 = vmatprep.subr.mxu0 0.0
    %2310 = vmatpush1.msra.mxu0 0.0
    %2311 = vmatprep.subr.mxu0 0.0
    %2312 = vmatpush1.msra.mxu0 0.0
    %2313 = vmatprep.subr.mxu0 0.0
    %2314 = vmatpush1.msra.mxu0 0.0
    %2315 = vmatprep.subr.mxu0 0.0
    %2316 = vmatpush1.msra.mxu0 0.0
    %2317 = vmatprep.subr.mxu0 0.0
    %2318 = vmatpush1.msra.mxu0 0.0
    %2319 = vmatprep.subr.mxu0 0.0
    %2320 = vmatpush1.msra.mxu0 0.0
    %2321 = vmatprep.subr.mxu0 0.0
    %2322 = vmatpush1.msra.mxu0 0.0
    %2323 = vmatprep.subr.mxu0 0.0
    %2324 = vmatpush1.msra.mxu0 0.0
    %2325 = vmatprep.mubr.f32.mxu0 0.0
    %2326 = vmatmul.mubr.f32.gmra.mrb[0].mxu0 %v2247
    %v2327 = vpop.f32.mrb[0].mxu0
    %v2328 = vadd.f32 0.0, %v2327
    %v2329 = vpop.f32.mrb[0].mxu0
    %v2330 = vadd.f32 0.0, %v2329
    %2331 = vmatprep.mubr.f32.mxu0 0.0
    %2332 = vmatmul.mubr.f32.gmra.mrb[0].mxu0 %v2250
    %v2333 = vpop.f32.mrb[0].mxu0
    %v2334 = vadd.f32 0.0, %v2333
    %v2335 = vpop.f32.mrb[0].mxu0
    %v2336 = vadd.f32 0.0, %v2335
    %2337 = vmatprep.mubr.f32.mxu0 0.0
    %2338 = vmatmul.mubr.f32.gmra.mrb[0].mxu0 %v2253
    %v2339 = vpop.f32.mrb[0].mxu0
    %v2340 = vadd.f32 0.0, %v2339
    %v2341 = vpop.f32.mrb[0].mxu0
    %v2342 = vadd.f32 0.0, %v2341
    %2343 = vdwg.mxu0
    %v2345 = vsel %vm2245, %v2094, 0
    %v2348 = vsel %vm2245, %v2099, 0
    %v2351 = vsel %vm2245, %v2104, 0
    %v2354 = vsel %vm2023, %v2127, 0
    %v2357 = vsel %vm2023, %v2128, 0
    %2359 = vmatprep.subr.mxu0 %v2108
    %2360 = vmatpush1.msra.mxu0 %v2107
    %2361 = vmatprep.subr.mxu0 %v2110
    %2362 = vmatpush1.msra.mxu0 %v2109
    %2363 = vmatprep.subr.mxu0 %v2112
    %2364 = vmatpush1.msra.mxu0 %v2111
    %2365 = vmatprep.subr.mxu0 %v2114
    %2366 = vmatpush1.msra.mxu0 %v2113
    %2367 = vmatprep.subr.mxu0 %v2116
    %2368 = vmatpush1.msra.mxu0 %v2115
    %2369 = vmatprep.subr.mxu0 %v2118
    %2370 = vmatpush1.msra.mxu0 %v2117
    %2371 = vmatprep.subr.mxu0 %v2120
    %2372 = vmatpush1.msra.mxu0 %v2119
    %2373 = vmatprep.subr.mxu0 %v2122
    %2374 = vmatpush1.msra.mxu0 %v2121
    %2375 = vmatprep.subr.mxu0 %v2124
    %2376 = vmatpush1.msra.mxu0 %v2123
    %2377 = vmatprep.subr.mxu0 %v2126
    %2378 = vmatpush1.msra.mxu0 %v2125
    %2379 = vmatprep.subr.mxu0 %v2357
    %2380 = vmatpush1.msra.mxu0 %v2354
    %2381 = vmatprep.subr.mxu0 0.0
    %2382 = vmatpush1.msra.mxu0 0.0
    %2383 = vmatprep.subr.mxu0 0.0
    %2384 = vmatpush1.msra.mxu0 0.0
    %2385 = vmatprep.subr.mxu0 0.0
    %2386 = vmatpush1.msra.mxu0 0.0
    %2387 = vmatprep.subr.mxu0 0.0
    %2388 = vmatpush1.msra.mxu0 0.0
    %2389 = vmatprep.subr.mxu0 0.0
    %2390 = vmatpush1.msra.mxu0 0.0
    %2391 = vmatprep.subr.mxu0 0.0
    %2392 = vmatpush1.msra.mxu0 0.0
    %2393 = vmatprep.subr.mxu0 0.0
    %2394 = vmatpush1.msra.mxu0 0.0
    %2395 = vmatprep.subr.mxu0 0.0
    %2396 = vmatpush1.msra.mxu0 0.0
    %2397 = vmatprep.subr.mxu0 0.0
    %2398 = vmatpush1.msra.mxu0 0.0
    %2399 = vmatprep.subr.mxu0 0.0
    %2400 = vmatpush1.msra.mxu0 0.0
    %2401 = vmatprep.subr.mxu0 0.0
    %2402 = vmatpush1.msra.mxu0 0.0
    %2403 = vmatprep.subr.mxu0 0.0
    %2404 = vmatpush1.msra.mxu0 0.0
    %2405 = vmatprep.subr.mxu0 0.0
    %2406 = vmatpush1.msra.mxu0 0.0
    %2407 = vmatprep.subr.mxu0 0.0
    %2408 = vmatpush1.msra.mxu0 0.0
    %2409 = vmatprep.subr.mxu0 0.0
    %2410 = vmatpush1.msra.mxu0 0.0
    %2411 = vmatprep.subr.mxu0 0.0
    %2412 = vmatpush1.msra.mxu0 0.0
    %2413 = vmatprep.subr.mxu0 0.0
    %2414 = vmatpush1.msra.mxu0 0.0
    %2415 = vmatprep.subr.mxu0 0.0
    %2416 = vmatpush1.msra.mxu0 0.0
    %2417 = vmatprep.subr.mxu0 0.0
    %2418 = vmatpush1.msra.mxu0 0.0
    %2419 = vmatprep.subr.mxu0 0.0
    %2420 = vmatpush1.msra.mxu0 0.0
    %2421 = vmatprep.subr.mxu0 0.0
    %2422 = vmatpush1.msra.mxu0 0.0
    %2423 = vmatprep.mubr.f32.mxu0 0.0
    %2424 = vmatmul.mubr.f32.gmra.mrb[0].mxu0 %v2345
    %v2425 = vpop.f32.mrb[0].mxu0
    %v2426 = vadd.f32 %v2328, %v2425
    %v2427 = vpop.f32.mrb[0].mxu0
    %v2428 = vadd.f32 %v2330, %v2427
    %2429 = vmatprep.mubr.f32.mxu0 0.0
    %2430 = vmatmul.mubr.f32.gmra.mrb[0].mxu0 %v2348
    %v2431 = vpop.f32.mrb[0].mxu0
    %v2432 = vadd.f32 %v2334, %v2431
    %v2433 = vpop.f32.mrb[0].mxu0
    %v2434 = vadd.f32 %v2336, %v2433
    %2435 = vmatprep.mubr.f32.mxu0 0.0
    %2436 = vmatmul.mubr.f32.gmra.mrb[0].mxu0 %v2351
    %v2437 = vpop.f32.mrb[0].mxu0
    %v2438 = vadd.f32 %v2340, %v2437
    %v2439 = vpop.f32.mrb[0].mxu0
    %v2440 = vadd.f32 %v2342, %v2439
    %2441 = vdwg.mxu0
    %s2442 = scalar_lea.vmem %s5, 48
    %v2443 = vld [vmem:[%s2442] sm:$0xff]
    %v2444 = vld [vmem:[%s2442 + $0x8] sm:$0xff]
    %v2445 = vld [vmem:[%s2442 + $0x10] sm:$0xf]
    %v2447 = vsel %vm2013, %v2443, 0
    %v2450 = vsel %vm2013, %v2444, 0
    %v2453 = vsel %vm2013, %v2445, 0
    %2455 = vmatprep.subr.mxu0 0.0
    %2456 = vmatpush1.msra.mxu0 %v2006
    %2457 = vmatprep.subr.mxu0 0.0
    %2458 = vmatpush1.msra.mxu0 %v2007
    %2459 = vmatprep.subr.mxu0 0.0
    %2460 = vmatpush1.msra.mxu0 %v2008
    %2461 = vmatprep.subr.mxu0 0.0
    %2462 = vmatpush1.msra.mxu0 %v2025
    %2463 = vmatprep.subr.mxu0 0.0
    %2464 = vmatpush1.msra.mxu0 0.0
    %2465 = vmatprep.subr.mxu0 0.0
    %2466 = vmatpush1.msra.mxu0 0.0
    %2467 = vmatprep.subr.mxu0 0.0
    %2468 = vmatpush1.msra.mxu0 0.0
    %2469 = vmatprep.subr.mxu0 0.0
    %2470 = vmatpush1.msra.mxu0 0.0
    %2471 = vmatprep.subr.mxu0 0.0
    %2472 = vmatpush1.msra.mxu0 0.0
    %2473 = vmatprep.subr.mxu0 0.0
    %2474 = vmatpush1.msra.mxu0 0.0
    %2475 = vmatprep.subr.mxu0 0.0
    %2476 = vmatpush1.msra.mxu0 0.0
    %2477 = vmatprep.subr.mxu0 0.0
    %2478 = vmatpush1.msra.mxu0 0.0
    %2479 = vmatprep.subr.mxu0 0.0
    %2480 = vmatpush1.msra.mxu0 0.0
    %2481 = vmatprep.subr.mxu0 0.0
    %2482 = vmatpush1.msra.mxu0 0.0
    %2483 = vmatprep.subr.mxu0 0.0
    %2484 = vmatpush1.msra.mxu0 0.0
    %2485 = vmatprep.subr.mxu0 0.0
    %2486 = vmatpush1.msra.mxu0 0.0
    %2487 = vmatprep.subr.mxu0 0.0
    %2488 = vmatpush1.msra.mxu0 0.0
    %2489 = vmatprep.subr.mxu0 0.0
    %2490 = vmatpush1.msra.mxu0 0.0
    %2491 = vmatprep.subr.mxu0 0.0
    %2492 = vmatpush1.msra.mxu0 0.0
    %2493 = vmatprep.subr.mxu0 0.0
    %2494 = vmatpush1.msra.mxu0 0.0
    %2495 = vmatprep.subr.mxu0 0.0
    %2496 = vmatpush1.msra.mxu0 0.0
    %2497 = vmatprep.subr.mxu0 0.0
    %2498 = vmatpush1.msra.mxu0 0.0
    %2499 = vmatprep.subr.mxu0 0.0
    %2500 = vmatpush1.msra.mxu0 0.0
    %2501 = vmatprep.subr.mxu0 0.0
    %2502 = vmatpush1.msra.mxu0 0.0
    %2503 = vmatprep.subr.mxu0 0.0
    %2504 = vmatpush1.msra.mxu0 0.0
    %2505 = vmatprep.subr.mxu0 0.0
    %2506 = vmatpush1.msra.mxu0 0.0
    %2507 = vmatprep.subr.mxu0 0.0
    %2508 = vmatpush1.msra.mxu0 0.0
    %2509 = vmatprep.subr.mxu0 0.0
    %2510 = vmatpush1.msra.mxu0 0.0
    %2511 = vmatprep.subr.mxu0 0.0
    %2512 = vmatpush1.msra.mxu0 0.0
    %2513 = vmatprep.subr.mxu0 0.0
    %2514 = vmatpush1.msra.mxu0 0.0
    %2515 = vmatprep.subr.mxu0 0.0
    %2516 = vmatpush1.msra.mxu0 0.0
    %2517 = vmatprep.subr.mxu0 0.0
    %2518 = vmatpush1.msra.mxu0 0.0
    %2519 = vmatprep.mubr.f32.mxu0 0.0
    %2520 = vmatmul.mubr.f32.gmra.mrb[0].mxu0 %v2447
    %v2521 = vpop.f32.mrb[0].mxu0
    %v2522 = vadd.f32 0.0, %v2521
    %v2523 = vpop.f32.mrb[0].mxu0
    %2524 = vmatprep.mubr.f32.mxu0 0.0
    %2525 = vmatmul.mubr.f32.gmra.mrb[0].mxu0 %v2450
    %v2526 = vpop.f32.mrb[0].mxu0
    %v2527 = vadd.f32 0.0, %v2526
    %v2528 = vpop.f32.mrb[0].mxu0
    %2529 = vmatprep.mubr.f32.mxu0 0.0
    %2530 = vmatmul.mubr.f32.gmra.mrb[0].mxu0 %v2453
    %v2531 = vpop.f32.mrb[0].mxu0
    %v2532 = vadd.f32 0.0, %v2531
    %v2533 = vpop.f32.mrb[0].mxu0
    %2534 = vdwg.mxu0
    %s2535 = scalar_lea.vmem %s4, 352
    %v2536 = vld [vmem:[%s2535] sm:$0xff]
    %v2537 = vld [vmem:[%s2535 + $0x8] sm:$0xff]
    %v2538 = vld [vmem:[%s2535 + $0x10] sm:$0xff]
    %v2539 = vld [vmem:[%s2535 + $0x18] sm:$0xff]
    %v2540 = vld [vmem:[%s2535 + $0x20] sm:$0xff]
    %v2541 = vld [vmem:[%s2535 + $0x28] sm:$0xff]
    %v2542 = vld [vmem:[%s2535 + $0x30] sm:$0xff]
    %v2543 = vld [vmem:[%s2535 + $0x38] sm:$0xff]
    %v2544 = vld [vmem:[%s2535 + $0x40] sm:$0xff]
    %v2545 = vld [vmem:[%s2535 + $0x48] sm:$0xff]
    %v2546 = vld [vmem:[%s2535 + $0x50] sm:$0xff]
    %v2547 = vld [vmem:[%s2535 + $0x58] sm:$0xff]
    %v2548 = vld [vmem:[%s2535 + $0x60] sm:$0xff]
    %v2549 = vld [vmem:[%s2535 + $0x68] sm:$0xff]
    %v2550 = vld [vmem:[%s2535 + $0x70] sm:$0xff]
    %v2551 = vld [vmem:[%s2535 + $0x78] sm:$0xff]
    %v2552 = vld [vmem:[%s2535 + $0x80] sm:$0xff]
    %v2553 = vld [vmem:[%s2535 + $0x88] sm:$0xff]
    %v2554 = vld [vmem:[%s2535 + $0x90] sm:$0xff]
    %v2555 = vld [vmem:[%s2535 + $0x98] sm:$0xff]
    %v2556 = vld [vmem:[%s2535 + $0xa0] sm:$0xf]
    %v2557 = vld [vmem:[%s2535 + $0xa8] sm:$0xf]
    %v2559 = vsel %vm2245, %v2522, 0
    %v2562 = vsel %vm2245, %v2527, 0
    %v2565 = vsel %vm2245, %v2532, 0
    %v2568 = vsel %vm2023, %v2556, 0
    %v2571 = vsel %vm2023, %v2557, 0
    %2573 = vmatprep.subr.mxu0 %v2537
    %2574 = vmatpush1.msra.mxu0 %v2536
    %2575 = vmatprep.subr.mxu0 %v2539
    %2576 = vmatpush1.msra.mxu0 %v2538
    %2577 = vmatprep.subr.mxu0 %v2541
    %2578 = vmatpush1.msra.mxu0 %v2540
    %2579 = vmatprep.subr.mxu0 %v2543
    %2580 = vmatpush1.msra.mxu0 %v2542
    %2581 = vmatprep.subr.mxu0 %v2545
    %2582 = vmatpush1.msra.mxu0 %v2544
    %2583 = vmatprep.subr.mxu0 %v2547
    %2584 = vmatpush1.msra.mxu0 %v2546
    %2585 = vmatprep.subr.mxu0 %v2549
    %2586 = vmatpush1.msra.mxu0 %v2548
    %2587 = vmatprep.subr.mxu0 %v2551
    %2588 = vmatpush1.msra.mxu0 %v2550
    %2589 = vmatprep.subr.mxu0 %v2553
    %2590 = vmatpush1.msra.mxu0 %v2552
    %2591 = vmatprep.subr.mxu0 %v2555
    %2592 = vmatpush1.msra.mxu0 %v2554
    %2593 = vmatprep.subr.mxu0 %v2571
    %2594 = vmatpush1.msra.mxu0 %v2568
    %2595 = vmatprep.subr.mxu0 0.0
    %2596 = vmatpush1.msra.mxu0 0.0
    %2597 = vmatprep.subr.mxu0 0.0
    %2598 = vmatpush1.msra.mxu0 0.0
    %2599 = vmatprep.subr.mxu0 0.0
    %2600 = vmatpush1.msra.mxu0 0.0
    %2601 = vmatprep.subr.mxu0 0.0
    %2602 = vmatpush1.msra.mxu0 0.0
    %2603 = vmatprep.subr.mxu0 0.0
    %2604 = vmatpush1.msra.mxu0 0.0
    %2605 = vmatprep.subr.mxu0 0.0
    %2606 = vmatpush1.msra.mxu0 0.0
    %2607 = vmatprep.subr.mxu0 0.0
    %2608 = vmatpush1.msra.mxu0 0.0
    %2609 = vmatprep.subr.mxu0 0.0
    %2610 = vmatpush1.msra.mxu0 0.0
    %2611 = vmatprep.subr.mxu0 0.0
    %2612 = vmatpush1.msra.mxu0 0.0
    %2613 = vmatprep.subr.mxu0 0.0
    %2614 = vmatpush1.msra.mxu0 0.0
    %2615 = vmatprep.subr.mxu0 0.0
    %2616 = vmatpush1.msra.mxu0 0.0
    %2617 = vmatprep.subr.mxu0 0.0
    %2618 = vmatpush1.msra.mxu0 0.0
    %2619 = vmatprep.subr.mxu0 0.0
    %2620 = vmatpush1.msra.mxu0 0.0
    %2621 = vmatprep.subr.mxu0 0.0
    %2622 = vmatpush1.msra.mxu0 0.0
    %2623 = vmatprep.subr.mxu0 0.0
    %2624 = vmatpush1.msra.mxu0 0.0
    %2625 = vmatprep.subr.mxu0 0.0
    %2626 = vmatpush1.msra.mxu0 0.0
    %2627 = vmatprep.subr.mxu0 0.0
    %2628 = vmatpush1.msra.mxu0 0.0
    %2629 = vmatprep.subr.mxu0 0.0
    %2630 = vmatpush1.msra.mxu0 0.0
    %2631 = vmatprep.subr.mxu0 0.0
    %2632 = vmatpush1.msra.mxu0 0.0
    %2633 = vmatprep.subr.mxu0 0.0
    %2634 = vmatpush1.msra.mxu0 0.0
    %2635 = vmatprep.subr.mxu0 0.0
    %2636 = vmatpush1.msra.mxu0 0.0
    %2637 = vmatprep.mubr.f32.mxu0 0.0
    %2638 = vmatmul.mubr.f32.gmra.mrb[0].mxu0 %v2559
    %v2639 = vpop.f32.mrb[0].mxu0
    %v2640 = vadd.f32 0.0, %v2639
    %v2641 = vpop.f32.mrb[0].mxu0
    %v2642 = vadd.f32 0.0, %v2641
    %2643 = vmatprep.mubr.f32.mxu0 0.0
    %2644 = vmatmul.mubr.f32.gmra.mrb[0].mxu0 %v2562
    %v2645 = vpop.f32.mrb[0].mxu0
    %v2646 = vadd.f32 0.0, %v2645
    %v2647 = vpop.f32.mrb[0].mxu0
    %v2648 = vadd.f32 0.0, %v2647
    %2649 = vmatprep.mubr.f32.mxu0 0.0
    %2650 = vmatmul.mubr.f32.gmra.mrb[0].mxu0 %v2565
    %v2651 = vpop.f32.mrb[0].mxu0
    %v2652 = vadd.f32 0.0, %v2651
    %v2653 = vpop.f32.mrb[0].mxu0
    %v2654 = vadd.f32 0.0, %v2653
    %2655 = vdwg.mxu0
    %v2656 = vadd.f32 %v2426, %v2640
    %v2657 = vadd.f32 %v2428, %v2642
    %v2658 = vadd.f32 %v2432, %v2646
    %v2659 = vadd.f32 %v2434, %v2648
    %v2660 = vadd.f32 %v2438, %v2652
    %v2661 = vadd.f32 %v2440, %v2654
    %s2662 = scalar_lea.vmem %s5, 72
    %v2663 = vld [vmem:[%s2662] sm:$0xff]
    %v2664 = vld [vmem:[%s2662 + $0x8] sm:$0xff]
    %v2665 = vld [vmem:[%s2662 + $0x10] sm:$0xf]
    %v2667 = vsel %vm2013, %v2663, 0
    %v2670 = vsel %vm2013, %v2664, 0
    %v2673 = vsel %vm2013, %v2665, 0
    %2675 = vmatprep.subr.mxu0 0.0
    %2676 = vmatpush1.msra.mxu0 %v2006
    %2677 = vmatprep.subr.mxu0 0.0
    %2678 = vmatpush1.msra.mxu0 %v2007
    %2679 = vmatprep.subr.mxu0 0.0
    %2680 = vmatpush1.msra.mxu0 %v2008
    %2681 = vmatprep.subr.mxu0 0.0
    %2682 = vmatpush1.msra.mxu0 %v2025
    %2683 = vmatprep.subr.mxu0 0.0
    %2684 = vmatpush1.msra.mxu0 0.0
    %2685 = vmatprep.subr.mxu0 0.0
    %2686 = vmatpush1.msra.mxu0 0.0
    %2687 = vmatprep.subr.mxu0 0.0
    %2688 = vmatpush1.msra.mxu0 0.0
    %2689 = vmatprep.subr.mxu0 0.0
    %2690 = vmatpush1.msra.mxu0 0.0
    %2691 = vmatprep.subr.mxu0 0.0
    %2692 = vmatpush1.msra.mxu0 0.0
    %2693 = vmatprep.subr.mxu0 0.0
    %2694 = vmatpush1.msra.mxu0 0.0
    %2695 = vmatprep.subr.mxu0 0.0
    %2696 = vmatpush1.msra.mxu0 0.0
    %2697 = vmatprep.subr.mxu0 0.0
    %2698 = vmatpush1.msra.mxu0 0.0
    %2699 = vmatprep.subr.mxu0 0.0
    %2700 = vmatpush1.msra.mxu0 0.0
    %2701 = vmatprep.subr.mxu0 0.0
    %2702 = vmatpush1.msra.mxu0 0.0
    %2703 = vmatprep.subr.mxu0 0.0
    %2704 = vmatpush1.msra.mxu0 0.0
    %2705 = vmatprep.subr.mxu0 0.0
    %2706 = vmatpush1.msra.mxu0 0.0
    %2707 = vmatprep.subr.mxu0 0.0
    %2708 = vmatpush1.msra.mxu0 0.0
    %2709 = vmatprep.subr.mxu0 0.0
    %2710 = vmatpush1.msra.mxu0 0.0
    %2711 = vmatprep.subr.mxu0 0.0
    %2712 = vmatpush1.msra.mxu0 0.0
    %2713 = vmatprep.subr.mxu0 0.0
    %2714 = vmatpush1.msra.mxu0 0.0
    %2715 = vmatprep.subr.mxu0 0.0
    %2716 = vmatpush1.msra.mxu0 0.0
    %2717 = vmatprep.subr.mxu0 0.0
    %2718 = vmatpush1.msra.mxu0 0.0
    %2719 = vmatprep.subr.mxu0 0.0
    %2720 = vmatpush1.msra.mxu0 0.0
    %2721 = vmatprep.subr.mxu0 0.0
    %2722 = vmatpush1.msra.mxu0 0.0
    %2723 = vmatprep.subr.mxu0 0.0
    %2724 = vmatpush1.msra.mxu0 0.0
    %2725 = vmatprep.subr.mxu0 0.0
    %2726 = vmatpush1.msra.mxu0 0.0
    %2727 = vmatprep.subr.mxu0 0.0
    %2728 = vmatpush1.msra.mxu0 0.0
    %2729 = vmatprep.subr.mxu0 0.0
    %2730 = vmatpush1.msra.mxu0 0.0
    %2731 = vmatprep.subr.mxu0 0.0
    %2732 = vmatpush1.msra.mxu0 0.0
    %2733 = vmatprep.subr.mxu0 0.0
    %2734 = vmatpush1.msra.mxu0 0.0
    %2735 = vmatprep.subr.mxu0 0.0
    %2736 = vmatpush1.msra.mxu0 0.0
    %2737 = vmatprep.subr.mxu0 0.0
    %2738 = vmatpush1.msra.mxu0 0.0
    %2739 = vmatprep.mubr.f32.mxu0 0.0
    %2740 = vmatmul.mubr.f32.gmra.mrb[0].mxu0 %v2667
    %v2741 = vpop.f32.mrb[0].mxu0
    %v2742 = vadd.f32 0.0, %v2741
    %v2743 = vpop.f32.mrb[0].mxu0
    %2744 = vmatprep.mubr.f32.mxu0 0.0
    %2745 = vmatmul.mubr.f32.gmra.mrb[0].mxu0 %v2670
    %v2746 = vpop.f32.mrb[0].mxu0
    %v2747 = vadd.f32 0.0, %v2746
    %v2748 = vpop.f32.mrb[0].mxu0
    %2749 = vmatprep.mubr.f32.mxu0 0.0
    %2750 = vmatmul.mubr.f32.gmra.mrb[0].mxu0 %v2673
    %v2751 = vpop.f32.mrb[0].mxu0
    %v2752 = vadd.f32 0.0, %v2751
    %v2753 = vpop.f32.mrb[0].mxu0
    %2754 = vdwg.mxu0
    %s2755 = scalar_lea.vmem %s4, 528
    %v2756 = vld [vmem:[%s2755] sm:$0xff]
    %v2757 = vld [vmem:[%s2755 + $0x8] sm:$0xff]
    %v2758 = vld [vmem:[%s2755 + $0x10] sm:$0xff]
    %v2759 = vld [vmem:[%s2755 + $0x18] sm:$0xff]
    %v2760 = vld [vmem:[%s2755 + $0x20] sm:$0xff]
    %v2761 = vld [vmem:[%s2755 + $0x28] sm:$0xff]
    %v2762 = vld [vmem:[%s2755 + $0x30] sm:$0xff]
    %v2763 = vld [vmem:[%s2755 + $0x38] sm:$0xff]
    %v2764 = vld [vmem:[%s2755 + $0x40] sm:$0xff]
    %v2765 = vld [vmem:[%s2755 + $0x48] sm:$0xff]
    %v2766 = vld [vmem:[%s2755 + $0x50] sm:$0xff]
    %v2767 = vld [vmem:[%s2755 + $0x58] sm:$0xff]
    %v2768 = vld [vmem:[%s2755 + $0x60] sm:$0xff]
    %v2769 = vld [vmem:[%s2755 + $0x68] sm:$0xff]
    %v2770 = vld [vmem:[%s2755 + $0x70] sm:$0xff]
    %v2771 = vld [vmem:[%s2755 + $0x78] sm:$0xff]
    %v2772 = vld [vmem:[%s2755 + $0x80] sm:$0xff]
    %v2773 = vld [vmem:[%s2755 + $0x88] sm:$0xff]
    %v2774 = vld [vmem:[%s2755 + $0x90] sm:$0xff]
    %v2775 = vld [vmem:[%s2755 + $0x98] sm:$0xff]
    %v2776 = vld [vmem:[%s2755 + $0xa0] sm:$0xf]
    %v2777 = vld [vmem:[%s2755 + $0xa8] sm:$0xf]
    %v2779 = vsel %vm2245, %v2742, 0
    %v2782 = vsel %vm2245, %v2747, 0
    %v2785 = vsel %vm2245, %v2752, 0
    %v2788 = vsel %vm2023, %v2776, 0
    %v2791 = vsel %vm2023, %v2777, 0
    %2793 = vmatprep.subr.mxu0 %v2757
    %2794 = vmatpush1.msra.mxu0 %v2756
    %2795 = vmatprep.subr.mxu0 %v2759
    %2796 = vmatpush1.msra.mxu0 %v2758
    %2797 = vmatprep.subr.mxu0 %v2761
    %2798 = vmatpush1.msra.mxu0 %v2760
    %2799 = vmatprep.subr.mxu0 %v2763
    %2800 = vmatpush1.msra.mxu0 %v2762
    %2801 = vmatprep.subr.mxu0 %v2765
    %2802 = vmatpush1.msra.mxu0 %v2764
    %2803 = vmatprep.subr.mxu0 %v2767
    %2804 = vmatpush1.msra.mxu0 %v2766
    %2805 = vmatprep.subr.mxu0 %v2769
    %2806 = vmatpush1.msra.mxu0 %v2768
    %2807 = vmatprep.subr.mxu0 %v2771
    %2808 = vmatpush1.msra.mxu0 %v2770
    %2809 = vmatprep.subr.mxu0 %v2773
    %2810 = vmatpush1.msra.mxu0 %v2772
    %2811 = vmatprep.subr.mxu0 %v2775
    %2812 = vmatpush1.msra.mxu0 %v2774
    %2813 = vmatprep.subr.mxu0 %v2791
    %2814 = vmatpush1.msra.mxu0 %v2788
    %2815 = vmatprep.subr.mxu0 0.0
    %2816 = vmatpush1.msra.mxu0 0.0
    %2817 = vmatprep.subr.mxu0 0.0
    %2818 = vmatpush1.msra.mxu0 0.0
    %2819 = vmatprep.subr.mxu0 0.0
    %2820 = vmatpush1.msra.mxu0 0.0
    %2821 = vmatprep.subr.mxu0 0.0
    %2822 = vmatpush1.msra.mxu0 0.0
    %2823 = vmatprep.subr.mxu0 0.0
    %2824 = vmatpush1.msra.mxu0 0.0
    %2825 = vmatprep.subr.mxu0 0.0
    %2826 = vmatpush1.msra.mxu0 0.0
    %2827 = vmatprep.subr.mxu0 0.0
    %2828 = vmatpush1.msra.mxu0 0.0
    %2829 = vmatprep.subr.mxu0 0.0
    %2830 = vmatpush1.msra.mxu0 0.0
    %2831 = vmatprep.subr.mxu0 0.0
    %2832 = vmatpush1.msra.mxu0 0.0
    %2833 = vmatprep.subr.mxu0 0.0
    %2834 = vmatpush1.msra.mxu0 0.0
    %2835 = vmatprep.subr.mxu0 0.0
    %2836 = vmatpush1.msra.mxu0 0.0
    %2837 = vmatprep.subr.mxu0 0.0
    %2838 = vmatpush1.msra.mxu0 0.0
    %2839 = vmatprep.subr.mxu0 0.0
    %2840 = vmatpush1.msra.mxu0 0.0
    %2841 = vmatprep.subr.mxu0 0.0
    %2842 = vmatpush1.msra.mxu0 0.0
    %2843 = vmatprep.subr.mxu0 0.0
    %2844 = vmatpush1.msra.mxu0 0.0
    %2845 = vmatprep.subr.mxu0 0.0
    %2846 = vmatpush1.msra.mxu0 0.0
    %2847 = vmatprep.subr.mxu0 0.0
    %2848 = vmatpush1.msra.mxu0 0.0
    %2849 = vmatprep.subr.mxu0 0.0
    %2850 = vmatpush1.msra.mxu0 0.0
    %2851 = vmatprep.subr.mxu0 0.0
    %2852 = vmatpush1.msra.mxu0 0.0
    %2853 = vmatprep.subr.mxu0 0.0
    %2854 = vmatpush1.msra.mxu0 0.0
    %2855 = vmatprep.subr.mxu0 0.0
    %2856 = vmatpush1.msra.mxu0 0.0
    %2857 = vmatprep.mubr.f32.mxu0 0.0
    %2858 = vmatmul.mubr.f32.gmra.mrb[0].mxu0 %v2779
    %v2859 = vpop.f32.mrb[0].mxu0
    %v2860 = vadd.f32 0.0, %v2859
    %v2861 = vpop.f32.mrb[0].mxu0
    %v2862 = vadd.f32 0.0, %v2861
    %2863 = vmatprep.mubr.f32.mxu0 0.0
    %2864 = vmatmul.mubr.f32.gmra.mrb[0].mxu0 %v2782
    %v2865 = vpop.f32.mrb[0].mxu0
    %v2866 = vadd.f32 0.0, %v2865
    %v2867 = vpop.f32.mrb[0].mxu0
    %v2868 = vadd.f32 0.0, %v2867
    %2869 = vmatprep.mubr.f32.mxu0 0.0
    %2870 = vmatmul.mubr.f32.gmra.mrb[0].mxu0 %v2785
    %v2871 = vpop.f32.mrb[0].mxu0
    %v2872 = vadd.f32 0.0, %v2871
    %v2873 = vpop.f32.mrb[0].mxu0
    %v2874 = vadd.f32 0.0, %v2873
    %2875 = vdwg.mxu0
    %v2876 = vadd.f32 %v2656, %v2860
    %v2877 = vadd.f32 %v2657, %v2862
    %v2878 = vadd.f32 %v2658, %v2866
    %v2879 = vadd.f32 %v2659, %v2868
    %v2880 = vadd.f32 %v2660, %v2872
    %v2881 = vadd.f32 %v2661, %v2874
    %s2882 = scalar_lea.vmem %s5, 96
    %v2883 = vld [vmem:[%s2882] sm:$0xff]
    %v2884 = vld [vmem:[%s2882 + $0x8] sm:$0xff]
    %v2885 = vld [vmem:[%s2882 + $0x10] sm:$0xf]
    %v2887 = vsel %vm2013, %v2883, 0
    %v2890 = vsel %vm2013, %v2884, 0
    %v2893 = vsel %vm2013, %v2885, 0
    %2895 = vmatprep.subr.mxu0 0.0
    %2896 = vmatpush1.msra.mxu0 %v2006
    %2897 = vmatprep.subr.mxu0 0.0
    %2898 = vmatpush1.msra.mxu0 %v2007
    %2899 = vmatprep.subr.mxu0 0.0
    %2900 = vmatpush1.msra.mxu0 %v2008
    %2901 = vmatprep.subr.mxu0 0.0
    %2902 = vmatpush1.msra.mxu0 %v2025
    %2903 = vmatprep.subr.mxu0 0.0
    %2904 = vmatpush1.msra.mxu0 0.0
    %2905 = vmatprep.subr.mxu0 0.0
    %2906 = vmatpush1.msra.mxu0 0.0
    %2907 = vmatprep.subr.mxu0 0.0
    %2908 = vmatpush1.msra.mxu0 0.0
    %2909 = vmatprep.subr.mxu0 0.0
    %2910 = vmatpush1.msra.mxu0 0.0
    %2911 = vmatprep.subr.mxu0 0.0
    %2912 = vmatpush1.msra.mxu0 0.0
    %2913 = vmatprep.subr.mxu0 0.0
    %2914 = vmatpush1.msra.mxu0 0.0
    %2915 = vmatprep.subr.mxu0 0.0
    %2916 = vmatpush1.msra.mxu0 0.0
    %2917 = vmatprep.subr.mxu0 0.0
    %2918 = vmatpush1.msra.mxu0 0.0
    %2919 = vmatprep.subr.mxu0 0.0
    %2920 = vmatpush1.msra.mxu0 0.0
    %2921 = vmatprep.subr.mxu0 0.0
    %2922 = vmatpush1.msra.mxu0 0.0
    %2923 = vmatprep.subr.mxu0 0.0
    %2924 = vmatpush1.msra.mxu0 0.0
    %2925 = vmatprep.subr.mxu0 0.0
    %2926 = vmatpush1.msra.mxu0 0.0
    %2927 = vmatprep.subr.mxu0 0.0
    %2928 = vmatpush1.msra.mxu0 0.0
    %2929 = vmatprep.subr.mxu0 0.0
    %2930 = vmatpush1.msra.mxu0 0.0
    %2931 = vmatprep.subr.mxu0 0.0
    %2932 = vmatpush1.msra.mxu0 0.0
    %2933 = vmatprep.subr.mxu0 0.0
    %2934 = vmatpush1.msra.mxu0 0.0
    %2935 = vmatprep.subr.mxu0 0.0
    %2936 = vmatpush1.msra.mxu0 0.0
    %2937 = vmatprep.subr.mxu0 0.0
    %2938 = vmatpush1.msra.mxu0 0.0
    %2939 = vmatprep.subr.mxu0 0.0
    %2940 = vmatpush1.msra.mxu0 0.0
    %2941 = vmatprep.subr.mxu0 0.0
    %2942 = vmatpush1.msra.mxu0 0.0
    %2943 = vmatprep.subr.mxu0 0.0
    %2944 = vmatpush1.msra.mxu0 0.0
    %2945 = vmatprep.subr.mxu0 0.0
    %2946 = vmatpush1.msra.mxu0 0.0
    %2947 = vmatprep.subr.mxu0 0.0
    %2948 = vmatpush1.msra.mxu0 0.0
    %2949 = vmatprep.subr.mxu0 0.0
    %2950 = vmatpush1.msra.mxu0 0.0
    %2951 = vmatprep.subr.mxu0 0.0
    %2952 = vmatpush1.msra.mxu0 0.0
    %2953 = vmatprep.subr.mxu0 0.0
    %2954 = vmatpush1.msra.mxu0 0.0
    %2955 = vmatprep.subr.mxu0 0.0
    %2956 = vmatpush1.msra.mxu0 0.0
    %2957 = vmatprep.subr.mxu0 0.0
    %2958 = vmatpush1.msra.mxu0 0.0
    %2959 = vmatprep.mubr.f32.mxu0 0.0
    %2960 = vmatmul.mubr.f32.gmra.mrb[0].mxu0 %v2887
    %v2961 = vpop.f32.mrb[0].mxu0
    %v2962 = vadd.f32 0.0, %v2961
    %v2963 = vpop.f32.mrb[0].mxu0
    %2964 = vmatprep.mubr.f32.mxu0 0.0
    %2965 = vmatmul.mubr.f32.gmra.mrb[0].mxu0 %v2890
    %v2966 = vpop.f32.mrb[0].mxu0
    %v2967 = vadd.f32 0.0, %v2966
    %v2968 = vpop.f32.mrb[0].mxu0
    %2969 = vmatprep.mubr.f32.mxu0 0.0
    %2970 = vmatmul.mubr.f32.gmra.mrb[0].mxu0 %v2893
    %v2971 = vpop.f32.mrb[0].mxu0
    %v2972 = vadd.f32 0.0, %v2971
    %v2973 = vpop.f32.mrb[0].mxu0
    %2974 = vdwg.mxu0
    %s2975 = scalar_lea.vmem %s4, 704
    %v2976 = vld [vmem:[%s2975] sm:$0xff]
    %v2977 = vld [vmem:[%s2975 + $0x8] sm:$0xff]
    %v2978 = vld [vmem:[%s2975 + $0x10] sm:$0xff]
    %v2979 = vld [vmem:[%s2975 + $0x18] sm:$0xff]
    %v2980 = vld [vmem:[%s2975 + $0x20] sm:$0xff]
    %v2981 = vld [vmem:[%s2975 + $0x28] sm:$0xff]
    %v2982 = vld [vmem:[%s2975 + $0x30] sm:$0xff]
    %v2983 = vld [vmem:[%s2975 + $0x38] sm:$0xff]
    %v2984 = vld [vmem:[%s2975 + $0x40] sm:$0xff]
    %v2985 = vld [vmem:[%s2975 + $0x48] sm:$0xff]
    %v2986 = vld [vmem:[%s2975 + $0x50] sm:$0xff]
    %v2987 = vld [vmem:[%s2975 + $0x58] sm:$0xff]
    %v2988 = vld [vmem:[%s2975 + $0x60] sm:$0xff]
    %v2989 = vld [vmem:[%s2975 + $0x68] sm:$0xff]
    %v2990 = vld [vmem:[%s2975 + $0x70] sm:$0xff]
    %v2991 = vld [vmem:[%s2975 + $0x78] sm:$0xff]
    %v2992 = vld [vmem:[%s2975 + $0x80] sm:$0xff]
    %v2993 = vld [vmem:[%s2975 + $0x88] sm:$0xff]
    %v2994 = vld [vmem:[%s2975 + $0x90] sm:$0xff]
    %v2995 = vld [vmem:[%s2975 + $0x98] sm:$0xff]
    %v2996 = vld [vmem:[%s2975 + $0xa0] sm:$0xf]
    %v2997 = vld [vmem:[%s2975 + $0xa8] sm:$0xf]
    %v2999 = vsel %vm2245, %v2962, 0
    %v3002 = vsel %vm2245, %v2967, 0
    %v3005 = vsel %vm2245, %v2972, 0
    %v3008 = vsel %vm2023, %v2996, 0
    %v3011 = vsel %vm2023, %v2997, 0
    %3013 = vmatprep.subr.mxu0 %v2977
    %3014 = vmatpush1.msra.mxu0 %v2976
    %3015 = vmatprep.subr.mxu0 %v2979
    %3016 = vmatpush1.msra.mxu0 %v2978
    %3017 = vmatprep.subr.mxu0 %v2981
    %3018 = vmatpush1.msra.mxu0 %v2980
    %3019 = vmatprep.subr.mxu0 %v2983
    %3020 = vmatpush1.msra.mxu0 %v2982
    %3021 = vmatprep.subr.mxu0 %v2985
    %3022 = vmatpush1.msra.mxu0 %v2984
    %3023 = vmatprep.subr.mxu0 %v2987
    %3024 = vmatpush1.msra.mxu0 %v2986
    %3025 = vmatprep.subr.mxu0 %v2989
    %3026 = vmatpush1.msra.mxu0 %v2988
    %3027 = vmatprep.subr.mxu0 %v2991
    %3028 = vmatpush1.msra.mxu0 %v2990
    %3029 = vmatprep.subr.mxu0 %v2993
    %3030 = vmatpush1.msra.mxu0 %v2992
    %3031 = vmatprep.subr.mxu0 %v2995
    %3032 = vmatpush1.msra.mxu0 %v2994
    %3033 = vmatprep.subr.mxu0 %v3011
    %3034 = vmatpush1.msra.mxu0 %v3008
    %3035 = vmatprep.subr.mxu0 0.0
    %3036 = vmatpush1.msra.mxu0 0.0
    %3037 = vmatprep.subr.mxu0 0.0
    %3038 = vmatpush1.msra.mxu0 0.0
    %3039 = vmatprep.subr.mxu0 0.0
    %3040 = vmatpush1.msra.mxu0 0.0
    %3041 = vmatprep.subr.mxu0 0.0
    %3042 = vmatpush1.msra.mxu0 0.0
    %3043 = vmatprep.subr.mxu0 0.0
    %3044 = vmatpush1.msra.mxu0 0.0
    %3045 = vmatprep.subr.mxu0 0.0
    %3046 = vmatpush1.msra.mxu0 0.0
    %3047 = vmatprep.subr.mxu0 0.0
    %3048 = vmatpush1.msra.mxu0 0.0
    %3049 = vmatprep.subr.mxu0 0.0
    %3050 = vmatpush1.msra.mxu0 0.0
    %3051 = vmatprep.subr.mxu0 0.0
    %3052 = vmatpush1.msra.mxu0 0.0
    %3053 = vmatprep.subr.mxu0 0.0
    %3054 = vmatpush1.msra.mxu0 0.0
    %3055 = vmatprep.subr.mxu0 0.0
    %3056 = vmatpush1.msra.mxu0 0.0
    %3057 = vmatprep.subr.mxu0 0.0
    %3058 = vmatpush1.msra.mxu0 0.0
    %3059 = vmatprep.subr.mxu0 0.0
    %3060 = vmatpush1.msra.mxu0 0.0
    %3061 = vmatprep.subr.mxu0 0.0
    %3062 = vmatpush1.msra.mxu0 0.0
    %3063 = vmatprep.subr.mxu0 0.0
    %3064 = vmatpush1.msra.mxu0 0.0
    %3065 = vmatprep.subr.mxu0 0.0
    %3066 = vmatpush1.msra.mxu0 0.0
    %3067 = vmatprep.subr.mxu0 0.0
    %3068 = vmatpush1.msra.mxu0 0.0
    %3069 = vmatprep.subr.mxu0 0.0
    %3070 = vmatpush1.msra.mxu0 0.0
    %3071 = vmatprep.subr.mxu0 0.0
    %3072 = vmatpush1.msra.mxu0 0.0
    %3073 = vmatprep.subr.mxu0 0.0
    %3074 = vmatpush1.msra.mxu0 0.0
    %3075 = vmatprep.subr.mxu0 0.0
    %3076 = vmatpush1.msra.mxu0 0.0
    %3077 = vmatprep.mubr.f32.mxu0 0.0
    %3078 = vmatmul.mubr.f32.gmra.mrb[0].mxu0 %v2999
    %v3079 = vpop.f32.mrb[0].mxu0
    %v3080 = vadd.f32 0.0, %v3079
    %v3081 = vpop.f32.mrb[0].mxu0
    %v3082 = vadd.f32 0.0, %v3081
    %3083 = vmatprep.mubr.f32.mxu0 0.0
    %3084 = vmatmul.mubr.f32.gmra.mrb[0].mxu0 %v3002
    %v3085 = vpop.f32.mrb[0].mxu0
    %v3086 = vadd.f32 0.0, %v3085
    %v3087 = vpop.f32.mrb[0].mxu0
    %v3088 = vadd.f32 0.0, %v3087
    %3089 = vmatprep.mubr.f32.mxu0 0.0
    %3090 = vmatmul.mubr.f32.gmra.mrb[0].mxu0 %v3005
    %v3091 = vpop.f32.mrb[0].mxu0
    %v3092 = vadd.f32 0.0, %v3091
    %v3093 = vpop.f32.mrb[0].mxu0
    %v3094 = vadd.f32 0.0, %v3093
    %3095 = vdwg.mxu0
    %v3096 = vadd.f32 %v2876, %v3080
    %v3097 = vadd.f32 %v2877, %v3082
    %v3098 = vadd.f32 %v2878, %v3086
    %v3099 = vadd.f32 %v2879, %v3088
    %v3100 = vadd.f32 %v2880, %v3092
    %v3101 = vadd.f32 %v2881, %v3094
    %v3102 = vld [vmem:[%s6] sm:$0x3]
    %v3104 = vlaneseq
    %v3105 = vshrl.u32 %v3104, 7
    %v3106 = vsub.s32 0, %v3105
    %v3107 = vrot.slane %v3102, %v3106
    %v3108 = vlaneseq
    %v3109 = vshrl.u32 %v3108, 7
    %v3110 = vsub.s32 1, %v3109
    %v3111 = vrot.slane %v3102, %v3110
    %v3114 = vadd.f32 %v3096, %v3107
    %v3115 = vadd.f32 %v3097, %v3111
    %v3116 = vadd.f32 %v3098, %v3107
    %v3117 = vadd.f32 %v3099, %v3111
    %v3118 = vadd.f32 %v3100, %v3107
    %v3119 = vadd.f32 %v3101, %v3111
    %v3120 = vmax.f32 %v3114, 0.0
    %v3121 = vmax.f32 %v3115, 0.0
    %v3122 = vmax.f32 %v3116, 0.0
    %v3123 = vmax.f32 %v3117, 0.0
    %v3124 = vmax.f32 %v3118, 0.0
    %v3125 = vmax.f32 %v3119, 0.0
    %v3126 = vld [vmem:[%s9] sm:$0xff]
    %v3127 = vld [vmem:[%s9 + $0x8] sm:$0x3]
    %vm3128 = vcmask 162816
    %v3130 = vsel %vm3128, %v3126, 0
    %v3133 = vsel %vm3128, %v3127, 0
    %v3136 = vsel %vm2023, %v3124, 0
    %v3139 = vsel %vm2023, %v3125, 0
    %3141 = vmatprep.subr.mxu0 %v3121
    %3142 = vmatpush1.msra.mxu0 %v3120
    %3143 = vmatprep.subr.mxu0 %v3123
    %3144 = vmatpush1.msra.mxu0 %v3122
    %3145 = vmatprep.subr.mxu0 %v3139
    %3146 = vmatpush1.msra.mxu0 %v3136
    %3147 = vmatprep.subr.mxu0 0.0
    %3148 = vmatpush1.msra.mxu0 0.0
    %3149 = vmatprep.subr.mxu0 0.0
    %3150 = vmatpush1.msra.mxu0 0.0
    %3151 = vmatprep.subr.mxu0 0.0
    %3152 = vmatpush1.msra.mxu0 0.0
    %3153 = vmatprep.subr.mxu0 0.0
    %3154 = vmatpush1.msra.mxu0 0.0
    %3155 = vmatprep.subr.mxu0 0.0
    %3156 = vmatpush1.msra.mxu0 0.0
    %3157 = vmatprep.subr.mxu0 0.0
    %3158 = vmatpush1.msra.mxu0 0.0
    %3159 = vmatprep.subr.mxu0 0.0
    %3160 = vmatpush1.msra.mxu0 0.0
    %3161 = vmatprep.subr.mxu0 0.0
    %3162 = vmatpush1.msra.mxu0 0.0
    %3163 = vmatprep.subr.mxu0 0.0
    %3164 = vmatpush1.msra.mxu0 0.0
    %3165 = vmatprep.subr.mxu0 0.0
    %3166 = vmatpush1.msra.mxu0 0.0
    %3167 = vmatprep.subr.mxu0 0.0
    %3168 = vmatpush1.msra.mxu0 0.0
    %3169 = vmatprep.subr.mxu0 0.0
    %3170 = vmatpush1.msra.mxu0 0.0
    %3171 = vmatprep.subr.mxu0 0.0
    %3172 = vmatpush1.msra.mxu0 0.0
    %3173 = vmatprep.subr.mxu0 0.0
    %3174 = vmatpush1.msra.mxu0 0.0
    %3175 = vmatprep.subr.mxu0 0.0
    %3176 = vmatpush1.msra.mxu0 0.0
    %3177 = vmatprep.subr.mxu0 0.0
    %3178 = vmatpush1.msra.mxu0 0.0
    %3179 = vmatprep.subr.mxu0 0.0
    %3180 = vmatpush1.msra.mxu0 0.0
    %3181 = vmatprep.subr.mxu0 0.0
    %3182 = vmatpush1.msra.mxu0 0.0
    %3183 = vmatprep.subr.mxu0 0.0
    %3184 = vmatpush1.msra.mxu0 0.0
    %3185 = vmatprep.subr.mxu0 0.0
    %3186 = vmatpush1.msra.mxu0 0.0
    %3187 = vmatprep.subr.mxu0 0.0
    %3188 = vmatpush1.msra.mxu0 0.0
    %3189 = vmatprep.subr.mxu0 0.0
    %3190 = vmatpush1.msra.mxu0 0.0
    %3191 = vmatprep.subr.mxu0 0.0
    %3192 = vmatpush1.msra.mxu0 0.0
    %3193 = vmatprep.subr.mxu0 0.0
    %3194 = vmatpush1.msra.mxu0 0.0
    %3195 = vmatprep.subr.mxu0 0.0
    %3196 = vmatpush1.msra.mxu0 0.0
    %3197 = vmatprep.subr.mxu0 0.0
    %3198 = vmatpush1.msra.mxu0 0.0
    %3199 = vmatprep.subr.mxu0 0.0
    %3200 = vmatpush1.msra.mxu0 0.0
    %3201 = vmatprep.subr.mxu0 0.0
    %3202 = vmatpush1.msra.mxu0 0.0
    %3203 = vmatprep.subr.mxu0 0.0
    %3204 = vmatpush1.msra.mxu0 0.0
    %3205 = vmatprep.mubr.f32.mxu0 0.0
    %3206 = vmatmul.mubr.f32.gmra.mrb[0].mxu0 %v3130
    %v3207 = vpop.f32.mrb[0].mxu0
    %v3208 = vadd.f32 0.0, %v3207
    %v3209 = vpop.f32.mrb[0].mxu0
    %v3210 = vadd.f32 0.0, %v3209
    %3211 = vmatprep.mubr.f32.mxu0 0.0
    %3212 = vmatmul.mubr.f32.gmra.mrb[0].mxu0 %v3133
    %v3213 = vpop.f32.mrb[0].mxu0
    %v3214 = vadd.f32 0.0, %v3213
    %v3215 = vpop.f32.mrb[0].mxu0
    %v3216 = vadd.f32 0.0, %v3215
    %3217 = vdwg.mxu0
    %s3218 = scalar_lea.vmem %s9, 16
    %v3219 = vld [vmem:[%s3218] sm:$0xff]
    %v3220 = vld [vmem:[%s3218 + $0x8] sm:$0x3]
    %v3222 = vsel %vm3128, %v3219, 0
    %v3225 = vsel %vm3128, %v3220, 0
    %3227 = vmatprep.subr.mxu0 %v3121
    %3228 = vmatpush1.msra.mxu0 %v3120
    %3229 = vmatprep.subr.mxu0 %v3123
    %3230 = vmatpush1.msra.mxu0 %v3122
    %3231 = vmatprep.subr.mxu0 %v3139
    %3232 = vmatpush1.msra.mxu0 %v3136
    %3233 = vmatprep.subr.mxu0 0.0
    %3234 = vmatpush1.msra.mxu0 0.0
    %3235 = vmatprep.subr.mxu0 0.0
    %3236 = vmatpush1.msra.mxu0 0.0
    %3237 = vmatprep.subr.mxu0 0.0
    %3238 = vmatpush1.msra.mxu0 0.0
    %3239 = vmatprep.subr.mxu0 0.0
    %3240 = vmatpush1.msra.mxu0 0.0
    %3241 = vmatprep.subr.mxu0 0.0
    %3242 = vmatpush1.msra.mxu0 0.0
    %3243 = vmatprep.subr.mxu0 0.0
    %3244 = vmatpush1.msra.mxu0 0.0
    %3245 = vmatprep.subr.mxu0 0.0
    %3246 = vmatpush1.msra.mxu0 0.0
    %3247 = vmatprep.subr.mxu0 0.0
    %3248 = vmatpush1.msra.mxu0 0.0
    %3249 = vmatprep.subr.mxu0 0.0
    %3250 = vmatpush1.msra.mxu0 0.0
    %3251 = vmatprep.subr.mxu0 0.0
    %3252 = vmatpush1.msra.mxu0 0.0
    %3253 = vmatprep.subr.mxu0 0.0
    %3254 = vmatpush1.msra.mxu0 0.0
    %3255 = vmatprep.subr.mxu0 0.0
    %3256 = vmatpush1.msra.mxu0 0.0
    %3257 = vmatprep.subr.mxu0 0.0
    %3258 = vmatpush1.msra.mxu0 0.0
    %3259 = vmatprep.subr.mxu0 0.0
    %3260 = vmatpush1.msra.mxu0 0.0
    %3261 = vmatprep.subr.mxu0 0.0
    %3262 = vmatpush1.msra.mxu0 0.0
    %3263 = vmatprep.subr.mxu0 0.0
    %3264 = vmatpush1.msra.mxu0 0.0
    %3265 = vmatprep.subr.mxu0 0.0
    %3266 = vmatpush1.msra.mxu0 0.0
    %3267 = vmatprep.subr.mxu0 0.0
    %3268 = vmatpush1.msra.mxu0 0.0
    %3269 = vmatprep.subr.mxu0 0.0
    %3270 = vmatpush1.msra.mxu0 0.0
    %3271 = vmatprep.subr.mxu0 0.0
    %3272 = vmatpush1.msra.mxu0 0.0
    %3273 = vmatprep.subr.mxu0 0.0
    %3274 = vmatpush1.msra.mxu0 0.0
    %3275 = vmatprep.subr.mxu0 0.0
    %3276 = vmatpush1.msra.mxu0 0.0
    %3277 = vmatprep.subr.mxu0 0.0
    %3278 = vmatpush1.msra.mxu0 0.0
    %3279 = vmatprep.subr.mxu0 0.0
    %3280 = vmatpush1.msra.mxu0 0.0
    %3281 = vmatprep.subr.mxu0 0.0
    %3282 = vmatpush1.msra.mxu0 0.0
    %3283 = vmatprep.subr.mxu0 0.0
    %3284 = vmatpush1.msra.mxu0 0.0
    %3285 = vmatprep.subr.mxu0 0.0
    %3286 = vmatpush1.msra.mxu0 0.0
    %3287 = vmatprep.subr.mxu0 0.0
    %3288 = vmatpush1.msra.mxu0 0.0
    %3289 = vmatprep.subr.mxu0 0.0
    %3290 = vmatpush1.msra.mxu0 0.0
    %3291 = vmatprep.mubr.f32.mxu0 0.0
    %3292 = vmatmul.mubr.f32.gmra.mrb[0].mxu0 %v3222
    %v3293 = vpop.f32.mrb[0].mxu0
    %v3294 = vadd.f32 0.0, %v3293
    %v3295 = vpop.f32.mrb[0].mxu0
    %v3296 = vadd.f32 0.0, %v3295
    %3297 = vmatprep.mubr.f32.mxu0 0.0
    %3298 = vmatmul.mubr.f32.gmra.mrb[0].mxu0 %v3225
    %v3299 = vpop.f32.mrb[0].mxu0
    %v3300 = vadd.f32 0.0, %v3299
    %v3301 = vpop.f32.mrb[0].mxu0
    %v3302 = vadd.f32 0.0, %v3301
    %3303 = vdwg.mxu0
    %v3304 = vmax.f32 %v3208, %v3294
    %v3305 = vmax.f32 %v3210, %v3296
    %v3306 = vmax.f32 %v3214, %v3300
    %v3307 = vmax.f32 %v3216, %v3302
    %v3308 = vld [vmem:[%s10] sm:$0xff]
    %v3309 = vld [vmem:[%s10 + $0x8] sm:$0xff]
    %v3310 = vld [vmem:[%s10 + $0x10] sm:$0xff]
    %v3311 = vld [vmem:[%s10 + $0x18] sm:$0xff]
    %v3312 = vld [vmem:[%s10 + $0x20] sm:$0xff]
    %v3313 = vld [vmem:[%s10 + $0x28] sm:$0xff]
    %v3314 = vld [vmem:[%s10 + $0x30] sm:$0xff]
    %v3315 = vld [vmem:[%s10 + $0x38] sm:$0xff]
    %v3316 = vld [vmem:[%s10 + $0x40] sm:$0xff]
    %v3317 = vld [vmem:[%s10 + $0x48] sm:$0xff]
    %v3318 = vld [vmem:[%s10 + $0x50] sm:$0xff]
    %v3319 = vld [vmem:[%s10 + $0x58] sm:$0xff]
    %v3320 = vld [vmem:[%s10 + $0x60] sm:$0xff]
    %v3321 = vld [vmem:[%s10 + $0x68] sm:$0xff]
    %v3322 = vld [vmem:[%s10 + $0x70] sm:$0xff]
    %v3323 = vld [vmem:[%s10 + $0x78] sm:$0xff]
    %v3324 = vld [vmem:[%s10 + $0x80] sm:$0xff]
    %v3325 = vld [vmem:[%s10 + $0x88] sm:$0xff]
    %v3326 = vld [vmem:[%s10 + $0x90] sm:$0xff]
    %v3327 = vld [vmem:[%s10 + $0x98] sm:$0xff]
    %vm3328 = vcmask 261120
    %v3330 = vsel %vm3328, %v3305, 0
    %v3333 = vsel %vm3328, %v3307, 0
    %3335 = vmatprep.subr.mxu0 0.0
    %3336 = vmatpush1.msra.mxu0 %v3308
    %3337 = vmatprep.subr.mxu0 0.0
    %3338 = vmatpush1.msra.mxu0 %v3309
    %3339 = vmatprep.subr.mxu0 0.0
    %3340 = vmatpush1.msra.mxu0 %v3310
    %3341 = vmatprep.subr.mxu0 0.0
    %3342 = vmatpush1.msra.mxu0 %v3311
    %3343 = vmatprep.subr.mxu0 0.0
    %3344 = vmatpush1.msra.mxu0 %v3312
    %3345 = vmatprep.subr.mxu0 0.0
    %3346 = vmatpush1.msra.mxu0 %v3313
    %3347 = vmatprep.subr.mxu0 0.0
    %3348 = vmatpush1.msra.mxu0 %v3314
    %3349 = vmatprep.subr.mxu0 0.0
    %3350 = vmatpush1.msra.mxu0 %v3315
    %3351 = vmatprep.subr.mxu0 0.0
    %3352 = vmatpush1.msra.mxu0 %v3316
    %3353 = vmatprep.subr.mxu0 0.0
    %3354 = vmatpush1.msra.mxu0 %v3317
    %3355 = vmatprep.subr.mxu0 0.0
    %3356 = vmatpush1.msra.mxu0 %v3318
    %3357 = vmatprep.subr.mxu0 0.0
    %3358 = vmatpush1.msra.mxu0 %v3319
    %3359 = vmatprep.subr.mxu0 0.0
    %3360 = vmatpush1.msra.mxu0 %v3320
    %3361 = vmatprep.subr.mxu0 0.0
    %3362 = vmatpush1.msra.mxu0 %v3321
    %3363 = vmatprep.subr.mxu0 0.0
    %3364 = vmatpush1.msra.mxu0 %v3322
    %3365 = vmatprep.subr.mxu0 0.0
    %3366 = vmatpush1.msra.mxu0 %v3323
    %3367 = vmatprep.subr.mxu0 0.0
    %3368 = vmatpush1.msra.mxu0 %v3324
    %3369 = vmatprep.subr.mxu0 0.0
    %3370 = vmatpush1.msra.mxu0 %v3325
    %3371 = vmatprep.subr.mxu0 0.0
    %3372 = vmatpush1.msra.mxu0 %v3326
    %3373 = vmatprep.subr.mxu0 0.0
    %3374 = vmatpush1.msra.mxu0 %v3327
    %3375 = vmatprep.subr.mxu0 0.0
    %3376 = vmatpush1.msra.mxu0 0.0
    %3377 = vmatprep.subr.mxu0 0.0
    %3378 = vmatpush1.msra.mxu0 0.0
    %3379 = vmatprep.subr.mxu0 0.0
    %3380 = vmatpush1.msra.mxu0 0.0
    %3381 = vmatprep.subr.mxu0 0.0
    %3382 = vmatpush1.msra.mxu0 0.0
    %3383 = vmatprep.subr.mxu0 0.0
    %3384 = vmatpush1.msra.mxu0 0.0
    %3385 = vmatprep.subr.mxu0 0.0
    %3386 = vmatpush1.msra.mxu0 0.0
    %3387 = vmatprep.subr.mxu0 0.0
    %3388 = vmatpush1.msra.mxu0 0.0
    %3389 = vmatprep.subr.mxu0 0.0
    %3390 = vmatpush1.msra.mxu0 0.0
    %3391 = vmatprep.subr.mxu0 0.0
    %3392 = vmatpush1.msra.mxu0 0.0
    %3393 = vmatprep.subr.mxu0 0.0
    %3394 = vmatpush1.msra.mxu0 0.0
    %3395 = vmatprep.subr.mxu0 0.0
    %3396 = vmatpush1.msra.mxu0 0.0
    %3397 = vmatprep.subr.mxu0 0.0
    %3398 = vmatpush1.msra.mxu0 0.0
    %3399 = vmatprep.mubr.f32.mxu0 %v3330
    %3400 = vmatmul.mubr.f32.gmra.mrb[0].mxu0 %v3304
    %v3401 = vpop.f32.mrb[0].mxu0
    %v3402 = vadd.f32 0.0, %v3401
    %v3403 = vpop.f32.mrb[0].mxu0
    %3404 = vmatprep.mubr.f32.mxu0 %v3333
    %3405 = vmatmul.mubr.f32.gmra.mrb[0].mxu0 %v3306
    %v3406 = vpop.f32.mrb[0].mxu0
    %v3407 = vadd.f32 0.0, %v3406
    %v3408 = vpop.f32.mrb[0].mxu0
    %3409 = vdwg.mxu0
    %s3410 = scalar_lea.vmem %s10, 160
    %v3411 = vld [vmem:[%s3410] sm:$0xff]
    %v3412 = vld [vmem:[%s3410 + $0x8] sm:$0xff]
    %v3413 = vld [vmem:[%s3410 + $0x10] sm:$0xff]
    %v3414 = vld [vmem:[%s3410 + $0x18] sm:$0xff]
    %v3415 = vld [vmem:[%s3410 + $0x20] sm:$0xff]
    %v3416 = vld [vmem:[%s3410 + $0x28] sm:$0xff]
    %v3417 = vld [vmem:[%s3410 + $0x30] sm:$0xff]
    %v3418 = vld [vmem:[%s3410 + $0x38] sm:$0xff]
    %v3419 = vld [vmem:[%s3410 + $0x40] sm:$0xff]
    %v3420 = vld [vmem:[%s3410 + $0x48] sm:$0xff]
    %v3421 = vld [vmem:[%s3410 + $0x50] sm:$0xff]
    %v3422 = vld [vmem:[%s3410 + $0x58] sm:$0xff]
    %v3423 = vld [vmem:[%s3410 + $0x60] sm:$0xff]
    %v3424 = vld [vmem:[%s3410 + $0x68] sm:$0xff]
    %v3425 = vld [vmem:[%s3410 + $0x70] sm:$0xff]
    %v3426 = vld [vmem:[%s3410 + $0x78] sm:$0xff]
    %v3427 = vld [vmem:[%s3410 + $0x80] sm:$0xff]
    %v3428 = vld [vmem:[%s3410 + $0x88] sm:$0xff]
    %v3429 = vld [vmem:[%s3410 + $0x90] sm:$0xff]
    %v3430 = vld [vmem:[%s3410 + $0x98] sm:$0xff]
    %3431 = vmatprep.subr.mxu0 0.0
    %3432 = vmatpush1.msra.mxu0 %v3411
    %3433 = vmatprep.subr.mxu0 0.0
    %3434 = vmatpush1.msra.mxu0 %v3412
    %3435 = vmatprep.subr.mxu0 0.0
    %3436 = vmatpush1.msra.mxu0 %v3413
    %3437 = vmatprep.subr.mxu0 0.0
    %3438 = vmatpush1.msra.mxu0 %v3414
    %3439 = vmatprep.subr.mxu0 0.0
    %3440 = vmatpush1.msra.mxu0 %v3415
    %3441 = vmatprep.subr.mxu0 0.0
    %3442 = vmatpush1.msra.mxu0 %v3416
    %3443 = vmatprep.subr.mxu0 0.0
    %3444 = vmatpush1.msra.mxu0 %v3417
    %3445 = vmatprep.subr.mxu0 0.0
    %3446 = vmatpush1.msra.mxu0 %v3418
    %3447 = vmatprep.subr.mxu0 0.0
    %3448 = vmatpush1.msra.mxu0 %v3419
    %3449 = vmatprep.subr.mxu0 0.0
    %3450 = vmatpush1.msra.mxu0 %v3420
    %3451 = vmatprep.subr.mxu0 0.0
    %3452 = vmatpush1.msra.mxu0 %v3421
    %3453 = vmatprep.subr.mxu0 0.0
    %3454 = vmatpush1.msra.mxu0 %v3422
    %3455 = vmatprep.subr.mxu0 0.0
    %3456 = vmatpush1.msra.mxu0 %v3423
    %3457 = vmatprep.subr.mxu0 0.0
    %3458 = vmatpush1.msra.mxu0 %v3424
    %3459 = vmatprep.subr.mxu0 0.0
    %3460 = vmatpush1.msra.mxu0 %v3425
    %3461 = vmatprep.subr.mxu0 0.0
    %3462 = vmatpush1.msra.mxu0 %v3426
    %3463 = vmatprep.subr.mxu0 0.0
    %3464 = vmatpush1.msra.mxu0 %v3427
    %3465 = vmatprep.subr.mxu0 0.0
    %3466 = vmatpush1.msra.mxu0 %v3428
    %3467 = vmatprep.subr.mxu0 0.0
    %3468 = vmatpush1.msra.mxu0 %v3429
    %3469 = vmatprep.subr.mxu0 0.0
    %3470 = vmatpush1.msra.mxu0 %v3430
    %3471 = vmatprep.subr.mxu0 0.0
    %3472 = vmatpush1.msra.mxu0 0.0
    %3473 = vmatprep.subr.mxu0 0.0
    %3474 = vmatpush1.msra.mxu0 0.0
    %3475 = vmatprep.subr.mxu0 0.0
    %3476 = vmatpush1.msra.mxu0 0.0
    %3477 = vmatprep.subr.mxu0 0.0
    %3478 = vmatpush1.msra.mxu0 0.0
    %3479 = vmatprep.subr.mxu0 0.0
    %3480 = vmatpush1.msra.mxu0 0.0
    %3481 = vmatprep.subr.mxu0 0.0
    %3482 = vmatpush1.msra.mxu0 0.0
    %3483 = vmatprep.subr.mxu0 0.0
    %3484 = vmatpush1.msra.mxu0 0.0
    %3485 = vmatprep.subr.mxu0 0.0
    %3486 = vmatpush1.msra.mxu0 0.0
    %3487 = vmatprep.subr.mxu0 0.0
    %3488 = vmatpush1.msra.mxu0 0.0
    %3489 = vmatprep.subr.mxu0 0.0
    %3490 = vmatpush1.msra.mxu0 0.0
    %3491 = vmatprep.subr.mxu0 0.0
    %3492 = vmatpush1.msra.mxu0 0.0
    %3493 = vmatprep.subr.mxu0 0.0
    %3494 = vmatpush1.msra.mxu0 0.0
    %3495 = vmatprep.mubr.f32.mxu0 %v3330
    %3496 = vmatmul.mubr.f32.gmra.mrb[0].mxu0 %v3304
    %v3497 = vpop.f32.mrb[0].mxu0
    %v3498 = vadd.f32 0.0, %v3497
    %v3499 = vpop.f32.mrb[0].mxu0
    %3500 = vmatprep.mubr.f32.mxu0 %v3333
    %3501 = vmatmul.mubr.f32.gmra.mrb[0].mxu0 %v3306
    %v3502 = vpop.f32.mrb[0].mxu0
    %v3503 = vadd.f32 0.0, %v3502
    %v3504 = vpop.f32.mrb[0].mxu0
    %3505 = vdwg.mxu0
    %v3506 = vmax.f32 %v3402, %v3498
    %v3507 = vmax.f32 %v3407, %v3503
    %v3508 = vld [vmem:[%s11] sm:$0x3]
    %vm3509 = vcmask 80896
    %v3511 = vsel %vm3509, %v3508, 0
    %vm3513 = vcmask 1041408
    %v3515 = vsel %vm3513, %v3507, 0
    %3517 = vmatprep.subr.mxu0 0.0
    %3518 = vmatpush1.msra.mxu0 %v3506
    %3519 = vmatprep.subr.mxu0 0.0
    %3520 = vmatpush1.msra.mxu0 %v3515
    %3521 = vmatprep.subr.mxu0 0.0
    %3522 = vmatpush1.msra.mxu0 0.0
    %3523 = vmatprep.subr.mxu0 0.0
    %3524 = vmatpush1.msra.mxu0 0.0
    %3525 = vmatprep.subr.mxu0 0.0
    %3526 = vmatpush1.msra.mxu0 0.0
    %3527 = vmatprep.subr.mxu0 0.0
    %3528 = vmatpush1.msra.mxu0 0.0
    %3529 = vmatprep.subr.mxu0 0.0
    %3530 = vmatpush1.msra.mxu0 0.0
    %3531 = vmatprep.subr.mxu0 0.0
    %3532 = vmatpush1.msra.mxu0 0.0
    %3533 = vmatprep.subr.mxu0 0.0
    %3534 = vmatpush1.msra.mxu0 0.0
    %3535 = vmatprep.subr.mxu0 0.0
    %3536 = vmatpush1.msra.mxu0 0.0
    %3537 = vmatprep.subr.mxu0 0.0
    %3538 = vmatpush1.msra.mxu0 0.0
    %3539 = vmatprep.subr.mxu0 0.0
    %3540 = vmatpush1.msra.mxu0 0.0
    %3541 = vmatprep.subr.mxu0 0.0
    %3542 = vmatpush1.msra.mxu0 0.0
    %3543 = vmatprep.subr.mxu0 0.0
    %3544 = vmatpush1.msra.mxu0 0.0
    %3545 = vmatprep.subr.mxu0 0.0
    %3546 = vmatpush1.msra.mxu0 0.0
    %3547 = vmatprep.subr.mxu0 0.0
    %3548 = vmatpush1.msra.mxu0 0.0
    %3549 = vmatprep.subr.mxu0 0.0
    %3550 = vmatpush1.msra.mxu0 0.0
    %3551 = vmatprep.subr.mxu0 0.0
    %3552 = vmatpush1.msra.mxu0 0.0
    %3553 = vmatprep.subr.mxu0 0.0
    %3554 = vmatpush1.msra.mxu0 0.0
    %3555 = vmatprep.subr.mxu0 0.0
    %3556 = vmatpush1.msra.mxu0 0.0
    %3557 = vmatprep.subr.mxu0 0.0
    %3558 = vmatpush1.msra.mxu0 0.0
    %3559 = vmatprep.subr.mxu0 0.0
    %3560 = vmatpush1.msra.mxu0 0.0
    %3561 = vmatprep.subr.mxu0 0.0
    %3562 = vmatpush1.msra.mxu0 0.0
    %3563 = vmatprep.subr.mxu0 0.0
    %3564 = vmatpush1.msra.mxu0 0.0
    %3565 = vmatprep.subr.mxu0 0.0
    %3566 = vmatpush1.msra.mxu0 0.0
    %3567 = vmatprep.subr.mxu0 0.0
    %3568 = vmatpush1.msra.mxu0 0.0
    %3569 = vmatprep.subr.mxu0 0.0
    %3570 = vmatpush1.msra.mxu0 0.0
    %3571 = vmatprep.subr.mxu0 0.0
    %3572 = vmatpush1.msra.mxu0 0.0
    %3573 = vmatprep.subr.mxu0 0.0
    %3574 = vmatpush1.msra.mxu0 0.0
    %3575 = vmatprep.subr.mxu0 0.0
    %3576 = vmatpush1.msra.mxu0 0.0
    %3577 = vmatprep.subr.mxu0 0.0
    %3578 = vmatpush1.msra.mxu0 0.0
    %3579 = vmatprep.subr.mxu0 0.0
    %3580 = vmatpush1.msra.mxu0 0.0
    %3581 = vmatprep.mubr.f32.mxu0 0.0
    %3582 = vmatmul.mubr.f32.gmra.mrb[0].mxu0 %v3511
    %v3583 = vpop.f32.mrb[0].mxu0
    %v3584 = vadd.f32 0.0, %v3583
    %v3585 = vpop.f32.mrb[0].mxu0
    %3586 = vdwg.mxu0
    %v3587 = vld [vmem:[%s12] sm:$0xff]
    %v3588 = vld [vmem:[%s12 + $0x8] sm:$0xff]
    %v3589 = vld [vmem:[%s12 + $0x10] sm:$0xff]
    %v3590 = vld [vmem:[%s12 + $0x18] sm:$0xff]
    %v3591 = vld [vmem:[%s12 + $0x20] sm:$0xff]
    %v3592 = vld [vmem:[%s12 + $0x28] sm:$0xff]
    %v3593 = vld [vmem:[%s12 + $0x30] sm:$0xff]
    %v3594 = vld [vmem:[%s12 + $0x38] sm:$0xff]
    %v3595 = vld [vmem:[%s12 + $0x40] sm:$0xff]
    %v3596 = vld [vmem:[%s12 + $0x48] sm:$0xff]
    %s3597 = scalar_lea.vmem %s11, 2
    %v3598 = vld [vmem:[%s3597] sm:$0x3]
    %v3600 = vsel %vm3509, %v3598, 0
    %3602 = vmatprep.subr.mxu0 0.0
    %3603 = vmatpush1.msra.mxu0 %v3506
    %3604 = vmatprep.subr.mxu0 0.0
    %3605 = vmatpush1.msra.mxu0 %v3515
    %3606 = vmatprep.subr.mxu0 0.0
    %3607 = vmatpush1.msra.mxu0 0.0
    %3608 = vmatprep.subr.mxu0 0.0
    %3609 = vmatpush1.msra.mxu0 0.0
    %3610 = vmatprep.subr.mxu0 0.0
    %3611 = vmatpush1.msra.mxu0 0.0
    %3612 = vmatprep.subr.mxu0 0.0
    %3613 = vmatpush1.msra.mxu0 0.0
    %3614 = vmatprep.subr.mxu0 0.0
    %3615 = vmatpush1.msra.mxu0 0.0
    %3616 = vmatprep.subr.mxu0 0.0
    %3617 = vmatpush1.msra.mxu0 0.0
    %3618 = vmatprep.subr.mxu0 0.0
    %3619 = vmatpush1.msra.mxu0 0.0
    %3620 = vmatprep.subr.mxu0 0.0
    %3621 = vmatpush1.msra.mxu0 0.0
    %3622 = vmatprep.subr.mxu0 0.0
    %3623 = vmatpush1.msra.mxu0 0.0
    %3624 = vmatprep.subr.mxu0 0.0
    %3625 = vmatpush1.msra.mxu0 0.0
    %3626 = vmatprep.subr.mxu0 0.0
    %3627 = vmatpush1.msra.mxu0 0.0
    %3628 = vmatprep.subr.mxu0 0.0
    %3629 = vmatpush1.msra.mxu0 0.0
    %3630 = vmatprep.subr.mxu0 0.0
    %3631 = vmatpush1.msra.mxu0 0.0
    %3632 = vmatprep.subr.mxu0 0.0
    %3633 = vmatpush1.msra.mxu0 0.0
    %3634 = vmatprep.subr.mxu0 0.0
    %3635 = vmatpush1.msra.mxu0 0.0
    %3636 = vmatprep.subr.mxu0 0.0
    %3637 = vmatpush1.msra.mxu0 0.0
    %3638 = vmatprep.subr.mxu0 0.0
    %3639 = vmatpush1.msra.mxu0 0.0
    %3640 = vmatprep.subr.mxu0 0.0
    %3641 = vmatpush1.msra.mxu0 0.0
    %3642 = vmatprep.subr.mxu0 0.0
    %3643 = vmatpush1.msra.mxu0 0.0
    %3644 = vmatprep.subr.mxu0 0.0
    %3645 = vmatpush1.msra.mxu0 0.0
    %3646 = vmatprep.subr.mxu0 0.0
    %3647 = vmatpush1.msra.mxu0 0.0
    %3648 = vmatprep.subr.mxu0 0.0
    %3649 = vmatpush1.msra.mxu0 0.0
    %3650 = vmatprep.subr.mxu0 0.0
    %3651 = vmatpush1.msra.mxu0 0.0
    %3652 = vmatprep.subr.mxu0 0.0
    %3653 = vmatpush1.msra.mxu0 0.0
    %3654 = vmatprep.subr.mxu0 0.0
    %3655 = vmatpush1.msra.mxu0 0.0
    %3656 = vmatprep.subr.mxu0 0.0
    %3657 = vmatpush1.msra.mxu0 0.0
    %3658 = vmatprep.subr.mxu0 0.0
    %3659 = vmatpush1.msra.mxu0 0.0
    %3660 = vmatprep.subr.mxu0 0.0
    %3661 = vmatpush1.msra.mxu0 0.0
    %3662 = vmatprep.subr.mxu0 0.0
    %3663 = vmatpush1.msra.mxu0 0.0
    %3664 = vmatprep.subr.mxu0 0.0
    %3665 = vmatpush1.msra.mxu0 0.0
    %3666 = vmatprep.mubr.f32.mxu0 0.0
    %3667 = vmatmul.mubr.f32.gmra.mrb[0].mxu0 %v3600
    %v3668 = vpop.f32.mrb[0].mxu0
    %v3669 = vadd.f32 0.0, %v3668
    %v3670 = vpop.f32.mrb[0].mxu0
    %3671 = vdwg.mxu0
    %s3672 = scalar_lea.vmem %s12, 80
    %v3673 = vld [vmem:[%s3672] sm:$0xff]
    %v3674 = vld [vmem:[%s3672 + $0x8] sm:$0xff]
    %v3675 = vld [vmem:[%s3672 + $0x10] sm:$0xff]
    %v3676 = vld [vmem:[%s3672 + $0x18] sm:$0xff]
    %v3677 = vld [vmem:[%s3672 + $0x20] sm:$0xff]
    %v3678 = vld [vmem:[%s3672 + $0x28] sm:$0xff]
    %v3679 = vld [vmem:[%s3672 + $0x30] sm:$0xff]
    %v3680 = vld [vmem:[%s3672 + $0x38] sm:$0xff]
    %v3681 = vld [vmem:[%s3672 + $0x40] sm:$0xff]
    %v3682 = vld [vmem:[%s3672 + $0x48] sm:$0xff]
    %vm3683 = vcmask 654336
    %v3685 = vsel %vm3683, %v3669, 0
    %3687 = vmatprep.subr.mxu0 0.0
    %3688 = vmatpush1.msra.mxu0 %v3673
    %3689 = vmatprep.subr.mxu0 0.0
    %3690 = vmatpush1.msra.mxu0 %v3674
    %3691 = vmatprep.subr.mxu0 0.0
    %3692 = vmatpush1.msra.mxu0 %v3675
    %3693 = vmatprep.subr.mxu0 0.0
    %3694 = vmatpush1.msra.mxu0 %v3676
    %3695 = vmatprep.subr.mxu0 0.0
    %3696 = vmatpush1.msra.mxu0 %v3677
    %3697 = vmatprep.subr.mxu0 0.0
    %3698 = vmatpush1.msra.mxu0 %v3678
    %3699 = vmatprep.subr.mxu0 0.0
    %3700 = vmatpush1.msra.mxu0 %v3679
    %3701 = vmatprep.subr.mxu0 0.0
    %3702 = vmatpush1.msra.mxu0 %v3680
    %3703 = vmatprep.subr.mxu0 0.0
    %3704 = vmatpush1.msra.mxu0 %v3681
    %3705 = vmatprep.subr.mxu0 0.0
    %3706 = vmatpush1.msra.mxu0 %v3682
    %3707 = vmatprep.subr.mxu0 0.0
    %3708 = vmatpush1.msra.mxu0 0.0
    %3709 = vmatprep.subr.mxu0 0.0
    %3710 = vmatpush1.msra.mxu0 0.0
    %3711 = vmatprep.subr.mxu0 0.0
    %3712 = vmatpush1.msra.mxu0 0.0
    %3713 = vmatprep.subr.mxu0 0.0
    %3714 = vmatpush1.msra.mxu0 0.0
    %3715 = vmatprep.subr.mxu0 0.0
    %3716 = vmatpush1.msra.mxu0 0.0
    %3717 = vmatprep.subr.mxu0 0.0
    %3718 = vmatpush1.msra.mxu0 0.0
    %3719 = vmatprep.subr.mxu0 0.0
    %3720 = vmatpush1.msra.mxu0 0.0
    %3721 = vmatprep.subr.mxu0 0.0
    %3722 = vmatpush1.msra.mxu0 0.0
    %3723 = vmatprep.subr.mxu0 0.0
    %3724 = vmatpush1.msra.mxu0 0.0
    %3725 = vmatprep.subr.mxu0 0.0
    %3726 = vmatpush1.msra.mxu0 0.0
    %3727 = vmatprep.subr.mxu0 0.0
    %3728 = vmatpush1.msra.mxu0 0.0
    %3729 = vmatprep.subr.mxu0 0.0
    %3730 = vmatpush1.msra.mxu0 0.0
    %3731 = vmatprep.subr.mxu0 0.0
    %3732 = vmatpush1.msra.mxu0 0.0
    %3733 = vmatprep.subr.mxu0 0.0
    %3734 = vmatpush1.msra.mxu0 0.0
    %3735 = vmatprep.subr.mxu0 0.0
    %3736 = vmatpush1.msra.mxu0 0.0
    %3737 = vmatprep.subr.mxu0 0.0
    %3738 = vmatpush1.msra.mxu0 0.0
    %3739 = vmatprep.subr.mxu0 0.0
    %3740 = vmatpush1.msra.mxu0 0.0
    %3741 = vmatprep.subr.mxu0 0.0
    %3742 = vmatpush1.msra.mxu0 0.0
    %3743 = vmatprep.subr.mxu0 0.0
    %3744 = vmatpush1.msra.mxu0 0.0
    %3745 = vmatprep.subr.mxu0 0.0
    %3746 = vmatpush1.msra.mxu0 0.0
    %3747 = vmatprep.subr.mxu0 0.0
    %3748 = vmatpush1.msra.mxu0 0.0
    %3749 = vmatprep.subr.mxu0 0.0
    %3750 = vmatpush1.msra.mxu0 0.0
    %3751 = vmatprep.mubr.f32.mxu0 0.0
    %3752 = vmatmul.mubr.f32.gmra.mrb[0].mxu0 %v3685
    %v3753 = vpop.f32.mrb[0].mxu0
    %v3754 = vadd.f32 0.0, %v3753
    %v3755 = vpop.f32.mrb[0].mxu0
    %3756 = vdwg.mxu0
    %v3758 = vsel %vm3683, %v3584, 0
    %3760 = vmatprep.subr.mxu0 0.0
    %3761 = vmatpush1.msra.mxu0 %v3587
    %3762 = vmatprep.subr.mxu0 0.0
    %3763 = vmatpush1.msra.mxu0 %v3588
    %3764 = vmatprep.subr.mxu0 0.0
    %3765 = vmatpush1.msra.mxu0 %v3589
    %3766 = vmatprep.subr.mxu0 0.0
    %3767 = vmatpush1.msra.mxu0 %v3590
    %3768 = vmatprep.subr.mxu0 0.0
    %3769 = vmatpush1.msra.mxu0 %v3591
    %3770 = vmatprep.subr.mxu0 0.0
    %3771 = vmatpush1.msra.mxu0 %v3592
    %3772 = vmatprep.subr.mxu0 0.0
    %3773 = vmatpush1.msra.mxu0 %v3593
    %3774 = vmatprep.subr.mxu0 0.0
    %3775 = vmatpush1.msra.mxu0 %v3594
    %3776 = vmatprep.subr.mxu0 0.0
    %3777 = vmatpush1.msra.mxu0 %v3595
    %3778 = vmatprep.subr.mxu0 0.0
    %3779 = vmatpush1.msra.mxu0 %v3596
    %3780 = vmatprep.subr.mxu0 0.0
    %3781 = vmatpush1.msra.mxu0 0.0
    %3782 = vmatprep.subr.mxu0 0.0
    %3783 = vmatpush1.msra.mxu0 0.0
    %3784 = vmatprep.subr.mxu0 0.0
    %3785 = vmatpush1.msra.mxu0 0.0
    %3786 = vmatprep.subr.mxu0 0.0
    %3787 = vmatpush1.msra.mxu0 0.0
    %3788 = vmatprep.subr.mxu0 0.0
    %3789 = vmatpush1.msra.mxu0 0.0
    %3790 = vmatprep.subr.mxu0 0.0
    %3791 = vmatpush1.msra.mxu0 0.0
    %3792 = vmatprep.subr.mxu0 0.0
    %3793 = vmatpush1.msra.mxu0 0.0
    %3794 = vmatprep.subr.mxu0 0.0
    %3795 = vmatpush1.msra.mxu0 0.0
    %3796 = vmatprep.subr.mxu0 0.0
    %3797 = vmatpush1.msra.mxu0 0.0
    %3798 = vmatprep.subr.mxu0 0.0
    %3799 = vmatpush1.msra.mxu0 0.0
    %3800 = vmatprep.subr.mxu0 0.0
    %3801 = vmatpush1.msra.mxu0 0.0
    %3802 = vmatprep.subr.mxu0 0.0
    %3803 = vmatpush1.msra.mxu0 0.0
    %3804 = vmatprep.subr.mxu0 0.0
    %3805 = vmatpush1.msra.mxu0 0.0
    %3806 = vmatprep.subr.mxu0 0.0
    %3807 = vmatpush1.msra.mxu0 0.0
    %3808 = vmatprep.subr.mxu0 0.0
    %3809 = vmatpush1.msra.mxu0 0.0
    %3810 = vmatprep.subr.mxu0 0.0
    %3811 = vmatpush1.msra.mxu0 0.0
    %3812 = vmatprep.subr.mxu0 0.0
    %3813 = vmatpush1.msra.mxu0 0.0
    %3814 = vmatprep.subr.mxu0 0.0
    %3815 = vmatpush1.msra.mxu0 0.0
    %3816 = vmatprep.subr.mxu0 0.0
    %3817 = vmatpush1.msra.mxu0 0.0
    %3818 = vmatprep.subr.mxu0 0.0
    %3819 = vmatpush1.msra.mxu0 0.0
    %3820 = vmatprep.subr.mxu0 0.0
    %3821 = vmatpush1.msra.mxu0 0.0
    %3822 = vmatprep.subr.mxu0 0.0
    %3823 = vmatpush1.msra.mxu0 0.0
    %3824 = vmatprep.mubr.f32.mxu0 0.0
    %3825 = vmatmul.mubr.f32.gmra.mrb[0].mxu0 %v3758
    %v3826 = vpop.f32.mrb[0].mxu0
    %v3827 = vadd.f32 %v3754, %v3826
    %v3828 = vpop.f32.mrb[0].mxu0
    %3829 = vdwg.mxu0
    %s3830 = scalar_lea.vmem %s11, 4
    %v3831 = vld [vmem:[%s3830] sm:$0x3]
    %v3833 = vsel %vm3509, %v3831, 0
    %3835 = vmatprep.subr.mxu0 0.0
    %3836 = vmatpush1.msra.mxu0 %v3506
    %3837 = vmatprep.subr.mxu0 0.0
    %3838 = vmatpush1.msra.mxu0 %v3515
    %3839 = vmatprep.subr.mxu0 0.0
    %3840 = vmatpush1.msra.mxu0 0.0
    %3841 = vmatprep.subr.mxu0 0.0
    %3842 = vmatpush1.msra.mxu0 0.0
    %3843 = vmatprep.subr.mxu0 0.0
    %3844 = vmatpush1.msra.mxu0 0.0
    %3845 = vmatprep.subr.mxu0 0.0
    %3846 = vmatpush1.msra.mxu0 0.0
    %3847 = vmatprep.subr.mxu0 0.0
    %3848 = vmatpush1.msra.mxu0 0.0
    %3849 = vmatprep.subr.mxu0 0.0
    %3850 = vmatpush1.msra.mxu0 0.0
    %3851 = vmatprep.subr.mxu0 0.0
    %3852 = vmatpush1.msra.mxu0 0.0
    %3853 = vmatprep.subr.mxu0 0.0
    %3854 = vmatpush1.msra.mxu0 0.0
    %3855 = vmatprep.subr.mxu0 0.0
    %3856 = vmatpush1.msra.mxu0 0.0
    %3857 = vmatprep.subr.mxu0 0.0
    %3858 = vmatpush1.msra.mxu0 0.0
    %3859 = vmatprep.subr.mxu0 0.0
    %3860 = vmatpush1.msra.mxu0 0.0
    %3861 = vmatprep.subr.mxu0 0.0
    %3862 = vmatpush1.msra.mxu0 0.0
    %3863 = vmatprep.subr.mxu0 0.0
    %3864 = vmatpush1.msra.mxu0 0.0
    %3865 = vmatprep.subr.mxu0 0.0
    %3866 = vmatpush1.msra.mxu0 0.0
    %3867 = vmatprep.subr.mxu0 0.0
    %3868 = vmatpush1.msra.mxu0 0.0
    %3869 = vmatprep.subr.mxu0 0.0
    %3870 = vmatpush1.msra.mxu0 0.0
    %3871 = vmatprep.subr.mxu0 0.0
    %3872 = vmatpush1.msra.mxu0 0.0
    %3873 = vmatprep.subr.mxu0 0.0
    %3874 = vmatpush1.msra.mxu0 0.0
    %3875 = vmatprep.subr.mxu0 0.0
    %3876 = vmatpush1.msra.mxu0 0.0
    %3877 = vmatprep.subr.mxu0 0.0
    %3878 = vmatpush1.msra.mxu0 0.0
    %3879 = vmatprep.subr.mxu0 0.0
    %3880 = vmatpush1.msra.mxu0 0.0
    %3881 = vmatprep.subr.mxu0 0.0
    %3882 = vmatpush1.msra.mxu0 0.0
    %3883 = vmatprep.subr.mxu0 0.0
    %3884 = vmatpush1.msra.mxu0 0.0
    %3885 = vmatprep.subr.mxu0 0.0
    %3886 = vmatpush1.msra.mxu0 0.0
    %3887 = vmatprep.subr.mxu0 0.0
    %3888 = vmatpush1.msra.mxu0 0.0
    %3889 = vmatprep.subr.mxu0 0.0
    %3890 = vmatpush1.msra.mxu0 0.0
    %3891 = vmatprep.subr.mxu0 0.0
    %3892 = vmatpush1.msra.mxu0 0.0
    %3893 = vmatprep.subr.mxu0 0.0
    %3894 = vmatpush1.msra.mxu0 0.0
    %3895 = vmatprep.subr.mxu0 0.0
    %3896 = vmatpush1.msra.mxu0 0.0
    %3897 = vmatprep.subr.mxu0 0.0
    %3898 = vmatpush1.msra.mxu0 0.0
    %3899 = vmatprep.mubr.f32.mxu0 0.0
    %3900 = vmatmul.mubr.f32.gmra.mrb[0].mxu0 %v3833
    %v3901 = vpop.f32.mrb[0].mxu0
    %v3902 = vadd.f32 0.0, %v3901
    %v3903 = vpop.f32.mrb[0].mxu0
    %3904 = vdwg.mxu0
    %s3905 = scalar_lea.vmem %s12, 160
    %v3906 = vld [vmem:[%s3905] sm:$0xff]
    %v3907 = vld [vmem:[%s3905 + $0x8] sm:$0xff]
    %v3908 = vld [vmem:[%s3905 + $0x10] sm:$0xff]
    %v3909 = vld [vmem:[%s3905 + $0x18] sm:$0xff]
    %v3910 = vld [vmem:[%s3905 + $0x20] sm:$0xff]
    %v3911 = vld [vmem:[%s3905 + $0x28] sm:$0xff]
    %v3912 = vld [vmem:[%s3905 + $0x30] sm:$0xff]
    %v3913 = vld [vmem:[%s3905 + $0x38] sm:$0xff]
    %v3914 = vld [vmem:[%s3905 + $0x40] sm:$0xff]
    %v3915 = vld [vmem:[%s3905 + $0x48] sm:$0xff]
    %v3917 = vsel %vm3683, %v3902, 0
    %3919 = vmatprep.subr.mxu0 0.0
    %3920 = vmatpush1.msra.mxu0 %v3906
    %3921 = vmatprep.subr.mxu0 0.0
    %3922 = vmatpush1.msra.mxu0 %v3907
    %3923 = vmatprep.subr.mxu0 0.0
    %3924 = vmatpush1.msra.mxu0 %v3908
    %3925 = vmatprep.subr.mxu0 0.0
    %3926 = vmatpush1.msra.mxu0 %v3909
    %3927 = vmatprep.subr.mxu0 0.0
    %3928 = vmatpush1.msra.mxu0 %v3910
    %3929 = vmatprep.subr.mxu0 0.0
    %3930 = vmatpush1.msra.mxu0 %v3911
    %3931 = vmatprep.subr.mxu0 0.0
    %3932 = vmatpush1.msra.mxu0 %v3912
    %3933 = vmatprep.subr.mxu0 0.0
    %3934 = vmatpush1.msra.mxu0 %v3913
    %3935 = vmatprep.subr.mxu0 0.0
    %3936 = vmatpush1.msra.mxu0 %v3914
    %3937 = vmatprep.subr.mxu0 0.0
    %3938 = vmatpush1.msra.mxu0 %v3915
    %3939 = vmatprep.subr.mxu0 0.0
    %3940 = vmatpush1.msra.mxu0 0.0
    %3941 = vmatprep.subr.mxu0 0.0
    %3942 = vmatpush1.msra.mxu0 0.0
    %3943 = vmatprep.subr.mxu0 0.0
    %3944 = vmatpush1.msra.mxu0 0.0
    %3945 = vmatprep.subr.mxu0 0.0
    %3946 = vmatpush1.msra.mxu0 0.0
    %3947 = vmatprep.subr.mxu0 0.0
    %3948 = vmatpush1.msra.mxu0 0.0
    %3949 = vmatprep.subr.mxu0 0.0
    %3950 = vmatpush1.msra.mxu0 0.0
    %3951 = vmatprep.subr.mxu0 0.0
    %3952 = vmatpush1.msra.mxu0 0.0
    %3953 = vmatprep.subr.mxu0 0.0
    %3954 = vmatpush1.msra.mxu0 0.0
    %3955 = vmatprep.subr.mxu0 0.0
    %3956 = vmatpush1.msra.mxu0 0.0
    %3957 = vmatprep.subr.mxu0 0.0
    %3958 = vmatpush1.msra.mxu0 0.0
    %3959 = vmatprep.subr.mxu0 0.0
    %3960 = vmatpush1.msra.mxu0 0.0
    %3961 = vmatprep.subr.mxu0 0.0
    %3962 = vmatpush1.msra.mxu0 0.0
    %3963 = vmatprep.subr.mxu0 0.0
    %3964 = vmatpush1.msra.mxu0 0.0
    %3965 = vmatprep.subr.mxu0 0.0
    %3966 = vmatpush1.msra.mxu0 0.0
    %3967 = vmatprep.subr.mxu0 0.0
    %3968 = vmatpush1.msra.mxu0 0.0
    %3969 = vmatprep.subr.mxu0 0.0
    %3970 = vmatpush1.msra.mxu0 0.0
    %3971 = vmatprep.subr.mxu0 0.0
    %3972 = vmatpush1.msra.mxu0 0.0
    %3973 = vmatprep.subr.mxu0 0.0
    %3974 = vmatpush1.msra.mxu0 0.0
    %3975 = vmatprep.subr.mxu0 0.0
    %3976 = vmatpush1.msra.mxu0 0.0
    %3977 = vmatprep.subr.mxu0 0.0
    %3978 = vmatpush1.msra.mxu0 0.0
    %3979 = vmatprep.subr.mxu0 0.0
    %3980 = vmatpush1.msra.mxu0 0.0
    %3981 = vmatprep.subr.mxu0 0.0
    %3982 = vmatpush1.msra.mxu0 0.0
    %3983 = vmatprep.mubr.f32.mxu0 0.0
    %3984 = vmatmul.mubr.f32.gmra.mrb[0].mxu0 %v3917
    %v3985 = vpop.f32.mrb[0].mxu0
    %v3986 = vadd.f32 0.0, %v3985
    %v3987 = vpop.f32.mrb[0].mxu0
    %3988 = vdwg.mxu0
    %v3989 = vadd.f32 %v3827, %v3986
    %s3990 = scalar_lea.vmem %s11, 6
    %v3991 = vld [vmem:[%s3990] sm:$0x3]
    %v3993 = vsel %vm3509, %v3991, 0
    %3995 = vmatprep.subr.mxu0 0.0
    %3996 = vmatpush1.msra.mxu0 %v3506
    %3997 = vmatprep.subr.mxu0 0.0
    %3998 = vmatpush1.msra.mxu0 %v3515
    %3999 = vmatprep.subr.mxu0 0.0
    %4000 = vmatpush1.msra.mxu0 0.0
    %4001 = vmatprep.subr.mxu0 0.0
    %4002 = vmatpush1.msra.mxu0 0.0
    %4003 = vmatprep.subr.mxu0 0.0
    %4004 = vmatpush1.msra.mxu0 0.0
    %4005 = vmatprep.subr.mxu0 0.0
    %4006 = vmatpush1.msra.mxu0 0.0
    %4007 = vmatprep.subr.mxu0 0.0
    %4008 = vmatpush1.msra.mxu0 0.0
    %4009 = vmatprep.subr.mxu0 0.0
    %4010 = vmatpush1.msra.mxu0 0.0
    %4011 = vmatprep.subr.mxu0 0.0
    %4012 = vmatpush1.msra.mxu0 0.0
    %4013 = vmatprep.subr.mxu0 0.0
    %4014 = vmatpush1.msra.mxu0 0.0
    %4015 = vmatprep.subr.mxu0 0.0
    %4016 = vmatpush1.msra.mxu0 0.0
    %4017 = vmatprep.subr.mxu0 0.0
    %4018 = vmatpush1.msra.mxu0 0.0
    %4019 = vmatprep.subr.mxu0 0.0
    %4020 = vmatpush1.msra.mxu0 0.0
    %4021 = vmatprep.subr.mxu0 0.0
    %4022 = vmatpush1.msra.mxu0 0.0
    %4023 = vmatprep.subr.mxu0 0.0
    %4024 = vmatpush1.msra.mxu0 0.0
    %4025 = vmatprep.subr.mxu0 0.0
    %4026 = vmatpush1.msra.mxu0 0.0
    %4027 = vmatprep.subr.mxu0 0.0
    %4028 = vmatpush1.msra.mxu0 0.0
    %4029 = vmatprep.subr.mxu0 0.0
    %4030 = vmatpush1.msra.mxu0 0.0
    %4031 = vmatprep.subr.mxu0 0.0
    %4032 = vmatpush1.msra.mxu0 0.0
    %4033 = vmatprep.subr.mxu0 0.0
    %4034 = vmatpush1.msra.mxu0 0.0
    %4035 = vmatprep.subr.mxu0 0.0
    %4036 = vmatpush1.msra.mxu0 0.0
    %4037 = vmatprep.subr.mxu0 0.0
    %4038 = vmatpush1.msra.mxu0 0.0
    %4039 = vmatprep.subr.mxu0 0.0
    %4040 = vmatpush1.msra.mxu0 0.0
    %4041 = vmatprep.subr.mxu0 0.0
    %4042 = vmatpush1.msra.mxu0 0.0
    %4043 = vmatprep.subr.mxu0 0.0
    %4044 = vmatpush1.msra.mxu0 0.0
    %4045 = vmatprep.subr.mxu0 0.0
    %4046 = vmatpush1.msra.mxu0 0.0
    %4047 = vmatprep.subr.mxu0 0.0
    %4048 = vmatpush1.msra.mxu0 0.0
    %4049 = vmatprep.subr.mxu0 0.0
    %4050 = vmatpush1.msra.mxu0 0.0
    %4051 = vmatprep.subr.mxu0 0.0
    %4052 = vmatpush1.msra.mxu0 0.0
    %4053 = vmatprep.subr.mxu0 0.0
    %4054 = vmatpush1.msra.mxu0 0.0
    %4055 = vmatprep.subr.mxu0 0.0
    %4056 = vmatpush1.msra.mxu0 0.0
    %4057 = vmatprep.subr.mxu0 0.0
    %4058 = vmatpush1.msra.mxu0 0.0
    %4059 = vmatprep.mubr.f32.mxu0 0.0
    %4060 = vmatmul.mubr.f32.gmra.mrb[0].mxu0 %v3993
    %v4061 = vpop.f32.mrb[0].mxu0
    %v4062 = vadd.f32 0.0, %v4061
    %v4063 = vpop.f32.mrb[0].mxu0
    %4064 = vdwg.mxu0
    %s4065 = scalar_lea.vmem %s12, 240
    %v4066 = vld [vmem:[%s4065] sm:$0xff]
    %v4067 = vld [vmem:[%s4065 + $0x8] sm:$0xff]
    %v4068 = vld [vmem:[%s4065 + $0x10] sm:$0xff]
    %v4069 = vld [vmem:[%s4065 + $0x18] sm:$0xff]
    %v4070 = vld [vmem:[%s4065 + $0x20] sm:$0xff]
    %v4071 = vld [vmem:[%s4065 + $0x28] sm:$0xff]
    %v4072 = vld [vmem:[%s4065 + $0x30] sm:$0xff]
    %v4073 = vld [vmem:[%s4065 + $0x38] sm:$0xff]
    %v4074 = vld [vmem:[%s4065 + $0x40] sm:$0xff]
    %v4075 = vld [vmem:[%s4065 + $0x48] sm:$0xff]
    %v4077 = vsel %vm3683, %v4062, 0
    %4079 = vmatprep.subr.mxu0 0.0
    %4080 = vmatpush1.msra.mxu0 %v4066
    %4081 = vmatprep.subr.mxu0 0.0
    %4082 = vmatpush1.msra.mxu0 %v4067
    %4083 = vmatprep.subr.mxu0 0.0
    %4084 = vmatpush1.msra.mxu0 %v4068
    %4085 = vmatprep.subr.mxu0 0.0
    %4086 = vmatpush1.msra.mxu0 %v4069
    %4087 = vmatprep.subr.mxu0 0.0
    %4088 = vmatpush1.msra.mxu0 %v4070
    %4089 = vmatprep.subr.mxu0 0.0
    %4090 = vmatpush1.msra.mxu0 %v4071
    %4091 = vmatprep.subr.mxu0 0.0
    %4092 = vmatpush1.msra.mxu0 %v4072
    %4093 = vmatprep.subr.mxu0 0.0
    %4094 = vmatpush1.msra.mxu0 %v4073
    %4095 = vmatprep.subr.mxu0 0.0
    %4096 = vmatpush1.msra.mxu0 %v4074
    %4097 = vmatprep.subr.mxu0 0.0
    %4098 = vmatpush1.msra.mxu0 %v4075
    %4099 = vmatprep.subr.mxu0 0.0
    %4100 = vmatpush1.msra.mxu0 0.0
    %4101 = vmatprep.subr.mxu0 0.0
    %4102 = vmatpush1.msra.mxu0 0.0
    %4103 = vmatprep.subr.mxu0 0.0
    %4104 = vmatpush1.msra.mxu0 0.0
    %4105 = vmatprep.subr.mxu0 0.0
    %4106 = vmatpush1.msra.mxu0 0.0
    %4107 = vmatprep.subr.mxu0 0.0
    %4108 = vmatpush1.msra.mxu0 0.0
    %4109 = vmatprep.subr.mxu0 0.0
    %4110 = vmatpush1.msra.mxu0 0.0
    %4111 = vmatprep.subr.mxu0 0.0
    %4112 = vmatpush1.msra.mxu0 0.0
    %4113 = vmatprep.subr.mxu0 0.0
    %4114 = vmatpush1.msra.mxu0 0.0
    %4115 = vmatprep.subr.mxu0 0.0
    %4116 = vmatpush1.msra.mxu0 0.0
    %4117 = vmatprep.subr.mxu0 0.0
    %4118 = vmatpush1.msra.mxu0 0.0
    %4119 = vmatprep.subr.mxu0 0.0
    %4120 = vmatpush1.msra.mxu0 0.0
    %4121 = vmatprep.subr.mxu0 0.0
    %4122 = vmatpush1.msra.mxu0 0.0
    %4123 = vmatprep.subr.mxu0 0.0
    %4124 = vmatpush1.msra.mxu0 0.0
    %4125 = vmatprep.subr.mxu0 0.0
    %4126 = vmatpush1.msra.mxu0 0.0
    %4127 = vmatprep.subr.mxu0 0.0
    %4128 = vmatpush1.msra.mxu0 0.0
    %4129 = vmatprep.subr.mxu0 0.0
    %4130 = vmatpush1.msra.mxu0 0.0
    %4131 = vmatprep.subr.mxu0 0.0
    %4132 = vmatpush1.msra.mxu0 0.0
    %4133 = vmatprep.subr.mxu0 0.0
    %4134 = vmatpush1.msra.mxu0 0.0
    %4135 = vmatprep.subr.mxu0 0.0
    %4136 = vmatpush1.msra.mxu0 0.0
    %4137 = vmatprep.subr.mxu0 0.0
    %4138 = vmatpush1.msra.mxu0 0.0
    %4139 = vmatprep.subr.mxu0 0.0
    %4140 = vmatpush1.msra.mxu0 0.0
    %4141 = vmatprep.subr.mxu0 0.0
    %4142 = vmatpush1.msra.mxu0 0.0
    %4143 = vmatprep.mubr.f32.mxu0 0.0
    %4144 = vmatmul.mubr.f32.gmra.mrb[0].mxu0 %v4077
    %v4145 = vpop.f32.mrb[0].mxu0
    %v4146 = vadd.f32 0.0, %v4145
    %v4147 = vpop.f32.mrb[0].mxu0
    %4148 = vdwg.mxu0
    %v4149 = vadd.f32 %v3989, %v4146
    %s4150 = scalar_lea.vmem %s11, 8
    %v4151 = vld [vmem:[%s4150] sm:$0x3]
    %v4153 = vsel %vm3509, %v4151, 0
    %4155 = vmatprep.subr.mxu0 0.0
    %4156 = vmatpush1.msra.mxu0 %v3506
    %4157 = vmatprep.subr.mxu0 0.0
    %4158 = vmatpush1.msra.mxu0 %v3515
    %4159 = vmatprep.subr.mxu0 0.0
    %4160 = vmatpush1.msra.mxu0 0.0
    %4161 = vmatprep.subr.mxu0 0.0
    %4162 = vmatpush1.msra.mxu0 0.0
    %4163 = vmatprep.subr.mxu0 0.0
    %4164 = vmatpush1.msra.mxu0 0.0
    %4165 = vmatprep.subr.mxu0 0.0
    %4166 = vmatpush1.msra.mxu0 0.0
    %4167 = vmatprep.subr.mxu0 0.0
    %4168 = vmatpush1.msra.mxu0 0.0
    %4169 = vmatprep.subr.mxu0 0.0
    %4170 = vmatpush1.msra.mxu0 0.0
    %4171 = vmatprep.subr.mxu0 0.0
    %4172 = vmatpush1.msra.mxu0 0.0
    %4173 = vmatprep.subr.mxu0 0.0
    %4174 = vmatpush1.msra.mxu0 0.0
    %4175 = vmatprep.subr.mxu0 0.0
    %4176 = vmatpush1.msra.mxu0 0.0
    %4177 = vmatprep.subr.mxu0 0.0
    %4178 = vmatpush1.msra.mxu0 0.0
    %4179 = vmatprep.subr.mxu0 0.0
    %4180 = vmatpush1.msra.mxu0 0.0
    %4181 = vmatprep.subr.mxu0 0.0
    %4182 = vmatpush1.msra.mxu0 0.0
    %4183 = vmatprep.subr.mxu0 0.0
    %4184 = vmatpush1.msra.mxu0 0.0
    %4185 = vmatprep.subr.mxu0 0.0
    %4186 = vmatpush1.msra.mxu0 0.0
    %4187 = vmatprep.subr.mxu0 0.0
    %4188 = vmatpush1.msra.mxu0 0.0
    %4189 = vmatprep.subr.mxu0 0.0
    %4190 = vmatpush1.msra.mxu0 0.0
    %4191 = vmatprep.subr.mxu0 0.0
    %4192 = vmatpush1.msra.mxu0 0.0
    %4193 = vmatprep.subr.mxu0 0.0
    %4194 = vmatpush1.msra.mxu0 0.0
    %4195 = vmatprep.subr.mxu0 0.0
    %4196 = vmatpush1.msra.mxu0 0.0
    %4197 = vmatprep.subr.mxu0 0.0
    %4198 = vmatpush1.msra.mxu0 0.0
    %4199 = vmatprep.subr.mxu0 0.0
    %4200 = vmatpush1.msra.mxu0 0.0
    %4201 = vmatprep.subr.mxu0 0.0
    %4202 = vmatpush1.msra.mxu0 0.0
    %4203 = vmatprep.subr.mxu0 0.0
    %4204 = vmatpush1.msra.mxu0 0.0
    %4205 = vmatprep.subr.mxu0 0.0
    %4206 = vmatpush1.msra.mxu0 0.0
    %4207 = vmatprep.subr.mxu0 0.0
    %4208 = vmatpush1.msra.mxu0 0.0
    %4209 = vmatprep.subr.mxu0 0.0
    %4210 = vmatpush1.msra.mxu0 0.0
    %4211 = vmatprep.subr.mxu0 0.0
    %4212 = vmatpush1.msra.mxu0 0.0
    %4213 = vmatprep.subr.mxu0 0.0
    %4214 = vmatpush1.msra.mxu0 0.0
    %4215 = vmatprep.subr.mxu0 0.0
    %4216 = vmatpush1.msra.mxu0 0.0
    %4217 = vmatprep.subr.mxu0 0.0
    %4218 = vmatpush1.msra.mxu0 0.0
    %4219 = vmatprep.mubr.f32.mxu0 0.0
    %4220 = vmatmul.mubr.f32.gmra.mrb[0].mxu0 %v4153
    %v4221 = vpop.f32.mrb[0].mxu0
    %v4222 = vadd.f32 0.0, %v4221
    %v4223 = vpop.f32.mrb[0].mxu0
    %4224 = vdwg.mxu0
    %s4225 = scalar_lea.vmem %s12, 320
    %v4226 = vld [vmem:[%s4225] sm:$0xff]
    %v4227 = vld [vmem:[%s4225 + $0x8] sm:$0xff]
    %v4228 = vld [vmem:[%s4225 + $0x10] sm:$0xff]
    %v4229 = vld [vmem:[%s4225 + $0x18] sm:$0xff]
    %v4230 = vld [vmem:[%s4225 + $0x20] sm:$0xff]
    %v4231 = vld [vmem:[%s4225 + $0x28] sm:$0xff]
    %v4232 = vld [vmem:[%s4225 + $0x30] sm:$0xff]
    %v4233 = vld [vmem:[%s4225 + $0x38] sm:$0xff]
    %v4234 = vld [vmem:[%s4225 + $0x40] sm:$0xff]
    %v4235 = vld [vmem:[%s4225 + $0x48] sm:$0xff]
    %v4237 = vsel %vm3683, %v4222, 0
    %4239 = vmatprep.subr.mxu0 0.0
    %4240 = vmatpush1.msra.mxu0 %v4226
    %4241 = vmatprep.subr.mxu0 0.0
    %4242 = vmatpush1.msra.mxu0 %v4227
    %4243 = vmatprep.subr.mxu0 0.0
    %4244 = vmatpush1.msra.mxu0 %v4228
    %4245 = vmatprep.subr.mxu0 0.0
    %4246 = vmatpush1.msra.mxu0 %v4229
    %4247 = vmatprep.subr.mxu0 0.0
    %4248 = vmatpush1.msra.mxu0 %v4230
    %4249 = vmatprep.subr.mxu0 0.0
    %4250 = vmatpush1.msra.mxu0 %v4231
    %4251 = vmatprep.subr.mxu0 0.0
    %4252 = vmatpush1.msra.mxu0 %v4232
    %4253 = vmatprep.subr.mxu0 0.0
    %4254 = vmatpush1.msra.mxu0 %v4233
    %4255 = vmatprep.subr.mxu0 0.0
    %4256 = vmatpush1.msra.mxu0 %v4234
    %4257 = vmatprep.subr.mxu0 0.0
    %4258 = vmatpush1.msra.mxu0 %v4235
    %4259 = vmatprep.subr.mxu0 0.0
    %4260 = vmatpush1.msra.mxu0 0.0
    %4261 = vmatprep.subr.mxu0 0.0
    %4262 = vmatpush1.msra.mxu0 0.0
    %4263 = vmatprep.subr.mxu0 0.0
    %4264 = vmatpush1.msra.mxu0 0.0
    %4265 = vmatprep.subr.mxu0 0.0
    %4266 = vmatpush1.msra.mxu0 0.0
    %4267 = vmatprep.subr.mxu0 0.0
    %4268 = vmatpush1.msra.mxu0 0.0
    %4269 = vmatprep.subr.mxu0 0.0
    %4270 = vmatpush1.msra.mxu0 0.0
    %4271 = vmatprep.subr.mxu0 0.0
    %4272 = vmatpush1.msra.mxu0 0.0
    %4273 = vmatprep.subr.mxu0 0.0
    %4274 = vmatpush1.msra.mxu0 0.0
    %4275 = vmatprep.subr.mxu0 0.0
    %4276 = vmatpush1.msra.mxu0 0.0
    %4277 = vmatprep.subr.mxu0 0.0
    %4278 = vmatpush1.msra.mxu0 0.0
    %4279 = vmatprep.subr.mxu0 0.0
    %4280 = vmatpush1.msra.mxu0 0.0
    %4281 = vmatprep.subr.mxu0 0.0
    %4282 = vmatpush1.msra.mxu0 0.0
    %4283 = vmatprep.subr.mxu0 0.0
    %4284 = vmatpush1.msra.mxu0 0.0
    %4285 = vmatprep.subr.mxu0 0.0
    %4286 = vmatpush1.msra.mxu0 0.0
    %4287 = vmatprep.subr.mxu0 0.0
    %4288 = vmatpush1.msra.mxu0 0.0
    %4289 = vmatprep.subr.mxu0 0.0
    %4290 = vmatpush1.msra.mxu0 0.0
    %4291 = vmatprep.subr.mxu0 0.0
    %4292 = vmatpush1.msra.mxu0 0.0
    %4293 = vmatprep.subr.mxu0 0.0
    %4294 = vmatpush1.msra.mxu0 0.0
    %4295 = vmatprep.subr.mxu0 0.0
    %4296 = vmatpush1.msra.mxu0 0.0
    %4297 = vmatprep.subr.mxu0 0.0
    %4298 = vmatpush1.msra.mxu0 0.0
    %4299 = vmatprep.subr.mxu0 0.0
    %4300 = vmatpush1.msra.mxu0 0.0
    %4301 = vmatprep.subr.mxu0 0.0
    %4302 = vmatpush1.msra.mxu0 0.0
    %4303 = vmatprep.mubr.f32.mxu0 0.0
    %4304 = vmatmul.mubr.f32.gmra.mrb[0].mxu0 %v4237
    %v4305 = vpop.f32.mrb[0].mxu0
    %v4306 = vadd.f32 0.0, %v4305
    %v4307 = vpop.f32.mrb[0].mxu0
    %4308 = vdwg.mxu0
    %v4309 = vadd.f32 %v4149, %v4306
    %v4310 = vld [vmem:[%s13] sm:$0x1]
    %v4312 = vlaneseq
    %v4313 = vshrl.u32 %v4312, 7
    %v4314 = vsub.s32 0, %v4313
    %v4315 = vrot.slane %v4310, %v4314
    %v4317 = vadd.f32 %v4309, %v4315
    %v4318 = vmax.f32 %v4317, 0.0
    %v4319 = vld [vmem:[%s14] sm:$0xff]
    %v4320 = vld [vmem:[%s14 + $0x8] sm:$0xff]
    %v4321 = vld [vmem:[%s14 + $0x10] sm:$0xff]
    %v4322 = vld [vmem:[%s14 + $0x18] sm:$0xff]
    %v4323 = vld [vmem:[%s14 + $0x20] sm:$0xff]
    %v4324 = vld [vmem:[%s14 + $0x28] sm:$0xff]
    %v4325 = vld [vmem:[%s14 + $0x30] sm:$0xff]
    %v4326 = vld [vmem:[%s14 + $0x38] sm:$0xff]
    %v4327 = vld [vmem:[%s14 + $0x40] sm:$0xff]
    %v4328 = vld [vmem:[%s14 + $0x48] sm:$0xff]
    %v4329 = vld [vmem:[%s14 + $0x50] sm:$0xff]
    %v4330 = vld [vmem:[%s14 + $0x58] sm:$0xff]
    %v4331 = vld [vmem:[%s14 + $0x60] sm:$0xff]
    %v4332 = vld [vmem:[%s14 + $0x68] sm:$0xff]
    %v4333 = vld [vmem:[%s14 + $0x70] sm:$0xff]
    %v4334 = vld [vmem:[%s15] sm:$0x1]
    %v4336 = vlaneseq
    %v4337 = vshrl.u32 %v4336, 7
    %v4338 = vsub.s32 0, %v4337
    %v4339 = vrot.slane %v4334, %v4338
    %vm4341 = vcmask 982016
    %v4343 = vsel %vm4341, %v4318, 0
    %4345 = vmatprep.subr.mxu0 0.0
    %4346 = vmatpush1.msra.mxu0 %v4319
    %4347 = vmatprep.subr.mxu0 0.0
    %4348 = vmatpush1.msra.mxu0 %v4320
    %4349 = vmatprep.subr.mxu0 0.0
    %4350 = vmatpush1.msra.mxu0 %v4321
    %4351 = vmatprep.subr.mxu0 0.0
    %4352 = vmatpush1.msra.mxu0 %v4322
    %4353 = vmatprep.subr.mxu0 0.0
    %4354 = vmatpush1.msra.mxu0 %v4323
    %4355 = vmatprep.subr.mxu0 0.0
    %4356 = vmatpush1.msra.mxu0 %v4324
    %4357 = vmatprep.subr.mxu0 0.0
    %4358 = vmatpush1.msra.mxu0 %v4325
    %4359 = vmatprep.subr.mxu0 0.0
    %4360 = vmatpush1.msra.mxu0 %v4326
    %4361 = vmatprep.subr.mxu0 0.0
    %4362 = vmatpush1.msra.mxu0 %v4327
    %4363 = vmatprep.subr.mxu0 0.0
    %4364 = vmatpush1.msra.mxu0 %v4328
    %4365 = vmatprep.subr.mxu0 0.0
    %4366 = vmatpush1.msra.mxu0 %v4329
    %4367 = vmatprep.subr.mxu0 0.0
    %4368 = vmatpush1.msra.mxu0 %v4330
    %4369 = vmatprep.subr.mxu0 0.0
    %4370 = vmatpush1.msra.mxu0 %v4331
    %4371 = vmatprep.subr.mxu0 0.0
    %4372 = vmatpush1.msra.mxu0 %v4332
    %4373 = vmatprep.subr.mxu0 0.0
    %4374 = vmatpush1.msra.mxu0 %v4333
    %4375 = vmatprep.subr.mxu0 0.0
    %4376 = vmatpush1.msra.mxu0 0.0
    %4377 = vmatprep.subr.mxu0 0.0
    %4378 = vmatpush1.msra.mxu0 0.0
    %4379 = vmatprep.subr.mxu0 0.0
    %4380 = vmatpush1.msra.mxu0 0.0
    %4381 = vmatprep.subr.mxu0 0.0
    %4382 = vmatpush1.msra.mxu0 0.0
    %4383 = vmatprep.subr.mxu0 0.0
    %4384 = vmatpush1.msra.mxu0 0.0
    %4385 = vmatprep.subr.mxu0 0.0
    %4386 = vmatpush1.msra.mxu0 0.0
    %4387 = vmatprep.subr.mxu0 0.0
    %4388 = vmatpush1.msra.mxu0 0.0
    %4389 = vmatprep.subr.mxu0 0.0
    %4390 = vmatpush1.msra.mxu0 0.0
    %4391 = vmatprep.subr.mxu0 0.0
    %4392 = vmatpush1.msra.mxu0 0.0
    %4393 = vmatprep.subr.mxu0 0.0
    %4394 = vmatpush1.msra.mxu0 0.0
    %4395 = vmatprep.subr.mxu0 0.0
    %4396 = vmatpush1.msra.mxu0 0.0
    %4397 = vmatprep.subr.mxu0 0.0
    %4398 = vmatpush1.msra.mxu0 0.0
    %4399 = vmatprep.subr.mxu0 0.0
    %4400 = vmatpush1.msra.mxu0 0.0
    %4401 = vmatprep.subr.mxu0 0.0
    %4402 = vmatpush1.msra.mxu0 0.0
    %4403 = vmatprep.subr.mxu0 0.0
    %4404 = vmatpush1.msra.mxu0 0.0
    %4405 = vmatprep.subr.mxu0 0.0
    %4406 = vmatpush1.msra.mxu0 0.0
    %4407 = vmatprep.subr.mxu0 0.0
    %4408 = vmatpush1.msra.mxu0 0.0
    %4409 = vmatprep.mubr.f32.mxu0 0.0
    %4410 = vmatmul.mubr.f32.gmra.mrb[0].mxu0 %v4343
    %v4411 = vpop.f32.mrb[0].mxu0
    %v4412 = vadd.f32 %v4339, %v4411
    %v4413 = vpop.f32.mrb[0].mxu0
    %4414 = vdwg.mxu0
    %v4415 = vmax.f32 %v4412, 0.0
    %v4416 = vld [vmem:[%s16] sm:$0xff]
    %v4417 = vld [vmem:[%s16 + $0x8] sm:$0xff]
    %v4418 = vld [vmem:[%s16 + $0x10] sm:$0xff]
    %v4419 = vld [vmem:[%s16 + $0x18] sm:$0xff]
    %v4420 = vld [vmem:[%s16 + $0x20] sm:$0xff]
    %v4421 = vld [vmem:[%s16 + $0x28] sm:$0xff]
    %v4422 = vld [vmem:[%s16 + $0x30] sm:$0xff]
    %v4423 = vld [vmem:[%s16 + $0x38] sm:$0xff]
    %v4424 = vld [vmem:[%s16 + $0x40] sm:$0xff]
    %v4425 = vld [vmem:[%s16 + $0x48] sm:$0xff]
    %v4426 = vld [vmem:[%s16 + $0x50] sm:$0xf]
    %v4427 = vld [vmem:[%s17] sm:$0x1]
    %v4429 = vlaneseq
    %v4430 = vshrl.u32 %v4429, 7
    %v4431 = vsub.s32 0, %v4430
    %v4432 = vrot.slane %v4427, %v4431
    %v4435 = vsel %vm2245, %v4415, 0
    %v4438 = vsel %vm2023, %v4426, 0
    %4440 = vmatprep.subr.mxu0 0.0
    %4441 = vmatpush1.msra.mxu0 %v4416
    %4442 = vmatprep.subr.mxu0 0.0
    %4443 = vmatpush1.msra.mxu0 %v4417
    %4444 = vmatprep.subr.mxu0 0.0
    %4445 = vmatpush1.msra.mxu0 %v4418
    %4446 = vmatprep.subr.mxu0 0.0
    %4447 = vmatpush1.msra.mxu0 %v4419
    %4448 = vmatprep.subr.mxu0 0.0
    %4449 = vmatpush1.msra.mxu0 %v4420
    %4450 = vmatprep.subr.mxu0 0.0
    %4451 = vmatpush1.msra.mxu0 %v4421
    %4452 = vmatprep.subr.mxu0 0.0
    %4453 = vmatpush1.msra.mxu0 %v4422
    %4454 = vmatprep.subr.mxu0 0.0
    %4455 = vmatpush1.msra.mxu0 %v4423
    %4456 = vmatprep.subr.mxu0 0.0
    %4457 = vmatpush1.msra.mxu0 %v4424
    %4458 = vmatprep.subr.mxu0 0.0
    %4459 = vmatpush1.msra.mxu0 %v4425
    %4460 = vmatprep.subr.mxu0 0.0
    %4461 = vmatpush1.msra.mxu0 %v4438
    %4462 = vmatprep.subr.mxu0 0.0
    %4463 = vmatpush1.msra.mxu0 0.0
    %4464 = vmatprep.subr.mxu0 0.0
    %4465 = vmatpush1.msra.mxu0 0.0
    %4466 = vmatprep.subr.mxu0 0.0
    %4467 = vmatpush1.msra.mxu0 0.0
    %4468 = vmatprep.subr.mxu0 0.0
    %4469 = vmatpush1.msra.mxu0 0.0
    %4470 = vmatprep.subr.mxu0 0.0
    %4471 = vmatpush1.msra.mxu0 0.0
    %4472 = vmatprep.subr.mxu0 0.0
    %4473 = vmatpush1.msra.mxu0 0.0
    %4474 = vmatprep.subr.mxu0 0.0
    %4475 = vmatpush1.msra.mxu0 0.0
    %4476 = vmatprep.subr.mxu0 0.0
    %4477 = vmatpush1.msra.mxu0 0.0
    %4478 = vmatprep.subr.mxu0 0.0
    %4479 = vmatpush1.msra.mxu0 0.0
    %4480 = vmatprep.subr.mxu0 0.0
    %4481 = vmatpush1.msra.mxu0 0.0
    %4482 = vmatprep.subr.mxu0 0.0
    %4483 = vmatpush1.msra.mxu0 0.0
    %4484 = vmatprep.subr.mxu0 0.0
    %4485 = vmatpush1.msra.mxu0 0.0
    %4486 = vmatprep.subr.mxu0 0.0
    %4487 = vmatpush1.msra.mxu0 0.0
    %4488 = vmatprep.subr.mxu0 0.0
    %4489 = vmatpush1.msra.mxu0 0.0
    %4490 = vmatprep.subr.mxu0 0.0
    %4491 = vmatpush1.msra.mxu0 0.0
    %4492 = vmatprep.subr.mxu0 0.0
    %4493 = vmatpush1.msra.mxu0 0.0
    %4494 = vmatprep.subr.mxu0 0.0
    %4495 = vmatpush1.msra.mxu0 0.0
    %4496 = vmatprep.subr.mxu0 0.0
    %4497 = vmatpush1.msra.mxu0 0.0
    %4498 = vmatprep.subr.mxu0 0.0
    %4499 = vmatpush1.msra.mxu0 0.0
    %4500 = vmatprep.subr.mxu0 0.0
    %4501 = vmatpush1.msra.mxu0 0.0
    %4502 = vmatprep.subr.mxu0 0.0
    %4503 = vmatpush1.msra.mxu0 0.0
    %4504 = vmatprep.mubr.f32.mxu0 0.0
    %4505 = vmatmul.mubr.f32.gmra.mrb[0].mxu0 %v4435
    %v4506 = vpop.f32.mrb[0].mxu0
    %v4507 = vadd.f32 %v4432, %v4506
    %v4508 = vpop.f32.mrb[0].mxu0
    %4509 = vdwg.mxu0
    %4510 = vst [vmem:[#allocation2] sm:$0x3] %v4507
    // Predicated region
    $region74: #{net_forward.1} parent=1 // pred_check
      _
    $region75: #{net_forward.1} parent=1 // pred_check_branch
      %4512 = sbr.rel (0) target = $region77
    $region76: #{net_forward.1} parent=1 // pred_region
      %s4514 = ssub.s32 32, 32
      %4515 = vsyncadd [#allocation3], %s4514
      %s4517 = sshll.u32 [#allocation2], 4
      %s4518 = int_to_ptr.vmem [resolvable:$true] %s4517
      %4520 = dma.vmem_to_hbm [thread:$0]  %s4518, 32, %s18, [#allocation3]
    $region77: #{net_forward.1} parent=1 // pred_fallthru
      _
    // Predicated region
    $region78: #{net_forward.1} parent=1 // pred_check
      _
    $region79: #{net_forward.1} parent=1 // pred_check_branch
      %4522 = sbr.rel (0) target = $region81
    $region80: #{net_forward.1} parent=1 // pred_region
      %4523 = dma.done [#allocation3], 32
    $region81: #{net_forward.1} parent=1 // pred_fallthru
      _
    %4524 = vsyncpa [#allocation3], 1

</llo_original>
